<compile_context>
chip_gen: v7x
topology: tpu7x:2x2x1
jax: 0.10.0
libtpu: 0.0.40
codegen_flags: <defaults>
</compile_context>

<pallas_src>
import jax
import jax.numpy as jnp
import numpy as np
from jax.experimental import pallas as pl
from jax.experimental.pallas import tpu as pltpu  # noqa: F401


# ---------------------------------------------------------------------------
# Fused wavefront kernel builder.
# ---------------------------------------------------------------------------
def _make_wave_kernel(T, B, D, H, L, OUT):
    assert OUT == 1, "kernel tail is specialized for out_size == 1 (module default)"
    LH = L * H          # concatenated hidden width
    L4H = 4 * LH        # gate slab width; gate-major column layout [i|f|g|o] x layers
    NWAVE = T + L - 1

    def kernel(x_ref, w_ref, misc_ref, out_ref):
        # x_ref    : (B, T, D)        batch-first input (no wrapper transpose)
        # w_ref    : (D + L*H, L*4H)  rows [0:D] = layer-0 input projection,
        #                             rows [D:] = block-structured recurrent +
        #                             layer->layer feedforward weights
        #                             (g-gate columns pre-scaled by 2)
        # misc_ref : (3, L*4H)        row 0 = merged biases (g cols pre-scaled by 2),
        #                             row 1[:H] = linear weight, row 2[0] = linear bias
        # out_ref  : (B, OUT)
        x_all = x_ref[...]                                          # (B, T, D), ~1 KiB
        lane = jax.lax.broadcasted_iota(jnp.int32, (B, LH), 1)

        h_cat = jnp.zeros((B, LH), jnp.float32)                     # [h_0 | h_1 | ...]
        c_cat = jnp.zeros((B, LH), jnp.float32)

        # Wavefront over the (layer, time) grid: wave w runs layer l at t = w - l.
        for w in range(NWAVE):
            lo = max(0, w - T + 1)        # first active layer this wave
            hi = min(L - 1, w)            # last active layer this wave

            gates = (jnp.dot(h_cat, w_ref[D:, :],
                             preferred_element_type=jnp.float32)
                     + misc_ref[0:1, :])                            # (B, L*4H)
            if w < T:
                # layer-0 input projection: independent of the recurrent chain,
                # the scheduler can issue it ahead of the h_cat matmul.
                gates = gates + jnp.dot(x_all[:, w, :], w_ref[:D, :],
                                        preferred_element_type=jnp.float32)

            # ONE full-slab sigmoid; cell gate recovered via tanh(z) = 2*sigmoid(2z)-1
            s = jax.nn.sigmoid(gates)
            i_all = s[:, 0 * LH:1 * LH]
            f_all = s[:, 1 * LH:2 * LH]
            g_all = 2.0 * s[:, 2 * LH:3 * LH] - 1.0
            o_all = s[:, 3 * LH:4 * LH]

            c_new = f_all * c_cat + i_all * g_all
            h_new = o_all * jnp.tanh(c_new)

            if lo == 0 and hi == L - 1:          # all layers active: no masking
                c_cat, h_cat = c_new, h_new
            else:                                # ramp-up / ramp-down waves
                mask = (lane >= lo * H) & (lane < (hi + 1) * H)
                c_cat = jnp.where(mask, c_new, c_cat)
                h_cat = jnp.where(mask, h_new, h_cat)

        # last layer's hidden state at the last time step
        h_last = h_cat[:, (L - 1) * H:]
        # dropout(p=0.2) is identity in eval/inference mode.
        # TODO(synk): training-mode dropout (pltpu.prng_* mask + 1/(1-p)) not implemented.
        lin_w = misc_ref[1:2, 0:H]                                  # (1, H)
        lin_b = misc_ref[2:3, 0:1]                                  # (1, 1)
        # out_size == 1: VPU multiply + lane reduce instead of a 1-output-lane matmul.
        out_ref[...] = jnp.sum(h_last * lin_w, axis=-1, keepdims=True) + lin_b

    return kernel


# ---------------------------------------------------------------------------
# Host-side parameter packing (folds the sigmoid-trick x2 into the g-gate columns).
# ---------------------------------------------------------------------------
def prepare_fused_operands(lstm_params, lin_w, lin_b):
    """lstm_params: per layer (w_ih (4H, D_l), w_hh (4H, H), b_ih (4H,), b_hh (4H,)),
    PyTorch gate order [i, f, g, o].  Column layout of the fused gate slab is
    gate-major then layer: col(gt, l, j) = gt*(L*H) + l*H + j."""
    L = len(lstm_params)
    H = lstm_params[0][1].shape[1]
    D = lstm_params[0][0].shape[1]
    LH, L4H = L * H, 4 * L * H
    assert np.asarray(lin_w).shape[0] == 1

    w_all = np.zeros((D + LH, L4H), np.float32)
    bias = np.zeros((L4H,), np.float32)
    for l, (w_ih, w_hh, b_ih, b_hh) in enumerate(lstm_params):
        w_ih = np.asarray(w_ih, np.float32)
        w_hh = np.asarray(w_hh, np.float32)
        b = np.asarray(b_ih, np.float32) + np.asarray(b_hh, np.float32)
        for gt in range(4):
            scale = 2.0 if gt == 2 else 1.0        # tanh(z) = 2*sigmoid(2z) - 1
            cols = slice(gt * LH + l * H, gt * LH + (l + 1) * H)
            # recurrent block: rows corresponding to h_l
            w_all[D + l * H:D + (l + 1) * H, cols] = \
                scale * w_hh[gt * H:(gt + 1) * H, :].T
            # feedforward block: x rows (layer 0) or h_{l-1} rows (layers >= 1)
            wih_t = scale * w_ih[gt * H:(gt + 1) * H, :].T
            if l == 0:
                w_all[0:D, cols] = wih_t
            else:
                w_all[D + (l - 1) * H:D + l * H, cols] = wih_t
            bias[cols] = scale * b[gt * H:(gt + 1) * H]

    misc = np.zeros((3, L4H), np.float32)
    misc[0, :] = bias
    misc[1, :H] = np.asarray(lin_w, np.float32).reshape(-1)
    misc[2, 0] = float(np.asarray(lin_b).reshape(-1)[0])
    return jnp.asarray(w_all), jnp.asarray(misc)


# ---------------------------------------------------------------------------
# Full forward pass (single fused pallas_call, no grid).
# ---------------------------------------------------------------------------
def benchmark_lstm_forward(x, lstm_params, lin_w, lin_b):
    """x: (B, T, D) batch_first.  Returns (B, 1, out_size) like the PyTorch module."""
    x = x.astype(jnp.float32)
    B, T, D = x.shape
    L = len(lstm_params)
    H = lstm_params[0][1].shape[1]
    OUT = np.asarray(lin_w).shape[0]

    w_all, misc = prepare_fused_operands(lstm_params, lin_w, lin_b)
    kernel = _make_wave_kernel(T, B, D, H, L, OUT)
    out = pl.pallas_call(
        kernel,
        out_shape=jax.ShapeDtypeStruct((B, OUT), jnp.float32),
    )(x, w_all, misc)
    return out[:, None, :]                                          # (B, 1, OUT)


# ---------------------------------------------------------------------------
# Deterministic parameter construction (PyTorch nn.LSTM / nn.Linear conventions).
# ---------------------------------------------------------------------------
def make_params(key, input_size, hidden_size, out_size, num_layers):
    params = []
    scale = 1.0 / float(np.sqrt(hidden_size))
    for layer in range(num_layers):
        d_in = input_size if layer == 0 else hidden_size
        key, k1, k2, k3, k4 = jax.random.split(key, 5)
        w_ih = jax.random.uniform(k1, (4 * hidden_size, d_in),
                                  minval=-scale, maxval=scale, dtype=jnp.float32)
        w_hh = jax.random.uniform(k2, (4 * hidden_size, hidden_size),
                                  minval=-scale, maxval=scale, dtype=jnp.float32)
        b_ih = jax.random.uniform(k3, (4 * hidden_size,),
                                  minval=-scale, maxval=scale, dtype=jnp.float32)
        b_hh = jax.random.uniform(k4, (4 * hidden_size,),
                                  minval=-scale, maxval=scale, dtype=jnp.float32)
        params.append((w_ih, w_hh, b_ih, b_hh))
    key, k5, k6 = jax.random.split(key, 3)
    lin_w = jax.random.uniform(k5, (out_size, hidden_size),
                               minval=-scale, maxval=scale, dtype=jnp.float32)
    lin_b = jax.random.uniform(k6, (out_size,),
                               minval=-scale, maxval=scale, dtype=jnp.float32)
    return params, lin_w, lin_b


def reference_forward_np(x, lstm_params, lin_w, lin_b):
    """float64 numpy reference replicating nn.LSTM -> last step -> Linear."""
    def sig(v):
        return 1.0 / (1.0 + np.exp(-v))
    x = np.asarray(x, np.float64)
    B, T, _ = x.shape
    seq = x
    for (w_ih, w_hh, b_ih, b_hh) in lstm_params:
        w_ih = np.asarray(w_ih, np.float64)
        w_hh = np.asarray(w_hh, np.float64)
        b = np.asarray(b_ih, np.float64) + np.asarray(b_hh, np.float64)
        H = w_hh.shape[1]
        h = np.zeros((B, H)); c = np.zeros((B, H))
        outs = []
        for t in range(T):
            z = seq[:, t, :] @ w_ih.T + h @ w_hh.T + b
            i = sig(z[:, 0 * H:1 * H]); f = sig(z[:, 1 * H:2 * H])
            g = np.tanh(z[:, 2 * H:3 * H]); o = sig(z[:, 3 * H:4 * H])
            c = f * c + i * g
            h = o * np.tanh(c)
            outs.append(h)
        seq = np.stack(outs, axis=1)
    out = seq[:, -1, :] @ np.asarray(lin_w, np.float64).T + np.asarray(lin_b, np.float64)
    return out[:, None, :]


if __name__ == "__main__":
    # small shapes consistent with the module's forward
    B, T = 2, 8                         # batch, seq_len
    INPUT_SIZE, HIDDEN, OUT, LAYERS = 16, 32, 1, 3

    key = jax.random.PRNGKey(0)
    key, kx = jax.random.split(key)
    x = jax.random.normal(kx, (B, T, INPUT_SIZE), dtype=jnp.float32)

    lstm_params, lin_w, lin_b = make_params(key, INPUT_SIZE, HIDDEN, OUT, LAYERS)

    out = benchmark_lstm_forward(x, lstm_params, lin_w, lin_b)
    out = jax.block_until_ready(out)
    assert out.shape == (B, 1, OUT), out.shape

    ref = reference_forward_np(np.asarray(x), lstm_params, lin_w, lin_b)
    if not np.allclose(np.asarray(out), ref, rtol=2e-3, atol=2e-3):
        max_err = float(np.max(np.abs(np.asarray(out) - ref)))
        raise AssertionError(f"kernel/reference mismatch, max abs err = {max_err}")
    print("KERNEL_OK")
</pallas_src>

<mosaic_0001>
module attributes {stable_mosaic.version = 11 : i64} {
  func.func @kernel(%arg0: memref<2x8x16xf32, #tpu.memory_space<vmem>>, %arg1: memref<112x384xf32, #tpu.memory_space<vmem>>, %arg2: memref<3x384xf32, #tpu.memory_space<vmem>>, %arg3: memref<2x1xf32, #tpu.memory_space<vmem>>) attributes {dimension_semantics = [], scalar_prefetch = 0 : i64, scratch_operands = 0 : i64, tpu.core_type = #tpu.core_type<tc>} {
    %c0 = arith.constant 0 : index
    %c0_0 = arith.constant 0 : index
    %c0_1 = arith.constant 0 : index
    %0 = vector.load %arg0[%c0, %c0_0, %c0_1] : memref<2x8x16xf32, #tpu.memory_space<vmem>>, vector<2x8x16xf32>
    %1 = tpu.iota {dimensions = array<i32: 1>} : vector<2x96xi32>
    %cst = arith.constant 0.000000e+00 : f32
    %2 = vector.broadcast %cst : f32 to vector<2x96xf32>
    %cst_2 = arith.constant 0.000000e+00 : f32
    %3 = vector.broadcast %cst_2 : f32 to vector<2x96xf32>
    %c16 = arith.constant 16 : index
    %c0_3 = arith.constant 0 : index
    %4 = vector.load %arg1[%c16, %c0_3] : memref<112x384xf32, #tpu.memory_space<vmem>>, vector<96x384xf32>
    %cst_4 = arith.constant dense<0.000000e+00> : vector<2x384xf32>
    %5 = tpu.matmul %2, %4, %cst_4 {dimension_numbers = #tpu.dot_dimension_numbers<[1], [0], [0], [1], [0, 0, 1, 1], [], []>} : vector<2x96xf32>, vector<96x384xf32>, vector<2x384xf32> -> vector<2x384xf32>
    %c0_5 = arith.constant 0 : index
    %c0_6 = arith.constant 0 : index
    %6 = vector.load %arg2[%c0_5, %c0_6] : memref<3x384xf32, #tpu.memory_space<vmem>>, vector<1x384xf32>
    %7 = vector.broadcast %6 : vector<1x384xf32> to vector<2x384xf32>
    %8 = arith.addf %5, %7 : vector<2x384xf32>
    %9 = vector.extract_strided_slice %0 {offsets = [0, 0, 0], sizes = [2, 1, 16], strides = [1, 1, 1]} : vector<2x8x16xf32> to vector<2x1x16xf32>
    %10 = vector.shape_cast %9 : vector<2x1x16xf32> to vector<2x16xf32>
    %c0_7 = arith.constant 0 : index
    %c0_8 = arith.constant 0 : index
    %11 = vector.load %arg1[%c0_7, %c0_8] : memref<112x384xf32, #tpu.memory_space<vmem>>, vector<16x384xf32>
    %cst_9 = arith.constant dense<0.000000e+00> : vector<2x384xf32>
    %12 = tpu.matmul %10, %11, %cst_9 {dimension_numbers = #tpu.dot_dimension_numbers<[1], [0], [0], [1], [0, 0, 1, 1], [], []>} : vector<2x16xf32>, vector<16x384xf32>, vector<2x384xf32> -> vector<2x384xf32>
    %13 = arith.addf %8, %12 : vector<2x384xf32>
    %14 = arith.negf %13 : vector<2x384xf32>
    %15 = math.exp %14 : vector<2x384xf32>
    %cst_10 = arith.constant 1.000000e+00 : f32
    %16 = vector.broadcast %cst_10 : f32 to vector<2x384xf32>
    %17 = arith.addf %16, %15 : vector<2x384xf32>
    %18 = arith.divf %16, %17 : vector<2x384xf32>
    %19 = vector.extract_strided_slice %18 {offsets = [0, 0], sizes = [2, 96], strides = [1, 1]} : vector<2x384xf32> to vector<2x96xf32>
    %20 = vector.extract_strided_slice %18 {offsets = [0, 96], sizes = [2, 96], strides = [1, 1]} : vector<2x384xf32> to vector<2x96xf32>
    %21 = vector.extract_strided_slice %18 {offsets = [0, 192], sizes = [2, 96], strides = [1, 1]} : vector<2x384xf32> to vector<2x96xf32>
    %cst_11 = arith.constant 2.000000e+00 : f32
    %22 = vector.broadcast %cst_11 : f32 to vector<2x96xf32>
    %23 = arith.mulf %22, %21 : vector<2x96xf32>
    %cst_12 = arith.constant 1.000000e+00 : f32
    %24 = vector.broadcast %cst_12 : f32 to vector<2x96xf32>
    %25 = arith.subf %23, %24 : vector<2x96xf32>
    %26 = vector.extract_strided_slice %18 {offsets = [0, 288], sizes = [2, 96], strides = [1, 1]} : vector<2x384xf32> to vector<2x96xf32>
    %27 = arith.mulf %20, %3 : vector<2x96xf32>
    %28 = arith.mulf %19, %25 : vector<2x96xf32>
    %29 = arith.addf %27, %28 : vector<2x96xf32>
    %30 = math.tanh %29 : vector<2x96xf32>
    %31 = arith.mulf %26, %30 : vector<2x96xf32>
    %c0_i32 = arith.constant 0 : i32
    %32 = vector.broadcast %c0_i32 : i32 to vector<2x96xi32>
    %33 = arith.cmpi sge, %1, %32 : vector<2x96xi32>
    %c32_i32 = arith.constant 32 : i32
    %34 = vector.broadcast %c32_i32 : i32 to vector<2x96xi32>
    %35 = arith.cmpi slt, %1, %34 : vector<2x96xi32>
    %36 = arith.andi %33, %35 : vector<2x96xi1>
    %37 = arith.select %36, %29, %3 : vector<2x96xi1>, vector<2x96xf32>
    %38 = arith.select %36, %31, %2 : vector<2x96xi1>, vector<2x96xf32>
    %c16_13 = arith.constant 16 : index
    %c0_14 = arith.constant 0 : index
    %39 = vector.load %arg1[%c16_13, %c0_14] : memref<112x384xf32, #tpu.memory_space<vmem>>, vector<96x384xf32>
    %cst_15 = arith.constant dense<0.000000e+00> : vector<2x384xf32>
    %40 = tpu.matmul %38, %39, %cst_15 {dimension_numbers = #tpu.dot_dimension_numbers<[1], [0], [0], [1], [0, 0, 1, 1], [], []>} : vector<2x96xf32>, vector<96x384xf32>, vector<2x384xf32> -> vector<2x384xf32>
    %c0_16 = arith.constant 0 : index
    %c0_17 = arith.constant 0 : index
    %41 = vector.load %arg2[%c0_16, %c0_17] : memref<3x384xf32, #tpu.memory_space<vmem>>, vector<1x384xf32>
    %42 = vector.broadcast %41 : vector<1x384xf32> to vector<2x384xf32>
    %43 = arith.addf %40, %42 : vector<2x384xf32>
    %44 = vector.extract_strided_slice %0 {offsets = [0, 1, 0], sizes = [2, 1, 16], strides = [1, 1, 1]} : vector<2x8x16xf32> to vector<2x1x16xf32>
    %45 = vector.shape_cast %44 : vector<2x1x16xf32> to vector<2x16xf32>
    %c0_18 = arith.constant 0 : index
    %c0_19 = arith.constant 0 : index
    %46 = vector.load %arg1[%c0_18, %c0_19] : memref<112x384xf32, #tpu.memory_space<vmem>>, vector<16x384xf32>
    %cst_20 = arith.constant dense<0.000000e+00> : vector<2x384xf32>
    %47 = tpu.matmul %45, %46, %cst_20 {dimension_numbers = #tpu.dot_dimension_numbers<[1], [0], [0], [1], [0, 0, 1, 1], [], []>} : vector<2x16xf32>, vector<16x384xf32>, vector<2x384xf32> -> vector<2x384xf32>
    %48 = arith.addf %43, %47 : vector<2x384xf32>
    %49 = arith.negf %48 : vector<2x384xf32>
    %50 = math.exp %49 : vector<2x384xf32>
    %cst_21 = arith.constant 1.000000e+00 : f32
    %51 = vector.broadcast %cst_21 : f32 to vector<2x384xf32>
    %52 = arith.addf %51, %50 : vector<2x384xf32>
    %53 = arith.divf %51, %52 : vector<2x384xf32>
    %54 = vector.extract_strided_slice %53 {offsets = [0, 0], sizes = [2, 96], strides = [1, 1]} : vector<2x384xf32> to vector<2x96xf32>
    %55 = vector.extract_strided_slice %53 {offsets = [0, 96], sizes = [2, 96], strides = [1, 1]} : vector<2x384xf32> to vector<2x96xf32>
    %56 = vector.extract_strided_slice %53 {offsets = [0, 192], sizes = [2, 96], strides = [1, 1]} : vector<2x384xf32> to vector<2x96xf32>
    %cst_22 = arith.constant 2.000000e+00 : f32
    %57 = vector.broadcast %cst_22 : f32 to vector<2x96xf32>
    %58 = arith.mulf %57, %56 : vector<2x96xf32>
    %cst_23 = arith.constant 1.000000e+00 : f32
    %59 = vector.broadcast %cst_23 : f32 to vector<2x96xf32>
    %60 = arith.subf %58, %59 : vector<2x96xf32>
    %61 = vector.extract_strided_slice %53 {offsets = [0, 288], sizes = [2, 96], strides = [1, 1]} : vector<2x384xf32> to vector<2x96xf32>
    %62 = arith.mulf %55, %37 : vector<2x96xf32>
    %63 = arith.mulf %54, %60 : vector<2x96xf32>
    %64 = arith.addf %62, %63 : vector<2x96xf32>
    %65 = math.tanh %64 : vector<2x96xf32>
    %66 = arith.mulf %61, %65 : vector<2x96xf32>
    %c0_i32_24 = arith.constant 0 : i32
    %67 = vector.broadcast %c0_i32_24 : i32 to vector<2x96xi32>
    %68 = arith.cmpi sge, %1, %67 : vector<2x96xi32>
    %c64_i32 = arith.constant 64 : i32
    %69 = vector.broadcast %c64_i32 : i32 to vector<2x96xi32>
    %70 = arith.cmpi slt, %1, %69 : vector<2x96xi32>
    %71 = arith.andi %68, %70 : vector<2x96xi1>
    %72 = arith.select %71, %64, %37 : vector<2x96xi1>, vector<2x96xf32>
    %73 = arith.select %71, %66, %38 : vector<2x96xi1>, vector<2x96xf32>
    %c16_25 = arith.constant 16 : index
    %c0_26 = arith.constant 0 : index
    %74 = vector.load %arg1[%c16_25, %c0_26] : memref<112x384xf32, #tpu.memory_space<vmem>>, vector<96x384xf32>
    %cst_27 = arith.constant dense<0.000000e+00> : vector<2x384xf32>
    %75 = tpu.matmul %73, %74, %cst_27 {dimension_numbers = #tpu.dot_dimension_numbers<[1], [0], [0], [1], [0, 0, 1, 1], [], []>} : vector<2x96xf32>, vector<96x384xf32>, vector<2x384xf32> -> vector<2x384xf32>
    %c0_28 = arith.constant 0 : index
    %c0_29 = arith.constant 0 : index
    %76 = vector.load %arg2[%c0_28, %c0_29] : memref<3x384xf32, #tpu.memory_space<vmem>>, vector<1x384xf32>
    %77 = vector.broadcast %76 : vector<1x384xf32> to vector<2x384xf32>
    %78 = arith.addf %75, %77 : vector<2x384xf32>
    %79 = vector.extract_strided_slice %0 {offsets = [0, 2, 0], sizes = [2, 1, 16], strides = [1, 1, 1]} : vector<2x8x16xf32> to vector<2x1x16xf32>
    %80 = vector.shape_cast %79 : vector<2x1x16xf32> to vector<2x16xf32>
    %c0_30 = arith.constant 0 : index
    %c0_31 = arith.constant 0 : index
    %81 = vector.load %arg1[%c0_30, %c0_31] : memref<112x384xf32, #tpu.memory_space<vmem>>, vector<16x384xf32>
    %cst_32 = arith.constant dense<0.000000e+00> : vector<2x384xf32>
    %82 = tpu.matmul %80, %81, %cst_32 {dimension_numbers = #tpu.dot_dimension_numbers<[1], [0], [0], [1], [0, 0, 1, 1], [], []>} : vector<2x16xf32>, vector<16x384xf32>, vector<2x384xf32> -> vector<2x384xf32>
    %83 = arith.addf %78, %82 : vector<2x384xf32>
    %84 = arith.negf %83 : vector<2x384xf32>
    %85 = math.exp %84 : vector<2x384xf32>
    %cst_33 = arith.constant 1.000000e+00 : f32
    %86 = vector.broadcast %cst_33 : f32 to vector<2x384xf32>
    %87 = arith.addf %86, %85 : vector<2x384xf32>
    %88 = arith.divf %86, %87 : vector<2x384xf32>
    %89 = vector.extract_strided_slice %88 {offsets = [0, 0], sizes = [2, 96], strides = [1, 1]} : vector<2x384xf32> to vector<2x96xf32>
    %90 = vector.extract_strided_slice %88 {offsets = [0, 96], sizes = [2, 96], strides = [1, 1]} : vector<2x384xf32> to vector<2x96xf32>
    %91 = vector.extract_strided_slice %88 {offsets = [0, 192], sizes = [2, 96], strides = [1, 1]} : vector<2x384xf32> to vector<2x96xf32>
    %cst_34 = arith.constant 2.000000e+00 : f32
    %92 = vector.broadcast %cst_34 : f32 to vector<2x96xf32>
    %93 = arith.mulf %92, %91 : vector<2x96xf32>
    %cst_35 = arith.constant 1.000000e+00 : f32
    %94 = vector.broadcast %cst_35 : f32 to vector<2x96xf32>
    %95 = arith.subf %93, %94 : vector<2x96xf32>
    %96 = vector.extract_strided_slice %88 {offsets = [0, 288], sizes = [2, 96], strides = [1, 1]} : vector<2x384xf32> to vector<2x96xf32>
    %97 = arith.mulf %90, %72 : vector<2x96xf32>
    %98 = arith.mulf %89, %95 : vector<2x96xf32>
    %99 = arith.addf %97, %98 : vector<2x96xf32>
    %100 = math.tanh %99 : vector<2x96xf32>
    %101 = arith.mulf %96, %100 : vector<2x96xf32>
    %c16_36 = arith.constant 16 : index
    %c0_37 = arith.constant 0 : index
    %102 = vector.load %arg1[%c16_36, %c0_37] : memref<112x384xf32, #tpu.memory_space<vmem>>, vector<96x384xf32>
    %cst_38 = arith.constant dense<0.000000e+00> : vector<2x384xf32>
    %103 = tpu.matmul %101, %102, %cst_38 {dimension_numbers = #tpu.dot_dimension_numbers<[1], [0], [0], [1], [0, 0, 1, 1], [], []>} : vector<2x96xf32>, vector<96x384xf32>, vector<2x384xf32> -> vector<2x384xf32>
    %c0_39 = arith.constant 0 : index
    %c0_40 = arith.constant 0 : index
    %104 = vector.load %arg2[%c0_39, %c0_40] : memref<3x384xf32, #tpu.memory_space<vmem>>, vector<1x384xf32>
    %105 = vector.broadcast %104 : vector<1x384xf32> to vector<2x384xf32>
    %106 = arith.addf %103, %105 : vector<2x384xf32>
    %107 = vector.extract_strided_slice %0 {offsets = [0, 3, 0], sizes = [2, 1, 16], strides = [1, 1, 1]} : vector<2x8x16xf32> to vector<2x1x16xf32>
    %108 = vector.shape_cast %107 : vector<2x1x16xf32> to vector<2x16xf32>
    %c0_41 = arith.constant 0 : index
    %c0_42 = arith.constant 0 : index
    %109 = vector.load %arg1[%c0_41, %c0_42] : memref<112x384xf32, #tpu.memory_space<vmem>>, vector<16x384xf32>
    %cst_43 = arith.constant dense<0.000000e+00> : vector<2x384xf32>
    %110 = tpu.matmul %108, %109, %cst_43 {dimension_numbers = #tpu.dot_dimension_numbers<[1], [0], [0], [1], [0, 0, 1, 1], [], []>} : vector<2x16xf32>, vector<16x384xf32>, vector<2x384xf32> -> vector<2x384xf32>
    %111 = arith.addf %106, %110 : vector<2x384xf32>
    %112 = arith.negf %111 : vector<2x384xf32>
    %113 = math.exp %112 : vector<2x384xf32>
    %cst_44 = arith.constant 1.000000e+00 : f32
    %114 = vector.broadcast %cst_44 : f32 to vector<2x384xf32>
    %115 = arith.addf %114, %113 : vector<2x384xf32>
    %116 = arith.divf %114, %115 : vector<2x384xf32>
    %117 = vector.extract_strided_slice %116 {offsets = [0, 0], sizes = [2, 96], strides = [1, 1]} : vector<2x384xf32> to vector<2x96xf32>
    %118 = vector.extract_strided_slice %116 {offsets = [0, 96], sizes = [2, 96], strides = [1, 1]} : vector<2x384xf32> to vector<2x96xf32>
    %119 = vector.extract_strided_slice %116 {offsets = [0, 192], sizes = [2, 96], strides = [1, 1]} : vector<2x384xf32> to vector<2x96xf32>
    %cst_45 = arith.constant 2.000000e+00 : f32
    %120 = vector.broadcast %cst_45 : f32 to vector<2x96xf32>
    %121 = arith.mulf %120, %119 : vector<2x96xf32>
    %cst_46 = arith.constant 1.000000e+00 : f32
    %122 = vector.broadcast %cst_46 : f32 to vector<2x96xf32>
    %123 = arith.subf %121, %122 : vector<2x96xf32>
    %124 = vector.extract_strided_slice %116 {offsets = [0, 288], sizes = [2, 96], strides = [1, 1]} : vector<2x384xf32> to vector<2x96xf32>
    %125 = arith.mulf %118, %99 : vector<2x96xf32>
    %126 = arith.mulf %117, %123 : vector<2x96xf32>
    %127 = arith.addf %125, %126 : vector<2x96xf32>
    %128 = math.tanh %127 : vector<2x96xf32>
    %129 = arith.mulf %124, %128 : vector<2x96xf32>
    %c16_47 = arith.constant 16 : index
    %c0_48 = arith.constant 0 : index
    %130 = vector.load %arg1[%c16_47, %c0_48] : memref<112x384xf32, #tpu.memory_space<vmem>>, vector<96x384xf32>
    %cst_49 = arith.constant dense<0.000000e+00> : vector<2x384xf32>
    %131 = tpu.matmul %129, %130, %cst_49 {dimension_numbers = #tpu.dot_dimension_numbers<[1], [0], [0], [1], [0, 0, 1, 1], [], []>} : vector<2x96xf32>, vector<96x384xf32>, vector<2x384xf32> -> vector<2x384xf32>
    %c0_50 = arith.constant 0 : index
    %c0_51 = arith.constant 0 : index
    %132 = vector.load %arg2[%c0_50, %c0_51] : memref<3x384xf32, #tpu.memory_space<vmem>>, vector<1x384xf32>
    %133 = vector.broadcast %132 : vector<1x384xf32> to vector<2x384xf32>
    %134 = arith.addf %131, %133 : vector<2x384xf32>
    %135 = vector.extract_strided_slice %0 {offsets = [0, 4, 0], sizes = [2, 1, 16], strides = [1, 1, 1]} : vector<2x8x16xf32> to vector<2x1x16xf32>
    %136 = vector.shape_cast %135 : vector<2x1x16xf32> to vector<2x16xf32>
    %c0_52 = arith.constant 0 : index
    %c0_53 = arith.constant 0 : index
    %137 = vector.load %arg1[%c0_52, %c0_53] : memref<112x384xf32, #tpu.memory_space<vmem>>, vector<16x384xf32>
    %cst_54 = arith.constant dense<0.000000e+00> : vector<2x384xf32>
    %138 = tpu.matmul %136, %137, %cst_54 {dimension_numbers = #tpu.dot_dimension_numbers<[1], [0], [0], [1], [0, 0, 1, 1], [], []>} : vector<2x16xf32>, vector<16x384xf32>, vector<2x384xf32> -> vector<2x384xf32>
    %139 = arith.addf %134, %138 : vector<2x384xf32>
    %140 = arith.negf %139 : vector<2x384xf32>
    %141 = math.exp %140 : vector<2x384xf32>
    %cst_55 = arith.constant 1.000000e+00 : f32
    %142 = vector.broadcast %cst_55 : f32 to vector<2x384xf32>
    %143 = arith.addf %142, %141 : vector<2x384xf32>
    %144 = arith.divf %142, %143 : vector<2x384xf32>
    %145 = vector.extract_strided_slice %144 {offsets = [0, 0], sizes = [2, 96], strides = [1, 1]} : vector<2x384xf32> to vector<2x96xf32>
    %146 = vector.extract_strided_slice %144 {offsets = [0, 96], sizes = [2, 96], strides = [1, 1]} : vector<2x384xf32> to vector<2x96xf32>
    %147 = vector.extract_strided_slice %144 {offsets = [0, 192], sizes = [2, 96], strides = [1, 1]} : vector<2x384xf32> to vector<2x96xf32>
    %cst_56 = arith.constant 2.000000e+00 : f32
    %148 = vector.broadcast %cst_56 : f32 to vector<2x96xf32>
    %149 = arith.mulf %148, %147 : vector<2x96xf32>
    %cst_57 = arith.constant 1.000000e+00 : f32
    %150 = vector.broadcast %cst_57 : f32 to vector<2x96xf32>
    %151 = arith.subf %149, %150 : vector<2x96xf32>
    %152 = vector.extract_strided_slice %144 {offsets = [0, 288], sizes = [2, 96], strides = [1, 1]} : vector<2x384xf32> to vector<2x96xf32>
    %153 = arith.mulf %146, %127 : vector<2x96xf32>
    %154 = arith.mulf %145, %151 : vector<2x96xf32>
    %155 = arith.addf %153, %154 : vector<2x96xf32>
    %156 = math.tanh %155 : vector<2x96xf32>
    %157 = arith.mulf %152, %156 : vector<2x96xf32>
    %c16_58 = arith.constant 16 : index
    %c0_59 = arith.constant 0 : index
    %158 = vector.load %arg1[%c16_58, %c0_59] : memref<112x384xf32, #tpu.memory_space<vmem>>, vector<96x384xf32>
    %cst_60 = arith.constant dense<0.000000e+00> : vector<2x384xf32>
    %159 = tpu.matmul %157, %158, %cst_60 {dimension_numbers = #tpu.dot_dimension_numbers<[1], [0], [0], [1], [0, 0, 1, 1], [], []>} : vector<2x96xf32>, vector<96x384xf32>, vector<2x384xf32> -> vector<2x384xf32>
    %c0_61 = arith.constant 0 : index
    %c0_62 = arith.constant 0 : index
    %160 = vector.load %arg2[%c0_61, %c0_62] : memref<3x384xf32, #tpu.memory_space<vmem>>, vector<1x384xf32>
    %161 = vector.broadcast %160 : vector<1x384xf32> to vector<2x384xf32>
    %162 = arith.addf %159, %161 : vector<2x384xf32>
    %163 = vector.extract_strided_slice %0 {offsets = [0, 5, 0], sizes = [2, 1, 16], strides = [1, 1, 1]} : vector<2x8x16xf32> to vector<2x1x16xf32>
    %164 = vector.shape_cast %163 : vector<2x1x16xf32> to vector<2x16xf32>
    %c0_63 = arith.constant 0 : index
    %c0_64 = arith.constant 0 : index
    %165 = vector.load %arg1[%c0_63, %c0_64] : memref<112x384xf32, #tpu.memory_space<vmem>>, vector<16x384xf32>
    %cst_65 = arith.constant dense<0.000000e+00> : vector<2x384xf32>
    %166 = tpu.matmul %164, %165, %cst_65 {dimension_numbers = #tpu.dot_dimension_numbers<[1], [0], [0], [1], [0, 0, 1, 1], [], []>} : vector<2x16xf32>, vector<16x384xf32>, vector<2x384xf32> -> vector<2x384xf32>
    %167 = arith.addf %162, %166 : vector<2x384xf32>
    %168 = arith.negf %167 : vector<2x384xf32>
    %169 = math.exp %168 : vector<2x384xf32>
    %cst_66 = arith.constant 1.000000e+00 : f32
    %170 = vector.broadcast %cst_66 : f32 to vector<2x384xf32>
    %171 = arith.addf %170, %169 : vector<2x384xf32>
    %172 = arith.divf %170, %171 : vector<2x384xf32>
    %173 = vector.extract_strided_slice %172 {offsets = [0, 0], sizes = [2, 96], strides = [1, 1]} : vector<2x384xf32> to vector<2x96xf32>
    %174 = vector.extract_strided_slice %172 {offsets = [0, 96], sizes = [2, 96], strides = [1, 1]} : vector<2x384xf32> to vector<2x96xf32>
    %175 = vector.extract_strided_slice %172 {offsets = [0, 192], sizes = [2, 96], strides = [1, 1]} : vector<2x384xf32> to vector<2x96xf32>
    %cst_67 = arith.constant 2.000000e+00 : f32
    %176 = vector.broadcast %cst_67 : f32 to vector<2x96xf32>
    %177 = arith.mulf %176, %175 : vector<2x96xf32>
    %cst_68 = arith.constant 1.000000e+00 : f32
    %178 = vector.broadcast %cst_68 : f32 to vector<2x96xf32>
    %179 = arith.subf %177, %178 : vector<2x96xf32>
    %180 = vector.extract_strided_slice %172 {offsets = [0, 288], sizes = [2, 96], strides = [1, 1]} : vector<2x384xf32> to vector<2x96xf32>
    %181 = arith.mulf %174, %155 : vector<2x96xf32>
    %182 = arith.mulf %173, %179 : vector<2x96xf32>
    %183 = arith.addf %181, %182 : vector<2x96xf32>
    %184 = math.tanh %183 : vector<2x96xf32>
    %185 = arith.mulf %180, %184 : vector<2x96xf32>
    %c16_69 = arith.constant 16 : index
    %c0_70 = arith.constant 0 : index
    %186 = vector.load %arg1[%c16_69, %c0_70] : memref<112x384xf32, #tpu.memory_space<vmem>>, vector<96x384xf32>
    %cst_71 = arith.constant dense<0.000000e+00> : vector<2x384xf32>
    %187 = tpu.matmul %185, %186, %cst_71 {dimension_numbers = #tpu.dot_dimension_numbers<[1], [0], [0], [1], [0, 0, 1, 1], [], []>} : vector<2x96xf32>, vector<96x384xf32>, vector<2x384xf32> -> vector<2x384xf32>
    %c0_72 = arith.constant 0 : index
    %c0_73 = arith.constant 0 : index
    %188 = vector.load %arg2[%c0_72, %c0_73] : memref<3x384xf32, #tpu.memory_space<vmem>>, vector<1x384xf32>
    %189 = vector.broadcast %188 : vector<1x384xf32> to vector<2x384xf32>
    %190 = arith.addf %187, %189 : vector<2x384xf32>
    %191 = vector.extract_strided_slice %0 {offsets = [0, 6, 0], sizes = [2, 1, 16], strides = [1, 1, 1]} : vector<2x8x16xf32> to vector<2x1x16xf32>
    %192 = vector.shape_cast %191 : vector<2x1x16xf32> to vector<2x16xf32>
    %c0_74 = arith.constant 0 : index
    %c0_75 = arith.constant 0 : index
    %193 = vector.load %arg1[%c0_74, %c0_75] : memref<112x384xf32, #tpu.memory_space<vmem>>, vector<16x384xf32>
    %cst_76 = arith.constant dense<0.000000e+00> : vector<2x384xf32>
    %194 = tpu.matmul %192, %193, %cst_76 {dimension_numbers = #tpu.dot_dimension_numbers<[1], [0], [0], [1], [0, 0, 1, 1], [], []>} : vector<2x16xf32>, vector<16x384xf32>, vector<2x384xf32> -> vector<2x384xf32>
    %195 = arith.addf %190, %194 : vector<2x384xf32>
    %196 = arith.negf %195 : vector<2x384xf32>
    %197 = math.exp %196 : vector<2x384xf32>
    %cst_77 = arith.constant 1.000000e+00 : f32
    %198 = vector.broadcast %cst_77 : f32 to vector<2x384xf32>
    %199 = arith.addf %198, %197 : vector<2x384xf32>
    %200 = arith.divf %198, %199 : vector<2x384xf32>
    %201 = vector.extract_strided_slice %200 {offsets = [0, 0], sizes = [2, 96], strides = [1, 1]} : vector<2x384xf32> to vector<2x96xf32>
    %202 = vector.extract_strided_slice %200 {offsets = [0, 96], sizes = [2, 96], strides = [1, 1]} : vector<2x384xf32> to vector<2x96xf32>
    %203 = vector.extract_strided_slice %200 {offsets = [0, 192], sizes = [2, 96], strides = [1, 1]} : vector<2x384xf32> to vector<2x96xf32>
    %cst_78 = arith.constant 2.000000e+00 : f32
    %204 = vector.broadcast %cst_78 : f32 to vector<2x96xf32>
    %205 = arith.mulf %204, %203 : vector<2x96xf32>
    %cst_79 = arith.constant 1.000000e+00 : f32
    %206 = vector.broadcast %cst_79 : f32 to vector<2x96xf32>
    %207 = arith.subf %205, %206 : vector<2x96xf32>
    %208 = vector.extract_strided_slice %200 {offsets = [0, 288], sizes = [2, 96], strides = [1, 1]} : vector<2x384xf32> to vector<2x96xf32>
    %209 = arith.mulf %202, %183 : vector<2x96xf32>
    %210 = arith.mulf %201, %207 : vector<2x96xf32>
    %211 = arith.addf %209, %210 : vector<2x96xf32>
    %212 = math.tanh %211 : vector<2x96xf32>
    %213 = arith.mulf %208, %212 : vector<2x96xf32>
    %c16_80 = arith.constant 16 : index
    %c0_81 = arith.constant 0 : index
    %214 = vector.load %arg1[%c16_80, %c0_81] : memref<112x384xf32, #tpu.memory_space<vmem>>, vector<96x384xf32>
    %cst_82 = arith.constant dense<0.000000e+00> : vector<2x384xf32>
    %215 = tpu.matmul %213, %214, %cst_82 {dimension_numbers = #tpu.dot_dimension_numbers<[1], [0], [0], [1], [0, 0, 1, 1], [], []>} : vector<2x96xf32>, vector<96x384xf32>, vector<2x384xf32> -> vector<2x384xf32>
    %c0_83 = arith.constant 0 : index
    %c0_84 = arith.constant 0 : index
    %216 = vector.load %arg2[%c0_83, %c0_84] : memref<3x384xf32, #tpu.memory_space<vmem>>, vector<1x384xf32>
    %217 = vector.broadcast %216 : vector<1x384xf32> to vector<2x384xf32>
    %218 = arith.addf %215, %217 : vector<2x384xf32>
    %219 = vector.extract_strided_slice %0 {offsets = [0, 7, 0], sizes = [2, 1, 16], strides = [1, 1, 1]} : vector<2x8x16xf32> to vector<2x1x16xf32>
    %220 = vector.shape_cast %219 : vector<2x1x16xf32> to vector<2x16xf32>
    %c0_85 = arith.constant 0 : index
    %c0_86 = arith.constant 0 : index
    %221 = vector.load %arg1[%c0_85, %c0_86] : memref<112x384xf32, #tpu.memory_space<vmem>>, vector<16x384xf32>
    %cst_87 = arith.constant dense<0.000000e+00> : vector<2x384xf32>
    %222 = tpu.matmul %220, %221, %cst_87 {dimension_numbers = #tpu.dot_dimension_numbers<[1], [0], [0], [1], [0, 0, 1, 1], [], []>} : vector<2x16xf32>, vector<16x384xf32>, vector<2x384xf32> -> vector<2x384xf32>
    %223 = arith.addf %218, %222 : vector<2x384xf32>
    %224 = arith.negf %223 : vector<2x384xf32>
    %225 = math.exp %224 : vector<2x384xf32>
    %cst_88 = arith.constant 1.000000e+00 : f32
    %226 = vector.broadcast %cst_88 : f32 to vector<2x384xf32>
    %227 = arith.addf %226, %225 : vector<2x384xf32>
    %228 = arith.divf %226, %227 : vector<2x384xf32>
    %229 = vector.extract_strided_slice %228 {offsets = [0, 0], sizes = [2, 96], strides = [1, 1]} : vector<2x384xf32> to vector<2x96xf32>
    %230 = vector.extract_strided_slice %228 {offsets = [0, 96], sizes = [2, 96], strides = [1, 1]} : vector<2x384xf32> to vector<2x96xf32>
    %231 = vector.extract_strided_slice %228 {offsets = [0, 192], sizes = [2, 96], strides = [1, 1]} : vector<2x384xf32> to vector<2x96xf32>
    %cst_89 = arith.constant 2.000000e+00 : f32
    %232 = vector.broadcast %cst_89 : f32 to vector<2x96xf32>
    %233 = arith.mulf %232, %231 : vector<2x96xf32>
    %cst_90 = arith.constant 1.000000e+00 : f32
    %234 = vector.broadcast %cst_90 : f32 to vector<2x96xf32>
    %235 = arith.subf %233, %234 : vector<2x96xf32>
    %236 = vector.extract_strided_slice %228 {offsets = [0, 288], sizes = [2, 96], strides = [1, 1]} : vector<2x384xf32> to vector<2x96xf32>
    %237 = arith.mulf %230, %211 : vector<2x96xf32>
    %238 = arith.mulf %229, %235 : vector<2x96xf32>
    %239 = arith.addf %237, %238 : vector<2x96xf32>
    %240 = math.tanh %239 : vector<2x96xf32>
    %241 = arith.mulf %236, %240 : vector<2x96xf32>
    %c16_91 = arith.constant 16 : index
    %c0_92 = arith.constant 0 : index
    %242 = vector.load %arg1[%c16_91, %c0_92] : memref<112x384xf32, #tpu.memory_space<vmem>>, vector<96x384xf32>
    %cst_93 = arith.constant dense<0.000000e+00> : vector<2x384xf32>
    %243 = tpu.matmul %241, %242, %cst_93 {dimension_numbers = #tpu.dot_dimension_numbers<[1], [0], [0], [1], [0, 0, 1, 1], [], []>} : vector<2x96xf32>, vector<96x384xf32>, vector<2x384xf32> -> vector<2x384xf32>
    %c0_94 = arith.constant 0 : index
    %c0_95 = arith.constant 0 : index
    %244 = vector.load %arg2[%c0_94, %c0_95] : memref<3x384xf32, #tpu.memory_space<vmem>>, vector<1x384xf32>
    %245 = vector.broadcast %244 : vector<1x384xf32> to vector<2x384xf32>
    %246 = arith.addf %243, %245 : vector<2x384xf32>
    %247 = arith.negf %246 : vector<2x384xf32>
    %248 = math.exp %247 : vector<2x384xf32>
    %cst_96 = arith.constant 1.000000e+00 : f32
    %249 = vector.broadcast %cst_96 : f32 to vector<2x384xf32>
    %250 = arith.addf %249, %248 : vector<2x384xf32>
    %251 = arith.divf %249, %250 : vector<2x384xf32>
    %252 = vector.extract_strided_slice %251 {offsets = [0, 0], sizes = [2, 96], strides = [1, 1]} : vector<2x384xf32> to vector<2x96xf32>
    %253 = vector.extract_strided_slice %251 {offsets = [0, 96], sizes = [2, 96], strides = [1, 1]} : vector<2x384xf32> to vector<2x96xf32>
    %254 = vector.extract_strided_slice %251 {offsets = [0, 192], sizes = [2, 96], strides = [1, 1]} : vector<2x384xf32> to vector<2x96xf32>
    %cst_97 = arith.constant 2.000000e+00 : f32
    %255 = vector.broadcast %cst_97 : f32 to vector<2x96xf32>
    %256 = arith.mulf %255, %254 : vector<2x96xf32>
    %cst_98 = arith.constant 1.000000e+00 : f32
    %257 = vector.broadcast %cst_98 : f32 to vector<2x96xf32>
    %258 = arith.subf %256, %257 : vector<2x96xf32>
    %259 = vector.extract_strided_slice %251 {offsets = [0, 288], sizes = [2, 96], strides = [1, 1]} : vector<2x384xf32> to vector<2x96xf32>
    %260 = arith.mulf %253, %239 : vector<2x96xf32>
    %261 = arith.mulf %252, %258 : vector<2x96xf32>
    %262 = arith.addf %260, %261 : vector<2x96xf32>
    %263 = math.tanh %262 : vector<2x96xf32>
    %264 = arith.mulf %259, %263 : vector<2x96xf32>
    %c32_i32_99 = arith.constant 32 : i32
    %265 = vector.broadcast %c32_i32_99 : i32 to vector<2x96xi32>
    %266 = arith.cmpi sge, %1, %265 : vector<2x96xi32>
    %c96_i32 = arith.constant 96 : i32
    %267 = vector.broadcast %c96_i32 : i32 to vector<2x96xi32>
    %268 = arith.cmpi slt, %1, %267 : vector<2x96xi32>
    %269 = arith.andi %266, %268 : vector<2x96xi1>
    %270 = arith.select %269, %262, %239 : vector<2x96xi1>, vector<2x96xf32>
    %271 = arith.select %269, %264, %241 : vector<2x96xi1>, vector<2x96xf32>
    %c16_100 = arith.constant 16 : index
    %c0_101 = arith.constant 0 : index
    %272 = vector.load %arg1[%c16_100, %c0_101] : memref<112x384xf32, #tpu.memory_space<vmem>>, vector<96x384xf32>
    %cst_102 = arith.constant dense<0.000000e+00> : vector<2x384xf32>
    %273 = tpu.matmul %271, %272, %cst_102 {dimension_numbers = #tpu.dot_dimension_numbers<[1], [0], [0], [1], [0, 0, 1, 1], [], []>} : vector<2x96xf32>, vector<96x384xf32>, vector<2x384xf32> -> vector<2x384xf32>
    %c0_103 = arith.constant 0 : index
    %c0_104 = arith.constant 0 : index
    %274 = vector.load %arg2[%c0_103, %c0_104] : memref<3x384xf32, #tpu.memory_space<vmem>>, vector<1x384xf32>
    %275 = vector.broadcast %274 : vector<1x384xf32> to vector<2x384xf32>
    %276 = arith.addf %273, %275 : vector<2x384xf32>
    %277 = arith.negf %276 : vector<2x384xf32>
    %278 = math.exp %277 : vector<2x384xf32>
    %cst_105 = arith.constant 1.000000e+00 : f32
    %279 = vector.broadcast %cst_105 : f32 to vector<2x384xf32>
    %280 = arith.addf %279, %278 : vector<2x384xf32>
    %281 = arith.divf %279, %280 : vector<2x384xf32>
    %282 = vector.extract_strided_slice %281 {offsets = [0, 0], sizes = [2, 96], strides = [1, 1]} : vector<2x384xf32> to vector<2x96xf32>
    %283 = vector.extract_strided_slice %281 {offsets = [0, 96], sizes = [2, 96], strides = [1, 1]} : vector<2x384xf32> to vector<2x96xf32>
    %284 = vector.extract_strided_slice %281 {offsets = [0, 192], sizes = [2, 96], strides = [1, 1]} : vector<2x384xf32> to vector<2x96xf32>
    %cst_106 = arith.constant 2.000000e+00 : f32
    %285 = vector.broadcast %cst_106 : f32 to vector<2x96xf32>
    %286 = arith.mulf %285, %284 : vector<2x96xf32>
    %cst_107 = arith.constant 1.000000e+00 : f32
    %287 = vector.broadcast %cst_107 : f32 to vector<2x96xf32>
    %288 = arith.subf %286, %287 : vector<2x96xf32>
    %289 = vector.extract_strided_slice %281 {offsets = [0, 288], sizes = [2, 96], strides = [1, 1]} : vector<2x384xf32> to vector<2x96xf32>
    %290 = arith.mulf %283, %270 : vector<2x96xf32>
    %291 = arith.mulf %282, %288 : vector<2x96xf32>
    %292 = arith.addf %290, %291 : vector<2x96xf32>
    %293 = math.tanh %292 : vector<2x96xf32>
    %294 = arith.mulf %289, %293 : vector<2x96xf32>
    %c64_i32_108 = arith.constant 64 : i32
    %295 = vector.broadcast %c64_i32_108 : i32 to vector<2x96xi32>
    %296 = arith.cmpi sge, %1, %295 : vector<2x96xi32>
    %c96_i32_109 = arith.constant 96 : i32
    %297 = vector.broadcast %c96_i32_109 : i32 to vector<2x96xi32>
    %298 = arith.cmpi slt, %1, %297 : vector<2x96xi32>
    %299 = arith.andi %296, %298 : vector<2x96xi1>
    %300 = arith.select %299, %294, %271 : vector<2x96xi1>, vector<2x96xf32>
    %301 = vector.extract_strided_slice %300 {offsets = [0, 64], sizes = [2, 32], strides = [1, 1]} : vector<2x96xf32> to vector<2x32xf32>
    %c1 = arith.constant 1 : index
    %c0_110 = arith.constant 0 : index
    %302 = vector.load %arg2[%c1, %c0_110] : memref<3x384xf32, #tpu.memory_space<vmem>>, vector<1x32xf32>
    %c2 = arith.constant 2 : index
    %c0_111 = arith.constant 0 : index
    %303 = vector.load %arg2[%c2, %c0_111] : memref<3x384xf32, #tpu.memory_space<vmem>>, vector<1x1xf32>
    %304 = vector.broadcast %302 : vector<1x32xf32> to vector<2x32xf32>
    %305 = arith.mulf %301, %304 : vector<2x32xf32>
    %cst_112 = arith.constant dense<0.000000e+00> : vector<2xf32>
    %306 = vector.multi_reduction <add>, %305, %cst_112 [1] : vector<2x32xf32> to vector<2xf32>
    %307 = vector.shape_cast %306 : vector<2xf32> to vector<2x1xf32>
    %308 = vector.broadcast %303 : vector<1x1xf32> to vector<2x1xf32>
    %309 = arith.addf %307, %308 : vector<2x1xf32>
    %c0_113 = arith.constant 0 : index
    %c0_114 = arith.constant 0 : index
    %310 = vector.load %arg3[%c0_113, %c0_114] : memref<2x1xf32, #tpu.memory_space<vmem>>, vector<2x1xf32>
    tpu.vector_store %arg3[%c0_113, %c0_114], %309 {strides = array<i32>} : memref<2x1xf32, #tpu.memory_space<vmem>>, vector<2x1xf32>,
    return
  }
}

</mosaic_0001>

<llo_original>
// kernel: tpu_custom_call.1
$region0: #{tpu_custom_call.1}
  #allocation0 [shape = 'u32[]', space=smem, size = 0x4, offset = 0x4, fixed_abs, tag = 'smem constant byte address 0x4 - core index']
  #allocation1 [shape = 'u32[144,128]{1,0:T(1,128)}', space=vmem, size = 0x12000, scoped, tag = 'internal scratch']
  %s0 = inlined_call_operand.hbm [shape: f32[2,8,16], index: 0, kind: input, shape index: {}]
  %s1 = inlined_call_operand.hbm [shape: f32[112,384], index: 1, kind: input, shape index: {}]
  %s2 = inlined_call_operand.hbm [shape: f32[3,384], index: 2, kind: input, shape index: {}]
  %s3 = inlined_call_operand.vmem [shape: f32[2,1], index: 3, kind: output, shape index: {}]
  %s4 = sld [smem:[#allocation0]]
  $region34: #{tpu_custom_call.1} parent=0
    _
  %s6 = ssub.s32 1, %s4
  %s7 = scalar_select 0, %s6, %s4
  $region1: #{tpu_custom_call.1} parent=0
    #allocation2 [shape = 'u8[8192]{0}', space=vmem, size = 0x2000, scoped, tag = 'input window, operand 0, single buffered']
    #allocation3 [shape = 's32[1]{0}', space=sflag, size = 0x4, scoped, tag = 'scoped memory for tpu_custom_call.1']
    #allocation4 [shape = 'u8[172032]{0}', space=vmem, size = 0x2a000, scoped, tag = 'input window, operand 1, single buffered']
    #allocation5 [shape = 's32[1]{0}', space=sflag, size = 0x4, scoped, tag = 'scoped memory for tpu_custom_call.1']
    #allocation6 [shape = 'u8[6144]{0}', space=vmem, size = 0x1800, scoped, tag = 'input window, operand 2, single buffered']
    %8 = vsyncpa [#allocation3], 0
    %9 = vsyncpa [#allocation5], 0
    // Predicated region
    $region2: #{tpu_custom_call.1} parent=1 // pred_check
      _
    $region3: #{tpu_custom_call.1} parent=1 // pred_check_branch
      %11 = sbr.rel (0) target = $region5
    $region4: #{tpu_custom_call.1} parent=1 // pred_region
      %s13 = ssub.s32 256, 256
      %14 = vsyncadd [#allocation3], %s13
      %s15 = sshll.u32 [#allocation2], 4
      %s16 = int_to_ptr.vmem [resolvable:$true] %s15
      %21 = dma.hbm_to_vmem [thread:$0]  %s0, 256, %s16, [#allocation3], 128, 128, 8
    $region5: #{tpu_custom_call.1} parent=1 // pred_fallthru
      _
    // Predicated region
    $region6: #{tpu_custom_call.1} parent=1 // pred_check
      _
    $region7: #{tpu_custom_call.1} parent=1 // pred_check_branch
      %23 = sbr.rel (0) target = $region9
    $region8: #{tpu_custom_call.1} parent=1 // pred_region
      %s25 = ssub.s32 5376, 5376
      %26 = vsyncadd [#allocation5], %s25
      %s27 = sshll.u32 [#allocation4], 4
      %s28 = int_to_ptr.vmem [resolvable:$true] %s27
      %33 = dma.hbm_to_vmem [thread:$0]  %s1, 5376, %s28, [#allocation5], 384, 384, 24
    $region9: #{tpu_custom_call.1} parent=1 // pred_fallthru
      _
    // Predicated region
    $region10: #{tpu_custom_call.1} parent=1 // pred_check
      _
    $region11: #{tpu_custom_call.1} parent=1 // pred_check_branch
      %35 = sbr.rel (0) target = $region13
    $region12: #{tpu_custom_call.1} parent=1 // pred_region
      %s37 = ssub.s32 192, 192
      %38 = vsyncadd [#allocation5], %s37
      %s40 = sshll.u32 [#allocation6], 4
      %s41 = int_to_ptr.vmem [resolvable:$true] %s40
      %43 = dma.hbm_to_vmem [thread:$0]  %s2, 192, %s41, [#allocation5]
    $region13: #{tpu_custom_call.1} parent=1 // pred_fallthru
      _
    // Predicated region
    $region14: #{tpu_custom_call.1} parent=1 // pred_check
      _
    $region15: #{tpu_custom_call.1} parent=1 // pred_check_branch
      %45 = sbr.rel (0) target = $region17
    $region16: #{tpu_custom_call.1} parent=1 // pred_region
      %46 = dma.done [#allocation3], 256
    $region17: #{tpu_custom_call.1} parent=1 // pred_fallthru
      _
    // Predicated region
    $region18: #{tpu_custom_call.1} parent=1 // pred_check
      _
    $region19: #{tpu_custom_call.1} parent=1 // pred_check_branch
      %48 = sbr.rel (0) target = $region21
    $region20: #{tpu_custom_call.1} parent=1 // pred_region
      %49 = dma.done [#allocation5], 5376
    $region21: #{tpu_custom_call.1} parent=1 // pred_fallthru
      _
    // Predicated region
    $region22: #{tpu_custom_call.1} parent=1 // pred_check
      _
    $region23: #{tpu_custom_call.1} parent=1 // pred_check_branch
      %51 = sbr.rel (0) target = $region25
    $region24: #{tpu_custom_call.1} parent=1 // pred_region
      %52 = dma.done [#allocation5], 192
    $region25: #{tpu_custom_call.1} parent=1 // pred_fallthru
      _
    %v53 = vld [vmem:[#allocation2] sm:$0xff]
    %v54 = vld [vmem:[#allocation2 + $0x8] sm:$0xff]
    %v55 = vlaneseq
    %v56 = vand.u32 %v55, 127
    %v57 = vld [vmem:[#allocation4 + $0x30] sm:$0xff]
    %v58 = vld [vmem:[#allocation4 + $0x38] sm:$0xff]
    %v59 = vld [vmem:[#allocation4 + $0x40] sm:$0xff]
    %v60 = vld [vmem:[#allocation4 + $0x48] sm:$0xff]
    %v61 = vld [vmem:[#allocation4 + $0x50] sm:$0xff]
    %v62 = vld [vmem:[#allocation4 + $0x58] sm:$0xff]
    %v63 = vld [vmem:[#allocation4 + $0x60] sm:$0xff]
    %v64 = vld [vmem:[#allocation4 + $0x68] sm:$0xff]
    %v65 = vld [vmem:[#allocation4 + $0x70] sm:$0xff]
    %v66 = vld [vmem:[#allocation4 + $0x78] sm:$0xff]
    %v67 = vld [vmem:[#allocation4 + $0x80] sm:$0xff]
    %v68 = vld [vmem:[#allocation4 + $0x88] sm:$0xff]
    %v69 = vld [vmem:[#allocation4 + $0x90] sm:$0xff]
    %v70 = vld [vmem:[#allocation4 + $0x98] sm:$0xff]
    %v71 = vld [vmem:[#allocation4 + $0xa0] sm:$0xff]
    %v72 = vld [vmem:[#allocation4 + $0xa8] sm:$0xff]
    %v73 = vld [vmem:[#allocation4 + $0xb0] sm:$0xff]
    %v74 = vld [vmem:[#allocation4 + $0xb8] sm:$0xff]
    %v75 = vld [vmem:[#allocation4 + $0xc0] sm:$0xff]
    %v76 = vld [vmem:[#allocation4 + $0xc8] sm:$0xff]
    %v77 = vld [vmem:[#allocation4 + $0xd0] sm:$0xff]
    %v78 = vld [vmem:[#allocation4 + $0xd8] sm:$0xff]
    %v79 = vld [vmem:[#allocation4 + $0xe0] sm:$0xff]
    %v80 = vld [vmem:[#allocation4 + $0xe8] sm:$0xff]
    %v81 = vld [vmem:[#allocation4 + $0xf0] sm:$0xff]
    %v82 = vld [vmem:[#allocation4 + $0xf8] sm:$0xff]
    %v83 = vld [vmem:[#allocation4 + $0x100] sm:$0xff]
    %v84 = vld [vmem:[#allocation4 + $0x108] sm:$0xff]
    %v85 = vld [vmem:[#allocation4 + $0x110] sm:$0xff]
    %v86 = vld [vmem:[#allocation4 + $0x118] sm:$0xff]
    %v87 = vld [vmem:[#allocation4 + $0x120] sm:$0xff]
    %v88 = vld [vmem:[#allocation4 + $0x128] sm:$0xff]
    %v89 = vld [vmem:[#allocation4 + $0x130] sm:$0xff]
    %v90 = vld [vmem:[#allocation4 + $0x138] sm:$0xff]
    %v91 = vld [vmem:[#allocation4 + $0x140] sm:$0xff]
    %v92 = vld [vmem:[#allocation4 + $0x148] sm:$0xff]
    %v93 = vld [vmem:[#allocation6] ss:$4 sm:$0x7]
    %v95 = vlaneseq
    %v96 = vshrl.u32 %v95, 7
    %v97 = vsub.s32 0, %v96
    %v98 = vrot.slane %v93, %v97
    %v99 = vlaneseq
    %v100 = vshrl.u32 %v99, 7
    %v101 = vsub.s32 1, %v100
    %v102 = vrot.slane %v93, %v101
    %v103 = vlaneseq
    %v104 = vshrl.u32 %v103, 7
    %v105 = vsub.s32 2, %v104
    %v106 = vrot.slane %v93, %v105
    %vm110 = vcmask 785408
    %v112 = vsel %vm110, 0.0, 0
    %114 = vmatprep.subr.mxu0 %v58
    %115 = vmatpush1.msra.mxu0 %v57
    %116 = vmatprep.subr.mxu0 %v61
    %117 = vmatpush1.msra.mxu0 %v60
    %118 = vmatprep.subr.mxu0 %v64
    %119 = vmatpush1.msra.mxu0 %v63
    %120 = vmatprep.subr.mxu0 %v67
    %121 = vmatpush1.msra.mxu0 %v66
    %122 = vmatprep.subr.mxu0 %v70
    %123 = vmatpush1.msra.mxu0 %v69
    %124 = vmatprep.subr.mxu0 %v73
    %125 = vmatpush1.msra.mxu0 %v72
    %126 = vmatprep.subr.mxu0 %v76
    %127 = vmatpush1.msra.mxu0 %v75
    %128 = vmatprep.subr.mxu0 %v79
    %129 = vmatpush1.msra.mxu0 %v78
    %130 = vmatprep.subr.mxu0 %v82
    %131 = vmatpush1.msra.mxu0 %v81
    %132 = vmatprep.subr.mxu0 %v85
    %133 = vmatpush1.msra.mxu0 %v84
    %134 = vmatprep.subr.mxu0 %v88
    %135 = vmatpush1.msra.mxu0 %v87
    %136 = vmatprep.subr.mxu0 %v91
    %137 = vmatpush1.msra.mxu0 %v90
    %138 = vmatprep.subr.mxu0 0.0
    %139 = vmatpush1.msra.mxu0 0.0
    %140 = vmatprep.subr.mxu0 0.0
    %141 = vmatpush1.msra.mxu0 0.0
    %142 = vmatprep.subr.mxu0 0.0
    %143 = vmatpush1.msra.mxu0 0.0
    %144 = vmatprep.subr.mxu0 0.0
    %145 = vmatpush1.msra.mxu0 0.0
    %146 = vmatprep.subr.mxu0 0.0
    %147 = vmatpush1.msra.mxu0 0.0
    %148 = vmatprep.subr.mxu0 0.0
    %149 = vmatpush1.msra.mxu0 0.0
    %150 = vmatprep.subr.mxu0 0.0
    %151 = vmatpush1.msra.mxu0 0.0
    %152 = vmatprep.subr.mxu0 0.0
    %153 = vmatpush1.msra.mxu0 0.0
    %154 = vmatprep.subr.mxu0 0.0
    %155 = vmatpush1.msra.mxu0 0.0
    %156 = vmatprep.subr.mxu0 0.0
    %157 = vmatpush1.msra.mxu0 0.0
    %158 = vmatprep.subr.mxu0 0.0
    %159 = vmatpush1.msra.mxu0 0.0
    %160 = vmatprep.subr.mxu0 0.0
    %161 = vmatpush1.msra.mxu0 0.0
    %162 = vmatprep.subr.mxu0 0.0
    %163 = vmatpush1.msra.mxu0 0.0
    %164 = vmatprep.subr.mxu0 0.0
    %165 = vmatpush1.msra.mxu0 0.0
    %166 = vmatprep.subr.mxu0 0.0
    %167 = vmatpush1.msra.mxu0 0.0
    %168 = vmatprep.subr.mxu0 0.0
    %169 = vmatpush1.msra.mxu0 0.0
    %170 = vmatprep.subr.mxu0 0.0
    %171 = vmatpush1.msra.mxu0 0.0
    %172 = vmatprep.subr.mxu0 0.0
    %173 = vmatpush1.msra.mxu0 0.0
    %174 = vmatprep.subr.mxu0 0.0
    %175 = vmatpush1.msra.mxu0 0.0
    %176 = vmatprep.subr.mxu0 0.0
    %177 = vmatpush1.msra.mxu0 0.0
    %178 = vmatprep.mubr.f32.mxu0 0.0
    %179 = vmatmul.mubr.f32.gmra.mrb[0].mxu0 %v112
    %v180 = vpop.f32.mrb[0].mxu0
    %v181 = vadd.f32 %v98, %v180
    %v182 = vpop.f32.mrb[0].mxu0
    %v183 = vadd.f32 %v102, %v182
    %184 = vdwg.mxu0
    %185 = vmatprep.subr.mxu0 0.0
    %186 = vmatpush1.msra.mxu0 %v59
    %187 = vmatprep.subr.mxu0 0.0
    %188 = vmatpush1.msra.mxu0 %v62
    %189 = vmatprep.subr.mxu0 0.0
    %190 = vmatpush1.msra.mxu0 %v65
    %191 = vmatprep.subr.mxu0 0.0
    %192 = vmatpush1.msra.mxu0 %v68
    %193 = vmatprep.subr.mxu0 0.0
    %194 = vmatpush1.msra.mxu0 %v71
    %195 = vmatprep.subr.mxu0 0.0
    %196 = vmatpush1.msra.mxu0 %v74
    %197 = vmatprep.subr.mxu0 0.0
    %198 = vmatpush1.msra.mxu0 %v77
    %199 = vmatprep.subr.mxu0 0.0
    %200 = vmatpush1.msra.mxu0 %v80
    %201 = vmatprep.subr.mxu0 0.0
    %202 = vmatpush1.msra.mxu0 %v83
    %203 = vmatprep.subr.mxu0 0.0
    %204 = vmatpush1.msra.mxu0 %v86
    %205 = vmatprep.subr.mxu0 0.0
    %206 = vmatpush1.msra.mxu0 %v89
    %207 = vmatprep.subr.mxu0 0.0
    %208 = vmatpush1.msra.mxu0 %v92
    %209 = vmatprep.subr.mxu0 0.0
    %210 = vmatpush1.msra.mxu0 0.0
    %211 = vmatprep.subr.mxu0 0.0
    %212 = vmatpush1.msra.mxu0 0.0
    %213 = vmatprep.subr.mxu0 0.0
    %214 = vmatpush1.msra.mxu0 0.0
    %215 = vmatprep.subr.mxu0 0.0
    %216 = vmatpush1.msra.mxu0 0.0
    %217 = vmatprep.subr.mxu0 0.0
    %218 = vmatpush1.msra.mxu0 0.0
    %219 = vmatprep.subr.mxu0 0.0
    %220 = vmatpush1.msra.mxu0 0.0
    %221 = vmatprep.subr.mxu0 0.0
    %222 = vmatpush1.msra.mxu0 0.0
    %223 = vmatprep.subr.mxu0 0.0
    %224 = vmatpush1.msra.mxu0 0.0
    %225 = vmatprep.subr.mxu0 0.0
    %226 = vmatpush1.msra.mxu0 0.0
    %227 = vmatprep.subr.mxu0 0.0
    %228 = vmatpush1.msra.mxu0 0.0
    %229 = vmatprep.subr.mxu0 0.0
    %230 = vmatpush1.msra.mxu0 0.0
    %231 = vmatprep.subr.mxu0 0.0
    %232 = vmatpush1.msra.mxu0 0.0
    %233 = vmatprep.subr.mxu0 0.0
    %234 = vmatpush1.msra.mxu0 0.0
    %235 = vmatprep.subr.mxu0 0.0
    %236 = vmatpush1.msra.mxu0 0.0
    %237 = vmatprep.subr.mxu0 0.0
    %238 = vmatpush1.msra.mxu0 0.0
    %239 = vmatprep.subr.mxu0 0.0
    %240 = vmatpush1.msra.mxu0 0.0
    %241 = vmatprep.subr.mxu0 0.0
    %242 = vmatpush1.msra.mxu0 0.0
    %243 = vmatprep.subr.mxu0 0.0
    %244 = vmatpush1.msra.mxu0 0.0
    %245 = vmatprep.subr.mxu0 0.0
    %246 = vmatpush1.msra.mxu0 0.0
    %247 = vmatprep.subr.mxu0 0.0
    %248 = vmatpush1.msra.mxu0 0.0
    %249 = vmatprep.mubr.f32.mxu0 0.0
    %250 = vmatmul.mubr.f32.gmra.mrb[0].mxu0 %v112
    %v251 = vpop.f32.mrb[0].mxu0
    %v252 = vadd.f32 %v106, %v251
    %v253 = vpop.f32.mrb[0].mxu0
    %254 = vdwg.mxu0
    %v255 = vld [vmem:[#allocation4] sm:$0xff]
    %v256 = vld [vmem:[#allocation4 + $0x8] sm:$0xff]
    %v257 = vld [vmem:[#allocation4 + $0x10] sm:$0xff]
    %v258 = vld [vmem:[#allocation4 + $0x18] sm:$0xff]
    %v259 = vld [vmem:[#allocation4 + $0x20] sm:$0xff]
    %v260 = vld [vmem:[#allocation4 + $0x28] sm:$0xff]
    %v263 = vrot.slane %v54, 7
    %vm264 = vcmask 1041409
    %v265 = vsel %vm264, %v263, %v53
    %vm266 = vcmask 130048
    %v267 = vsel %vm266, %v265, 0
    %269 = vmatprep.subr.mxu0 %v256
    %270 = vmatpush1.msra.mxu0 %v255
    %271 = vmatprep.subr.mxu0 %v259
    %272 = vmatpush1.msra.mxu0 %v258
    %273 = vmatprep.subr.mxu0 0.0
    %274 = vmatpush1.msra.mxu0 0.0
    %275 = vmatprep.subr.mxu0 0.0
    %276 = vmatpush1.msra.mxu0 0.0
    %277 = vmatprep.subr.mxu0 0.0
    %278 = vmatpush1.msra.mxu0 0.0
    %279 = vmatprep.subr.mxu0 0.0
    %280 = vmatpush1.msra.mxu0 0.0
    %281 = vmatprep.subr.mxu0 0.0
    %282 = vmatpush1.msra.mxu0 0.0
    %283 = vmatprep.subr.mxu0 0.0
    %284 = vmatpush1.msra.mxu0 0.0
    %285 = vmatprep.subr.mxu0 0.0
    %286 = vmatpush1.msra.mxu0 0.0
    %287 = vmatprep.subr.mxu0 0.0
    %288 = vmatpush1.msra.mxu0 0.0
    %289 = vmatprep.subr.mxu0 0.0
    %290 = vmatpush1.msra.mxu0 0.0
    %291 = vmatprep.subr.mxu0 0.0
    %292 = vmatpush1.msra.mxu0 0.0
    %293 = vmatprep.subr.mxu0 0.0
    %294 = vmatpush1.msra.mxu0 0.0
    %295 = vmatprep.subr.mxu0 0.0
    %296 = vmatpush1.msra.mxu0 0.0
    %297 = vmatprep.subr.mxu0 0.0
    %298 = vmatpush1.msra.mxu0 0.0
    %299 = vmatprep.subr.mxu0 0.0
    %300 = vmatpush1.msra.mxu0 0.0
    %301 = vmatprep.subr.mxu0 0.0
    %302 = vmatpush1.msra.mxu0 0.0
    %303 = vmatprep.subr.mxu0 0.0
    %304 = vmatpush1.msra.mxu0 0.0
    %305 = vmatprep.subr.mxu0 0.0
    %306 = vmatpush1.msra.mxu0 0.0
    %307 = vmatprep.subr.mxu0 0.0
    %308 = vmatpush1.msra.mxu0 0.0
    %309 = vmatprep.subr.mxu0 0.0
    %310 = vmatpush1.msra.mxu0 0.0
    %311 = vmatprep.subr.mxu0 0.0
    %312 = vmatpush1.msra.mxu0 0.0
    %313 = vmatprep.subr.mxu0 0.0
    %314 = vmatpush1.msra.mxu0 0.0
    %315 = vmatprep.subr.mxu0 0.0
    %316 = vmatpush1.msra.mxu0 0.0
    %317 = vmatprep.subr.mxu0 0.0
    %318 = vmatpush1.msra.mxu0 0.0
    %319 = vmatprep.subr.mxu0 0.0
    %320 = vmatpush1.msra.mxu0 0.0
    %321 = vmatprep.subr.mxu0 0.0
    %322 = vmatpush1.msra.mxu0 0.0
    %323 = vmatprep.subr.mxu0 0.0
    %324 = vmatpush1.msra.mxu0 0.0
    %325 = vmatprep.subr.mxu0 0.0
    %326 = vmatpush1.msra.mxu0 0.0
    %327 = vmatprep.subr.mxu0 0.0
    %328 = vmatpush1.msra.mxu0 0.0
    %329 = vmatprep.subr.mxu0 0.0
    %330 = vmatpush1.msra.mxu0 0.0
    %331 = vmatprep.subr.mxu0 0.0
    %332 = vmatpush1.msra.mxu0 0.0
    %333 = vmatprep.mubr.f32.mxu0 0.0
    %334 = vmatmul.mubr.f32.gmra.mrb[0].mxu0 %v267
    %v335 = vpop.f32.mrb[0].mxu0
    %v336 = vadd.f32 0.0, %v335
    %v337 = vpop.f32.mrb[0].mxu0
    %v338 = vadd.f32 0.0, %v337
    %339 = vdwg.mxu0
    %340 = vmatprep.subr.mxu0 0.0
    %341 = vmatpush1.msra.mxu0 %v257
    %342 = vmatprep.subr.mxu0 0.0
    %343 = vmatpush1.msra.mxu0 %v260
    %344 = vmatprep.subr.mxu0 0.0
    %345 = vmatpush1.msra.mxu0 0.0
    %346 = vmatprep.subr.mxu0 0.0
    %347 = vmatpush1.msra.mxu0 0.0
    %348 = vmatprep.subr.mxu0 0.0
    %349 = vmatpush1.msra.mxu0 0.0
    %350 = vmatprep.subr.mxu0 0.0
    %351 = vmatpush1.msra.mxu0 0.0
    %352 = vmatprep.subr.mxu0 0.0
    %353 = vmatpush1.msra.mxu0 0.0
    %354 = vmatprep.subr.mxu0 0.0
    %355 = vmatpush1.msra.mxu0 0.0
    %356 = vmatprep.subr.mxu0 0.0
    %357 = vmatpush1.msra.mxu0 0.0
    %358 = vmatprep.subr.mxu0 0.0
    %359 = vmatpush1.msra.mxu0 0.0
    %360 = vmatprep.subr.mxu0 0.0
    %361 = vmatpush1.msra.mxu0 0.0
    %362 = vmatprep.subr.mxu0 0.0
    %363 = vmatpush1.msra.mxu0 0.0
    %364 = vmatprep.subr.mxu0 0.0
    %365 = vmatpush1.msra.mxu0 0.0
    %366 = vmatprep.subr.mxu0 0.0
    %367 = vmatpush1.msra.mxu0 0.0
    %368 = vmatprep.subr.mxu0 0.0
    %369 = vmatpush1.msra.mxu0 0.0
    %370 = vmatprep.subr.mxu0 0.0
    %371 = vmatpush1.msra.mxu0 0.0
    %372 = vmatprep.subr.mxu0 0.0
    %373 = vmatpush1.msra.mxu0 0.0
    %374 = vmatprep.subr.mxu0 0.0
    %375 = vmatpush1.msra.mxu0 0.0
    %376 = vmatprep.subr.mxu0 0.0
    %377 = vmatpush1.msra.mxu0 0.0
    %378 = vmatprep.subr.mxu0 0.0
    %379 = vmatpush1.msra.mxu0 0.0
    %380 = vmatprep.subr.mxu0 0.0
    %381 = vmatpush1.msra.mxu0 0.0
    %382 = vmatprep.subr.mxu0 0.0
    %383 = vmatpush1.msra.mxu0 0.0
    %384 = vmatprep.subr.mxu0 0.0
    %385 = vmatpush1.msra.mxu0 0.0
    %386 = vmatprep.subr.mxu0 0.0
    %387 = vmatpush1.msra.mxu0 0.0
    %388 = vmatprep.subr.mxu0 0.0
    %389 = vmatpush1.msra.mxu0 0.0
    %390 = vmatprep.subr.mxu0 0.0
    %391 = vmatpush1.msra.mxu0 0.0
    %392 = vmatprep.subr.mxu0 0.0
    %393 = vmatpush1.msra.mxu0 0.0
    %394 = vmatprep.subr.mxu0 0.0
    %395 = vmatpush1.msra.mxu0 0.0
    %396 = vmatprep.subr.mxu0 0.0
    %397 = vmatpush1.msra.mxu0 0.0
    %398 = vmatprep.subr.mxu0 0.0
    %399 = vmatpush1.msra.mxu0 0.0
    %400 = vmatprep.subr.mxu0 0.0
    %401 = vmatpush1.msra.mxu0 0.0
    %402 = vmatprep.subr.mxu0 0.0
    %403 = vmatpush1.msra.mxu0 0.0
    %404 = vmatprep.mubr.f32.mxu0 0.0
    %405 = vmatmul.mubr.f32.gmra.mrb[0].mxu0 %v267
    %v406 = vpop.f32.mrb[0].mxu0
    %v407 = vadd.f32 0.0, %v406
    %v408 = vpop.f32.mrb[0].mxu0
    %409 = vdwg.mxu0
    %v410 = vadd.f32 %v181, %v336
    %v411 = vadd.f32 %v183, %v338
    %v412 = vadd.f32 %v252, %v407
    %v413 = vxor.u32 %v410, 2147483648
    %v414 = vxor.u32 %v411, 2147483648
    %v415 = vxor.u32 %v412, 2147483648
    %v416 = vmul.f32 %v413, 1.442695
    %v417 = vpow.pop %v416
    %v418 = vmul.f32 %v414, 1.442695
    %v419 = vpow.pop %v418
    %v420 = vmul.f32 %v415, 1.442695
    %v421 = vpow.pop %v420
    %v422 = vadd.f32 %v417, 1.0
    %v423 = vadd.f32 %v419, 1.0
    %v424 = vadd.f32 %v421, 1.0
    %v425 = vrcp.pop %v422
    %v426 = vmul.f32 1.0, %v425
    %v427 = vrcp.pop %v423
    %v428 = vmul.f32 1.0, %v427
    %v429 = vrcp.pop %v424
    %v430 = vmul.f32 1.0, %v429
    %v431 = vmul.f32 %v428, 2.0
    %v432 = vmul.f32 %v430, 2.0
    %v433 = vsub.f32 %v431, 1.0
    %v434 = vsub.f32 %v432, 1.0
    %v435 = vmul.f32 %v426, 0.0
    %v436 = vmul.f32 %v428, 0.0
    %439 = vrot.lane.b32.xlu0 %v433, 64
    %v440 = vpop.permute.xlu0 %439
    %441 = vrot.lane.b32.xlu0 %v434, 64
    %v442 = vpop.permute.xlu0 %441
    %vm443 = vcmask 523264
    %v444 = vsel %vm443, %v440, %v442
    %v446 = vmul.f32 %v426, %v444
    %448 = vrot.lane.b32.xlu0 %v446, 96
    %v449 = vpop.permute.xlu0 %448
    %v451 = vadd.f32 %v435, %v449
    %v452 = vadd.f32 %v436, %v449
    %v453 = vtanh.pop %v451
    %v454 = vtanh.pop %v452
    %457 = vrot.lane.b32.xlu0 %v453, 64
    %v458 = vpop.permute.xlu0 %457
    %459 = vrot.lane.b32.xlu0 %v454, 64
    %v460 = vpop.permute.xlu0 %459
    %v461 = vsel %vm443, %v458, %v460
    %v463 = vmul.f32 %v430, %v461
    %vm464 = vcmp.ge.s32.totalorder %v56, 0
    %vm465 = vcmp.lt.s32.totalorder %v56, 32
    %vm466 = vmand %vm464, %vm465
    %469 = vrot.lane.b32.xlu0 %v451, 32
    %v470 = vpop.permute.xlu0 %469
    %471 = vrot.lane.b32.xlu0 %v452, 32
    %v472 = vpop.permute.xlu0 %471
    %vm473 = vcmask 261120
    %v474 = vsel %vm473, %v470, %v472
    %v476 = vsel %vm466, %v474, 0.0
    %478 = vrot.lane.b32.xlu0 %v463, 96
    %v479 = vpop.permute.xlu0 %478
    %v481 = vsel %vm466, %v479, 0.0
    %v483 = vsel %vm110, %v481, 0
    %485 = vmatprep.subr.mxu0 %v58
    %486 = vmatpush1.msra.mxu0 %v57
    %487 = vmatprep.subr.mxu0 %v61
    %488 = vmatpush1.msra.mxu0 %v60
    %489 = vmatprep.subr.mxu0 %v64
    %490 = vmatpush1.msra.mxu0 %v63
    %491 = vmatprep.subr.mxu0 %v67
    %492 = vmatpush1.msra.mxu0 %v66
    %493 = vmatprep.subr.mxu0 %v70
    %494 = vmatpush1.msra.mxu0 %v69
    %495 = vmatprep.subr.mxu0 %v73
    %496 = vmatpush1.msra.mxu0 %v72
    %497 = vmatprep.subr.mxu0 %v76
    %498 = vmatpush1.msra.mxu0 %v75
    %499 = vmatprep.subr.mxu0 %v79
    %500 = vmatpush1.msra.mxu0 %v78
    %501 = vmatprep.subr.mxu0 %v82
    %502 = vmatpush1.msra.mxu0 %v81
    %503 = vmatprep.subr.mxu0 %v85
    %504 = vmatpush1.msra.mxu0 %v84
    %505 = vmatprep.subr.mxu0 %v88
    %506 = vmatpush1.msra.mxu0 %v87
    %507 = vmatprep.subr.mxu0 %v91
    %508 = vmatpush1.msra.mxu0 %v90
    %509 = vmatprep.subr.mxu0 0.0
    %510 = vmatpush1.msra.mxu0 0.0
    %511 = vmatprep.subr.mxu0 0.0
    %512 = vmatpush1.msra.mxu0 0.0
    %513 = vmatprep.subr.mxu0 0.0
    %514 = vmatpush1.msra.mxu0 0.0
    %515 = vmatprep.subr.mxu0 0.0
    %516 = vmatpush1.msra.mxu0 0.0
    %517 = vmatprep.subr.mxu0 0.0
    %518 = vmatpush1.msra.mxu0 0.0
    %519 = vmatprep.subr.mxu0 0.0
    %520 = vmatpush1.msra.mxu0 0.0
    %521 = vmatprep.subr.mxu0 0.0
    %522 = vmatpush1.msra.mxu0 0.0
    %523 = vmatprep.subr.mxu0 0.0
    %524 = vmatpush1.msra.mxu0 0.0
    %525 = vmatprep.subr.mxu0 0.0
    %526 = vmatpush1.msra.mxu0 0.0
    %527 = vmatprep.subr.mxu0 0.0
    %528 = vmatpush1.msra.mxu0 0.0
    %529 = vmatprep.subr.mxu0 0.0
    %530 = vmatpush1.msra.mxu0 0.0
    %531 = vmatprep.subr.mxu0 0.0
    %532 = vmatpush1.msra.mxu0 0.0
    %533 = vmatprep.subr.mxu0 0.0
    %534 = vmatpush1.msra.mxu0 0.0
    %535 = vmatprep.subr.mxu0 0.0
    %536 = vmatpush1.msra.mxu0 0.0
    %537 = vmatprep.subr.mxu0 0.0
    %538 = vmatpush1.msra.mxu0 0.0
    %539 = vmatprep.subr.mxu0 0.0
    %540 = vmatpush1.msra.mxu0 0.0
    %541 = vmatprep.subr.mxu0 0.0
    %542 = vmatpush1.msra.mxu0 0.0
    %543 = vmatprep.subr.mxu0 0.0
    %544 = vmatpush1.msra.mxu0 0.0
    %545 = vmatprep.subr.mxu0 0.0
    %546 = vmatpush1.msra.mxu0 0.0
    %547 = vmatprep.subr.mxu0 0.0
    %548 = vmatpush1.msra.mxu0 0.0
    %549 = vmatprep.mubr.f32.mxu0 0.0
    %550 = vmatmul.mubr.f32.gmra.mrb[0].mxu0 %v483
    %v551 = vpop.f32.mrb[0].mxu0
    %v552 = vadd.f32 %v98, %v551
    %v553 = vpop.f32.mrb[0].mxu0
    %v554 = vadd.f32 %v102, %v553
    %555 = vdwg.mxu0
    %556 = vmatprep.subr.mxu0 0.0
    %557 = vmatpush1.msra.mxu0 %v59
    %558 = vmatprep.subr.mxu0 0.0
    %559 = vmatpush1.msra.mxu0 %v62
    %560 = vmatprep.subr.mxu0 0.0
    %561 = vmatpush1.msra.mxu0 %v65
    %562 = vmatprep.subr.mxu0 0.0
    %563 = vmatpush1.msra.mxu0 %v68
    %564 = vmatprep.subr.mxu0 0.0
    %565 = vmatpush1.msra.mxu0 %v71
    %566 = vmatprep.subr.mxu0 0.0
    %567 = vmatpush1.msra.mxu0 %v74
    %568 = vmatprep.subr.mxu0 0.0
    %569 = vmatpush1.msra.mxu0 %v77
    %570 = vmatprep.subr.mxu0 0.0
    %571 = vmatpush1.msra.mxu0 %v80
    %572 = vmatprep.subr.mxu0 0.0
    %573 = vmatpush1.msra.mxu0 %v83
    %574 = vmatprep.subr.mxu0 0.0
    %575 = vmatpush1.msra.mxu0 %v86
    %576 = vmatprep.subr.mxu0 0.0
    %577 = vmatpush1.msra.mxu0 %v89
    %578 = vmatprep.subr.mxu0 0.0
    %579 = vmatpush1.msra.mxu0 %v92
    %580 = vmatprep.subr.mxu0 0.0
    %581 = vmatpush1.msra.mxu0 0.0
    %582 = vmatprep.subr.mxu0 0.0
    %583 = vmatpush1.msra.mxu0 0.0
    %584 = vmatprep.subr.mxu0 0.0
    %585 = vmatpush1.msra.mxu0 0.0
    %586 = vmatprep.subr.mxu0 0.0
    %587 = vmatpush1.msra.mxu0 0.0
    %588 = vmatprep.subr.mxu0 0.0
    %589 = vmatpush1.msra.mxu0 0.0
    %590 = vmatprep.subr.mxu0 0.0
    %591 = vmatpush1.msra.mxu0 0.0
    %592 = vmatprep.subr.mxu0 0.0
    %593 = vmatpush1.msra.mxu0 0.0
    %594 = vmatprep.subr.mxu0 0.0
    %595 = vmatpush1.msra.mxu0 0.0
    %596 = vmatprep.subr.mxu0 0.0
    %597 = vmatpush1.msra.mxu0 0.0
    %598 = vmatprep.subr.mxu0 0.0
    %599 = vmatpush1.msra.mxu0 0.0
    %600 = vmatprep.subr.mxu0 0.0
    %601 = vmatpush1.msra.mxu0 0.0
    %602 = vmatprep.subr.mxu0 0.0
    %603 = vmatpush1.msra.mxu0 0.0
    %604 = vmatprep.subr.mxu0 0.0
    %605 = vmatpush1.msra.mxu0 0.0
    %606 = vmatprep.subr.mxu0 0.0
    %607 = vmatpush1.msra.mxu0 0.0
    %608 = vmatprep.subr.mxu0 0.0
    %609 = vmatpush1.msra.mxu0 0.0
    %610 = vmatprep.subr.mxu0 0.0
    %611 = vmatpush1.msra.mxu0 0.0
    %612 = vmatprep.subr.mxu0 0.0
    %613 = vmatpush1.msra.mxu0 0.0
    %614 = vmatprep.subr.mxu0 0.0
    %615 = vmatpush1.msra.mxu0 0.0
    %616 = vmatprep.subr.mxu0 0.0
    %617 = vmatpush1.msra.mxu0 0.0
    %618 = vmatprep.subr.mxu0 0.0
    %619 = vmatpush1.msra.mxu0 0.0
    %620 = vmatprep.mubr.f32.mxu0 0.0
    %621 = vmatmul.mubr.f32.gmra.mrb[0].mxu0 %v483
    %v622 = vpop.f32.mrb[0].mxu0
    %v623 = vadd.f32 %v106, %v622
    %v624 = vpop.f32.mrb[0].mxu0
    %625 = vdwg.mxu0
    %v626 = vrot.slane %v53, 1
    %v627 = vsel %vm264, %v54, %v626
    %v628 = vsel %vm266, %v627, 0
    %630 = vmatprep.subr.mxu0 %v256
    %631 = vmatpush1.msra.mxu0 %v255
    %632 = vmatprep.subr.mxu0 %v259
    %633 = vmatpush1.msra.mxu0 %v258
    %634 = vmatprep.subr.mxu0 0.0
    %635 = vmatpush1.msra.mxu0 0.0
    %636 = vmatprep.subr.mxu0 0.0
    %637 = vmatpush1.msra.mxu0 0.0
    %638 = vmatprep.subr.mxu0 0.0
    %639 = vmatpush1.msra.mxu0 0.0
    %640 = vmatprep.subr.mxu0 0.0
    %641 = vmatpush1.msra.mxu0 0.0
    %642 = vmatprep.subr.mxu0 0.0
    %643 = vmatpush1.msra.mxu0 0.0
    %644 = vmatprep.subr.mxu0 0.0
    %645 = vmatpush1.msra.mxu0 0.0
    %646 = vmatprep.subr.mxu0 0.0
    %647 = vmatpush1.msra.mxu0 0.0
    %648 = vmatprep.subr.mxu0 0.0
    %649 = vmatpush1.msra.mxu0 0.0
    %650 = vmatprep.subr.mxu0 0.0
    %651 = vmatpush1.msra.mxu0 0.0
    %652 = vmatprep.subr.mxu0 0.0
    %653 = vmatpush1.msra.mxu0 0.0
    %654 = vmatprep.subr.mxu0 0.0
    %655 = vmatpush1.msra.mxu0 0.0
    %656 = vmatprep.subr.mxu0 0.0
    %657 = vmatpush1.msra.mxu0 0.0
    %658 = vmatprep.subr.mxu0 0.0
    %659 = vmatpush1.msra.mxu0 0.0
    %660 = vmatprep.subr.mxu0 0.0
    %661 = vmatpush1.msra.mxu0 0.0
    %662 = vmatprep.subr.mxu0 0.0
    %663 = vmatpush1.msra.mxu0 0.0
    %664 = vmatprep.subr.mxu0 0.0
    %665 = vmatpush1.msra.mxu0 0.0
    %666 = vmatprep.subr.mxu0 0.0
    %667 = vmatpush1.msra.mxu0 0.0
    %668 = vmatprep.subr.mxu0 0.0
    %669 = vmatpush1.msra.mxu0 0.0
    %670 = vmatprep.subr.mxu0 0.0
    %671 = vmatpush1.msra.mxu0 0.0
    %672 = vmatprep.subr.mxu0 0.0
    %673 = vmatpush1.msra.mxu0 0.0
    %674 = vmatprep.subr.mxu0 0.0
    %675 = vmatpush1.msra.mxu0 0.0
    %676 = vmatprep.subr.mxu0 0.0
    %677 = vmatpush1.msra.mxu0 0.0
    %678 = vmatprep.subr.mxu0 0.0
    %679 = vmatpush1.msra.mxu0 0.0
    %680 = vmatprep.subr.mxu0 0.0
    %681 = vmatpush1.msra.mxu0 0.0
    %682 = vmatprep.subr.mxu0 0.0
    %683 = vmatpush1.msra.mxu0 0.0
    %684 = vmatprep.subr.mxu0 0.0
    %685 = vmatpush1.msra.mxu0 0.0
    %686 = vmatprep.subr.mxu0 0.0
    %687 = vmatpush1.msra.mxu0 0.0
    %688 = vmatprep.subr.mxu0 0.0
    %689 = vmatpush1.msra.mxu0 0.0
    %690 = vmatprep.subr.mxu0 0.0
    %691 = vmatpush1.msra.mxu0 0.0
    %692 = vmatprep.subr.mxu0 0.0
    %693 = vmatpush1.msra.mxu0 0.0
    %694 = vmatprep.mubr.f32.mxu0 0.0
    %695 = vmatmul.mubr.f32.gmra.mrb[0].mxu0 %v628
    %v696 = vpop.f32.mrb[0].mxu0
    %v697 = vadd.f32 0.0, %v696
    %v698 = vpop.f32.mrb[0].mxu0
    %v699 = vadd.f32 0.0, %v698
    %700 = vdwg.mxu0
    %701 = vmatprep.subr.mxu0 0.0
    %702 = vmatpush1.msra.mxu0 %v257
    %703 = vmatprep.subr.mxu0 0.0
    %704 = vmatpush1.msra.mxu0 %v260
    %705 = vmatprep.subr.mxu0 0.0
    %706 = vmatpush1.msra.mxu0 0.0
    %707 = vmatprep.subr.mxu0 0.0
    %708 = vmatpush1.msra.mxu0 0.0
    %709 = vmatprep.subr.mxu0 0.0
    %710 = vmatpush1.msra.mxu0 0.0
    %711 = vmatprep.subr.mxu0 0.0
    %712 = vmatpush1.msra.mxu0 0.0
    %713 = vmatprep.subr.mxu0 0.0
    %714 = vmatpush1.msra.mxu0 0.0
    %715 = vmatprep.subr.mxu0 0.0
    %716 = vmatpush1.msra.mxu0 0.0
    %717 = vmatprep.subr.mxu0 0.0
    %718 = vmatpush1.msra.mxu0 0.0
    %719 = vmatprep.subr.mxu0 0.0
    %720 = vmatpush1.msra.mxu0 0.0
    %721 = vmatprep.subr.mxu0 0.0
    %722 = vmatpush1.msra.mxu0 0.0
    %723 = vmatprep.subr.mxu0 0.0
    %724 = vmatpush1.msra.mxu0 0.0
    %725 = vmatprep.subr.mxu0 0.0
    %726 = vmatpush1.msra.mxu0 0.0
    %727 = vmatprep.subr.mxu0 0.0
    %728 = vmatpush1.msra.mxu0 0.0
    %729 = vmatprep.subr.mxu0 0.0
    %730 = vmatpush1.msra.mxu0 0.0
    %731 = vmatprep.subr.mxu0 0.0
    %732 = vmatpush1.msra.mxu0 0.0
    %733 = vmatprep.subr.mxu0 0.0
    %734 = vmatpush1.msra.mxu0 0.0
    %735 = vmatprep.subr.mxu0 0.0
    %736 = vmatpush1.msra.mxu0 0.0
    %737 = vmatprep.subr.mxu0 0.0
    %738 = vmatpush1.msra.mxu0 0.0
    %739 = vmatprep.subr.mxu0 0.0
    %740 = vmatpush1.msra.mxu0 0.0
    %741 = vmatprep.subr.mxu0 0.0
    %742 = vmatpush1.msra.mxu0 0.0
    %743 = vmatprep.subr.mxu0 0.0
    %744 = vmatpush1.msra.mxu0 0.0
    %745 = vmatprep.subr.mxu0 0.0
    %746 = vmatpush1.msra.mxu0 0.0
    %747 = vmatprep.subr.mxu0 0.0
    %748 = vmatpush1.msra.mxu0 0.0
    %749 = vmatprep.subr.mxu0 0.0
    %750 = vmatpush1.msra.mxu0 0.0
    %751 = vmatprep.subr.mxu0 0.0
    %752 = vmatpush1.msra.mxu0 0.0
    %753 = vmatprep.subr.mxu0 0.0
    %754 = vmatpush1.msra.mxu0 0.0
    %755 = vmatprep.subr.mxu0 0.0
    %756 = vmatpush1.msra.mxu0 0.0
    %757 = vmatprep.subr.mxu0 0.0
    %758 = vmatpush1.msra.mxu0 0.0
    %759 = vmatprep.subr.mxu0 0.0
    %760 = vmatpush1.msra.mxu0 0.0
    %761 = vmatprep.subr.mxu0 0.0
    %762 = vmatpush1.msra.mxu0 0.0
    %763 = vmatprep.subr.mxu0 0.0
    %764 = vmatpush1.msra.mxu0 0.0
    %765 = vmatprep.mubr.f32.mxu0 0.0
    %766 = vmatmul.mubr.f32.gmra.mrb[0].mxu0 %v628
    %v767 = vpop.f32.mrb[0].mxu0
    %v768 = vadd.f32 0.0, %v767
    %v769 = vpop.f32.mrb[0].mxu0
    %770 = vdwg.mxu0
    %v771 = vadd.f32 %v552, %v697
    %v772 = vadd.f32 %v554, %v699
    %v773 = vadd.f32 %v623, %v768
    %v774 = vxor.u32 %v771, 2147483648
    %v775 = vxor.u32 %v772, 2147483648
    %v776 = vxor.u32 %v773, 2147483648
    %v777 = vmul.f32 %v774, 1.442695
    %v778 = vpow.pop %v777
    %v779 = vmul.f32 %v775, 1.442695
    %v780 = vpow.pop %v779
    %v781 = vmul.f32 %v776, 1.442695
    %v782 = vpow.pop %v781
    %v783 = vadd.f32 %v778, 1.0
    %v784 = vadd.f32 %v780, 1.0
    %v785 = vadd.f32 %v782, 1.0
    %v786 = vrcp.pop %v783
    %v787 = vmul.f32 1.0, %v786
    %v788 = vrcp.pop %v784
    %v789 = vmul.f32 1.0, %v788
    %v790 = vrcp.pop %v785
    %v791 = vmul.f32 1.0, %v790
    %v792 = vmul.f32 %v789, 2.0
    %v793 = vmul.f32 %v791, 2.0
    %v794 = vsub.f32 %v792, 1.0
    %v795 = vsub.f32 %v793, 1.0
    %797 = vrot.lane.b32.xlu0 %v476, 96
    %v798 = vpop.permute.xlu0 %797
    %v800 = vmul.f32 %v787, %v798
    %v801 = vmul.f32 %v789, %v798
    %804 = vrot.lane.b32.xlu0 %v794, 64
    %v805 = vpop.permute.xlu0 %804
    %806 = vrot.lane.b32.xlu0 %v795, 64
    %v807 = vpop.permute.xlu0 %806
    %v808 = vsel %vm443, %v805, %v807
    %v810 = vmul.f32 %v787, %v808
    %812 = vrot.lane.b32.xlu0 %v810, 96
    %v813 = vpop.permute.xlu0 %812
    %v815 = vadd.f32 %v800, %v813
    %v816 = vadd.f32 %v801, %v813
    %v817 = vtanh.pop %v815
    %v818 = vtanh.pop %v816
    %821 = vrot.lane.b32.xlu0 %v817, 64
    %v822 = vpop.permute.xlu0 %821
    %823 = vrot.lane.b32.xlu0 %v818, 64
    %v824 = vpop.permute.xlu0 %823
    %v825 = vsel %vm443, %v822, %v824
    %v827 = vmul.f32 %v791, %v825
    %vm828 = vcmp.lt.s32.totalorder %v56, 64
    %vm829 = vmand %vm464, %vm828
    %832 = vrot.lane.b32.xlu0 %v815, 32
    %v833 = vpop.permute.xlu0 %832
    %834 = vrot.lane.b32.xlu0 %v816, 32
    %v835 = vpop.permute.xlu0 %834
    %v836 = vsel %vm473, %v833, %v835
    %v838 = vsel %vm829, %v836, %v476
    %840 = vrot.lane.b32.xlu0 %v827, 96
    %v841 = vpop.permute.xlu0 %840
    %v843 = vsel %vm829, %v841, %v481
    %v845 = vsel %vm110, %v843, 0
    %847 = vmatprep.subr.mxu0 %v58
    %848 = vmatpush1.msra.mxu0 %v57
    %849 = vmatprep.subr.mxu0 %v61
    %850 = vmatpush1.msra.mxu0 %v60
    %851 = vmatprep.subr.mxu0 %v64
    %852 = vmatpush1.msra.mxu0 %v63
    %853 = vmatprep.subr.mxu0 %v67
    %854 = vmatpush1.msra.mxu0 %v66
    %855 = vmatprep.subr.mxu0 %v70
    %856 = vmatpush1.msra.mxu0 %v69
    %857 = vmatprep.subr.mxu0 %v73
    %858 = vmatpush1.msra.mxu0 %v72
    %859 = vmatprep.subr.mxu0 %v76
    %860 = vmatpush1.msra.mxu0 %v75
    %861 = vmatprep.subr.mxu0 %v79
    %862 = vmatpush1.msra.mxu0 %v78
    %863 = vmatprep.subr.mxu0 %v82
    %864 = vmatpush1.msra.mxu0 %v81
    %865 = vmatprep.subr.mxu0 %v85
    %866 = vmatpush1.msra.mxu0 %v84
    %867 = vmatprep.subr.mxu0 %v88
    %868 = vmatpush1.msra.mxu0 %v87
    %869 = vmatprep.subr.mxu0 %v91
    %870 = vmatpush1.msra.mxu0 %v90
    %871 = vmatprep.subr.mxu0 0.0
    %872 = vmatpush1.msra.mxu0 0.0
    %873 = vmatprep.subr.mxu0 0.0
    %874 = vmatpush1.msra.mxu0 0.0
    %875 = vmatprep.subr.mxu0 0.0
    %876 = vmatpush1.msra.mxu0 0.0
    %877 = vmatprep.subr.mxu0 0.0
    %878 = vmatpush1.msra.mxu0 0.0
    %879 = vmatprep.subr.mxu0 0.0
    %880 = vmatpush1.msra.mxu0 0.0
    %881 = vmatprep.subr.mxu0 0.0
    %882 = vmatpush1.msra.mxu0 0.0
    %883 = vmatprep.subr.mxu0 0.0
    %884 = vmatpush1.msra.mxu0 0.0
    %885 = vmatprep.subr.mxu0 0.0
    %886 = vmatpush1.msra.mxu0 0.0
    %887 = vmatprep.subr.mxu0 0.0
    %888 = vmatpush1.msra.mxu0 0.0
    %889 = vmatprep.subr.mxu0 0.0
    %890 = vmatpush1.msra.mxu0 0.0
    %891 = vmatprep.subr.mxu0 0.0
    %892 = vmatpush1.msra.mxu0 0.0
    %893 = vmatprep.subr.mxu0 0.0
    %894 = vmatpush1.msra.mxu0 0.0
    %895 = vmatprep.subr.mxu0 0.0
    %896 = vmatpush1.msra.mxu0 0.0
    %897 = vmatprep.subr.mxu0 0.0
    %898 = vmatpush1.msra.mxu0 0.0
    %899 = vmatprep.subr.mxu0 0.0
    %900 = vmatpush1.msra.mxu0 0.0
    %901 = vmatprep.subr.mxu0 0.0
    %902 = vmatpush1.msra.mxu0 0.0
    %903 = vmatprep.subr.mxu0 0.0
    %904 = vmatpush1.msra.mxu0 0.0
    %905 = vmatprep.subr.mxu0 0.0
    %906 = vmatpush1.msra.mxu0 0.0
    %907 = vmatprep.subr.mxu0 0.0
    %908 = vmatpush1.msra.mxu0 0.0
    %909 = vmatprep.subr.mxu0 0.0
    %910 = vmatpush1.msra.mxu0 0.0
    %911 = vmatprep.mubr.f32.mxu0 0.0
    %912 = vmatmul.mubr.f32.gmra.mrb[0].mxu0 %v845
    %v913 = vpop.f32.mrb[0].mxu0
    %v914 = vadd.f32 %v98, %v913
    %v915 = vpop.f32.mrb[0].mxu0
    %v916 = vadd.f32 %v102, %v915
    %917 = vdwg.mxu0
    %918 = vmatprep.subr.mxu0 0.0
    %919 = vmatpush1.msra.mxu0 %v59
    %920 = vmatprep.subr.mxu0 0.0
    %921 = vmatpush1.msra.mxu0 %v62
    %922 = vmatprep.subr.mxu0 0.0
    %923 = vmatpush1.msra.mxu0 %v65
    %924 = vmatprep.subr.mxu0 0.0
    %925 = vmatpush1.msra.mxu0 %v68
    %926 = vmatprep.subr.mxu0 0.0
    %927 = vmatpush1.msra.mxu0 %v71
    %928 = vmatprep.subr.mxu0 0.0
    %929 = vmatpush1.msra.mxu0 %v74
    %930 = vmatprep.subr.mxu0 0.0
    %931 = vmatpush1.msra.mxu0 %v77
    %932 = vmatprep.subr.mxu0 0.0
    %933 = vmatpush1.msra.mxu0 %v80
    %934 = vmatprep.subr.mxu0 0.0
    %935 = vmatpush1.msra.mxu0 %v83
    %936 = vmatprep.subr.mxu0 0.0
    %937 = vmatpush1.msra.mxu0 %v86
    %938 = vmatprep.subr.mxu0 0.0
    %939 = vmatpush1.msra.mxu0 %v89
    %940 = vmatprep.subr.mxu0 0.0
    %941 = vmatpush1.msra.mxu0 %v92
    %942 = vmatprep.subr.mxu0 0.0
    %943 = vmatpush1.msra.mxu0 0.0
    %944 = vmatprep.subr.mxu0 0.0
    %945 = vmatpush1.msra.mxu0 0.0
    %946 = vmatprep.subr.mxu0 0.0
    %947 = vmatpush1.msra.mxu0 0.0
    %948 = vmatprep.subr.mxu0 0.0
    %949 = vmatpush1.msra.mxu0 0.0
    %950 = vmatprep.subr.mxu0 0.0
    %951 = vmatpush1.msra.mxu0 0.0
    %952 = vmatprep.subr.mxu0 0.0
    %953 = vmatpush1.msra.mxu0 0.0
    %954 = vmatprep.subr.mxu0 0.0
    %955 = vmatpush1.msra.mxu0 0.0
    %956 = vmatprep.subr.mxu0 0.0
    %957 = vmatpush1.msra.mxu0 0.0
    %958 = vmatprep.subr.mxu0 0.0
    %959 = vmatpush1.msra.mxu0 0.0
    %960 = vmatprep.subr.mxu0 0.0
    %961 = vmatpush1.msra.mxu0 0.0
    %962 = vmatprep.subr.mxu0 0.0
    %963 = vmatpush1.msra.mxu0 0.0
    %964 = vmatprep.subr.mxu0 0.0
    %965 = vmatpush1.msra.mxu0 0.0
    %966 = vmatprep.subr.mxu0 0.0
    %967 = vmatpush1.msra.mxu0 0.0
    %968 = vmatprep.subr.mxu0 0.0
    %969 = vmatpush1.msra.mxu0 0.0
    %970 = vmatprep.subr.mxu0 0.0
    %971 = vmatpush1.msra.mxu0 0.0
    %972 = vmatprep.subr.mxu0 0.0
    %973 = vmatpush1.msra.mxu0 0.0
    %974 = vmatprep.subr.mxu0 0.0
    %975 = vmatpush1.msra.mxu0 0.0
    %976 = vmatprep.subr.mxu0 0.0
    %977 = vmatpush1.msra.mxu0 0.0
    %978 = vmatprep.subr.mxu0 0.0
    %979 = vmatpush1.msra.mxu0 0.0
    %980 = vmatprep.subr.mxu0 0.0
    %981 = vmatpush1.msra.mxu0 0.0
    %982 = vmatprep.mubr.f32.mxu0 0.0
    %983 = vmatmul.mubr.f32.gmra.mrb[0].mxu0 %v845
    %v984 = vpop.f32.mrb[0].mxu0
    %v985 = vadd.f32 %v106, %v984
    %v986 = vpop.f32.mrb[0].mxu0
    %987 = vdwg.mxu0
    %v988 = vrot.slane %v53, 2
    %v989 = vrot.slane %v54, 1
    %v990 = vsel %vm264, %v989, %v988
    %v991 = vsel %vm266, %v990, 0
    %993 = vmatprep.subr.mxu0 %v256
    %994 = vmatpush1.msra.mxu0 %v255
    %995 = vmatprep.subr.mxu0 %v259
    %996 = vmatpush1.msra.mxu0 %v258
    %997 = vmatprep.subr.mxu0 0.0
    %998 = vmatpush1.msra.mxu0 0.0
    %999 = vmatprep.subr.mxu0 0.0
    %1000 = vmatpush1.msra.mxu0 0.0
    %1001 = vmatprep.subr.mxu0 0.0
    %1002 = vmatpush1.msra.mxu0 0.0
    %1003 = vmatprep.subr.mxu0 0.0
    %1004 = vmatpush1.msra.mxu0 0.0
    %1005 = vmatprep.subr.mxu0 0.0
    %1006 = vmatpush1.msra.mxu0 0.0
    %1007 = vmatprep.subr.mxu0 0.0
    %1008 = vmatpush1.msra.mxu0 0.0
    %1009 = vmatprep.subr.mxu0 0.0
    %1010 = vmatpush1.msra.mxu0 0.0
    %1011 = vmatprep.subr.mxu0 0.0
    %1012 = vmatpush1.msra.mxu0 0.0
    %1013 = vmatprep.subr.mxu0 0.0
    %1014 = vmatpush1.msra.mxu0 0.0
    %1015 = vmatprep.subr.mxu0 0.0
    %1016 = vmatpush1.msra.mxu0 0.0
    %1017 = vmatprep.subr.mxu0 0.0
    %1018 = vmatpush1.msra.mxu0 0.0
    %1019 = vmatprep.subr.mxu0 0.0
    %1020 = vmatpush1.msra.mxu0 0.0
    %1021 = vmatprep.subr.mxu0 0.0
    %1022 = vmatpush1.msra.mxu0 0.0
    %1023 = vmatprep.subr.mxu0 0.0
    %1024 = vmatpush1.msra.mxu0 0.0
    %1025 = vmatprep.subr.mxu0 0.0
    %1026 = vmatpush1.msra.mxu0 0.0
    %1027 = vmatprep.subr.mxu0 0.0
    %1028 = vmatpush1.msra.mxu0 0.0
    %1029 = vmatprep.subr.mxu0 0.0
    %1030 = vmatpush1.msra.mxu0 0.0
    %1031 = vmatprep.subr.mxu0 0.0
    %1032 = vmatpush1.msra.mxu0 0.0
    %1033 = vmatprep.subr.mxu0 0.0
    %1034 = vmatpush1.msra.mxu0 0.0
    %1035 = vmatprep.subr.mxu0 0.0
    %1036 = vmatpush1.msra.mxu0 0.0
    %1037 = vmatprep.subr.mxu0 0.0
    %1038 = vmatpush1.msra.mxu0 0.0
    %1039 = vmatprep.subr.mxu0 0.0
    %1040 = vmatpush1.msra.mxu0 0.0
    %1041 = vmatprep.subr.mxu0 0.0
    %1042 = vmatpush1.msra.mxu0 0.0
    %1043 = vmatprep.subr.mxu0 0.0
    %1044 = vmatpush1.msra.mxu0 0.0
    %1045 = vmatprep.subr.mxu0 0.0
    %1046 = vmatpush1.msra.mxu0 0.0
    %1047 = vmatprep.subr.mxu0 0.0
    %1048 = vmatpush1.msra.mxu0 0.0
    %1049 = vmatprep.subr.mxu0 0.0
    %1050 = vmatpush1.msra.mxu0 0.0
    %1051 = vmatprep.subr.mxu0 0.0
    %1052 = vmatpush1.msra.mxu0 0.0
    %1053 = vmatprep.subr.mxu0 0.0
    %1054 = vmatpush1.msra.mxu0 0.0
    %1055 = vmatprep.subr.mxu0 0.0
    %1056 = vmatpush1.msra.mxu0 0.0
    %1057 = vmatprep.mubr.f32.mxu0 0.0
    %1058 = vmatmul.mubr.f32.gmra.mrb[0].mxu0 %v991
    %v1059 = vpop.f32.mrb[0].mxu0
    %v1060 = vadd.f32 0.0, %v1059
    %v1061 = vpop.f32.mrb[0].mxu0
    %v1062 = vadd.f32 0.0, %v1061
    %1063 = vdwg.mxu0
    %1064 = vmatprep.subr.mxu0 0.0
    %1065 = vmatpush1.msra.mxu0 %v257
    %1066 = vmatprep.subr.mxu0 0.0
    %1067 = vmatpush1.msra.mxu0 %v260
    %1068 = vmatprep.subr.mxu0 0.0
    %1069 = vmatpush1.msra.mxu0 0.0
    %1070 = vmatprep.subr.mxu0 0.0
    %1071 = vmatpush1.msra.mxu0 0.0
    %1072 = vmatprep.subr.mxu0 0.0
    %1073 = vmatpush1.msra.mxu0 0.0
    %1074 = vmatprep.subr.mxu0 0.0
    %1075 = vmatpush1.msra.mxu0 0.0
    %1076 = vmatprep.subr.mxu0 0.0
    %1077 = vmatpush1.msra.mxu0 0.0
    %1078 = vmatprep.subr.mxu0 0.0
    %1079 = vmatpush1.msra.mxu0 0.0
    %1080 = vmatprep.subr.mxu0 0.0
    %1081 = vmatpush1.msra.mxu0 0.0
    %1082 = vmatprep.subr.mxu0 0.0
    %1083 = vmatpush1.msra.mxu0 0.0
    %1084 = vmatprep.subr.mxu0 0.0
    %1085 = vmatpush1.msra.mxu0 0.0
    %1086 = vmatprep.subr.mxu0 0.0
    %1087 = vmatpush1.msra.mxu0 0.0
    %1088 = vmatprep.subr.mxu0 0.0
    %1089 = vmatpush1.msra.mxu0 0.0
    %1090 = vmatprep.subr.mxu0 0.0
    %1091 = vmatpush1.msra.mxu0 0.0
    %1092 = vmatprep.subr.mxu0 0.0
    %1093 = vmatpush1.msra.mxu0 0.0
    %1094 = vmatprep.subr.mxu0 0.0
    %1095 = vmatpush1.msra.mxu0 0.0
    %1096 = vmatprep.subr.mxu0 0.0
    %1097 = vmatpush1.msra.mxu0 0.0
    %1098 = vmatprep.subr.mxu0 0.0
    %1099 = vmatpush1.msra.mxu0 0.0
    %1100 = vmatprep.subr.mxu0 0.0
    %1101 = vmatpush1.msra.mxu0 0.0
    %1102 = vmatprep.subr.mxu0 0.0
    %1103 = vmatpush1.msra.mxu0 0.0
    %1104 = vmatprep.subr.mxu0 0.0
    %1105 = vmatpush1.msra.mxu0 0.0
    %1106 = vmatprep.subr.mxu0 0.0
    %1107 = vmatpush1.msra.mxu0 0.0
    %1108 = vmatprep.subr.mxu0 0.0
    %1109 = vmatpush1.msra.mxu0 0.0
    %1110 = vmatprep.subr.mxu0 0.0
    %1111 = vmatpush1.msra.mxu0 0.0
    %1112 = vmatprep.subr.mxu0 0.0
    %1113 = vmatpush1.msra.mxu0 0.0
    %1114 = vmatprep.subr.mxu0 0.0
    %1115 = vmatpush1.msra.mxu0 0.0
    %1116 = vmatprep.subr.mxu0 0.0
    %1117 = vmatpush1.msra.mxu0 0.0
    %1118 = vmatprep.subr.mxu0 0.0
    %1119 = vmatpush1.msra.mxu0 0.0
    %1120 = vmatprep.subr.mxu0 0.0
    %1121 = vmatpush1.msra.mxu0 0.0
    %1122 = vmatprep.subr.mxu0 0.0
    %1123 = vmatpush1.msra.mxu0 0.0
    %1124 = vmatprep.subr.mxu0 0.0
    %1125 = vmatpush1.msra.mxu0 0.0
    %1126 = vmatprep.subr.mxu0 0.0
    %1127 = vmatpush1.msra.mxu0 0.0
    %1128 = vmatprep.mubr.f32.mxu0 0.0
    %1129 = vmatmul.mubr.f32.gmra.mrb[0].mxu0 %v991
    %v1130 = vpop.f32.mrb[0].mxu0
    %v1131 = vadd.f32 0.0, %v1130
    %v1132 = vpop.f32.mrb[0].mxu0
    %1133 = vdwg.mxu0
    %v1134 = vadd.f32 %v914, %v1060
    %v1135 = vadd.f32 %v916, %v1062
    %v1136 = vadd.f32 %v985, %v1131
    %v1137 = vxor.u32 %v1134, 2147483648
    %v1138 = vxor.u32 %v1135, 2147483648
    %v1139 = vxor.u32 %v1136, 2147483648
    %v1140 = vmul.f32 %v1137, 1.442695
    %v1141 = vpow.pop %v1140
    %v1142 = vmul.f32 %v1138, 1.442695
    %v1143 = vpow.pop %v1142
    %v1144 = vmul.f32 %v1139, 1.442695
    %v1145 = vpow.pop %v1144
    %v1146 = vadd.f32 %v1141, 1.0
    %v1147 = vadd.f32 %v1143, 1.0
    %v1148 = vadd.f32 %v1145, 1.0
    %v1149 = vrcp.pop %v1146
    %v1150 = vmul.f32 1.0, %v1149
    %v1151 = vrcp.pop %v1147
    %v1152 = vmul.f32 1.0, %v1151
    %v1153 = vrcp.pop %v1148
    %v1154 = vmul.f32 1.0, %v1153
    %v1155 = vmul.f32 %v1152, 2.0
    %v1156 = vmul.f32 %v1154, 2.0
    %v1157 = vsub.f32 %v1155, 1.0
    %v1158 = vsub.f32 %v1156, 1.0
    %1160 = vrot.lane.b32.xlu0 %v838, 96
    %v1161 = vpop.permute.xlu0 %1160
    %v1163 = vmul.f32 %v1150, %v1161
    %v1164 = vmul.f32 %v1152, %v1161
    %1167 = vrot.lane.b32.xlu0 %v1157, 64
    %v1168 = vpop.permute.xlu0 %1167
    %1169 = vrot.lane.b32.xlu0 %v1158, 64
    %v1170 = vpop.permute.xlu0 %1169
    %v1171 = vsel %vm443, %v1168, %v1170
    %v1173 = vmul.f32 %v1150, %v1171
    %1175 = vrot.lane.b32.xlu0 %v1173, 96
    %v1176 = vpop.permute.xlu0 %1175
    %v1178 = vadd.f32 %v1163, %v1176
    %v1179 = vadd.f32 %v1164, %v1176
    %v1180 = vtanh.pop %v1178
    %v1181 = vtanh.pop %v1179
    %1184 = vrot.lane.b32.xlu0 %v1180, 64
    %v1185 = vpop.permute.xlu0 %1184
    %1186 = vrot.lane.b32.xlu0 %v1181, 64
    %v1187 = vpop.permute.xlu0 %1186
    %v1188 = vsel %vm443, %v1185, %v1187
    %v1190 = vmul.f32 %v1154, %v1188
    %1192 = vrot.lane.b32.xlu0 %v1190, 96
    %v1193 = vpop.permute.xlu0 %1192
    %v1194 = vsel %vm110, %v1193, 0
    %1196 = vmatprep.subr.mxu0 %v58
    %1197 = vmatpush1.msra.mxu0 %v57
    %1198 = vmatprep.subr.mxu0 %v61
    %1199 = vmatpush1.msra.mxu0 %v60
    %1200 = vmatprep.subr.mxu0 %v64
    %1201 = vmatpush1.msra.mxu0 %v63
    %1202 = vmatprep.subr.mxu0 %v67
    %1203 = vmatpush1.msra.mxu0 %v66
    %1204 = vmatprep.subr.mxu0 %v70
    %1205 = vmatpush1.msra.mxu0 %v69
    %1206 = vmatprep.subr.mxu0 %v73
    %1207 = vmatpush1.msra.mxu0 %v72
    %1208 = vmatprep.subr.mxu0 %v76
    %1209 = vmatpush1.msra.mxu0 %v75
    %1210 = vmatprep.subr.mxu0 %v79
    %1211 = vmatpush1.msra.mxu0 %v78
    %1212 = vmatprep.subr.mxu0 %v82
    %1213 = vmatpush1.msra.mxu0 %v81
    %1214 = vmatprep.subr.mxu0 %v85
    %1215 = vmatpush1.msra.mxu0 %v84
    %1216 = vmatprep.subr.mxu0 %v88
    %1217 = vmatpush1.msra.mxu0 %v87
    %1218 = vmatprep.subr.mxu0 %v91
    %1219 = vmatpush1.msra.mxu0 %v90
    %1220 = vmatprep.subr.mxu0 0.0
    %1221 = vmatpush1.msra.mxu0 0.0
    %1222 = vmatprep.subr.mxu0 0.0
    %1223 = vmatpush1.msra.mxu0 0.0
    %1224 = vmatprep.subr.mxu0 0.0
    %1225 = vmatpush1.msra.mxu0 0.0
    %1226 = vmatprep.subr.mxu0 0.0
    %1227 = vmatpush1.msra.mxu0 0.0
    %1228 = vmatprep.subr.mxu0 0.0
    %1229 = vmatpush1.msra.mxu0 0.0
    %1230 = vmatprep.subr.mxu0 0.0
    %1231 = vmatpush1.msra.mxu0 0.0
    %1232 = vmatprep.subr.mxu0 0.0
    %1233 = vmatpush1.msra.mxu0 0.0
    %1234 = vmatprep.subr.mxu0 0.0
    %1235 = vmatpush1.msra.mxu0 0.0
    %1236 = vmatprep.subr.mxu0 0.0
    %1237 = vmatpush1.msra.mxu0 0.0
    %1238 = vmatprep.subr.mxu0 0.0
    %1239 = vmatpush1.msra.mxu0 0.0
    %1240 = vmatprep.subr.mxu0 0.0
    %1241 = vmatpush1.msra.mxu0 0.0
    %1242 = vmatprep.subr.mxu0 0.0
    %1243 = vmatpush1.msra.mxu0 0.0
    %1244 = vmatprep.subr.mxu0 0.0
    %1245 = vmatpush1.msra.mxu0 0.0
    %1246 = vmatprep.subr.mxu0 0.0
    %1247 = vmatpush1.msra.mxu0 0.0
    %1248 = vmatprep.subr.mxu0 0.0
    %1249 = vmatpush1.msra.mxu0 0.0
    %1250 = vmatprep.subr.mxu0 0.0
    %1251 = vmatpush1.msra.mxu0 0.0
    %1252 = vmatprep.subr.mxu0 0.0
    %1253 = vmatpush1.msra.mxu0 0.0
    %1254 = vmatprep.subr.mxu0 0.0
    %1255 = vmatpush1.msra.mxu0 0.0
    %1256 = vmatprep.subr.mxu0 0.0
    %1257 = vmatpush1.msra.mxu0 0.0
    %1258 = vmatprep.subr.mxu0 0.0
    %1259 = vmatpush1.msra.mxu0 0.0
    %1260 = vmatprep.mubr.f32.mxu0 0.0
    %1261 = vmatmul.mubr.f32.gmra.mrb[0].mxu0 %v1194
    %v1262 = vpop.f32.mrb[0].mxu0
    %v1263 = vadd.f32 %v98, %v1262
    %v1264 = vpop.f32.mrb[0].mxu0
    %v1265 = vadd.f32 %v102, %v1264
    %1266 = vdwg.mxu0
    %1267 = vmatprep.subr.mxu0 0.0
    %1268 = vmatpush1.msra.mxu0 %v59
    %1269 = vmatprep.subr.mxu0 0.0
    %1270 = vmatpush1.msra.mxu0 %v62
    %1271 = vmatprep.subr.mxu0 0.0
    %1272 = vmatpush1.msra.mxu0 %v65
    %1273 = vmatprep.subr.mxu0 0.0
    %1274 = vmatpush1.msra.mxu0 %v68
    %1275 = vmatprep.subr.mxu0 0.0
    %1276 = vmatpush1.msra.mxu0 %v71
    %1277 = vmatprep.subr.mxu0 0.0
    %1278 = vmatpush1.msra.mxu0 %v74
    %1279 = vmatprep.subr.mxu0 0.0
    %1280 = vmatpush1.msra.mxu0 %v77
    %1281 = vmatprep.subr.mxu0 0.0
    %1282 = vmatpush1.msra.mxu0 %v80
    %1283 = vmatprep.subr.mxu0 0.0
    %1284 = vmatpush1.msra.mxu0 %v83
    %1285 = vmatprep.subr.mxu0 0.0
    %1286 = vmatpush1.msra.mxu0 %v86
    %1287 = vmatprep.subr.mxu0 0.0
    %1288 = vmatpush1.msra.mxu0 %v89
    %1289 = vmatprep.subr.mxu0 0.0
    %1290 = vmatpush1.msra.mxu0 %v92
    %1291 = vmatprep.subr.mxu0 0.0
    %1292 = vmatpush1.msra.mxu0 0.0
    %1293 = vmatprep.subr.mxu0 0.0
    %1294 = vmatpush1.msra.mxu0 0.0
    %1295 = vmatprep.subr.mxu0 0.0
    %1296 = vmatpush1.msra.mxu0 0.0
    %1297 = vmatprep.subr.mxu0 0.0
    %1298 = vmatpush1.msra.mxu0 0.0
    %1299 = vmatprep.subr.mxu0 0.0
    %1300 = vmatpush1.msra.mxu0 0.0
    %1301 = vmatprep.subr.mxu0 0.0
    %1302 = vmatpush1.msra.mxu0 0.0
    %1303 = vmatprep.subr.mxu0 0.0
    %1304 = vmatpush1.msra.mxu0 0.0
    %1305 = vmatprep.subr.mxu0 0.0
    %1306 = vmatpush1.msra.mxu0 0.0
    %1307 = vmatprep.subr.mxu0 0.0
    %1308 = vmatpush1.msra.mxu0 0.0
    %1309 = vmatprep.subr.mxu0 0.0
    %1310 = vmatpush1.msra.mxu0 0.0
    %1311 = vmatprep.subr.mxu0 0.0
    %1312 = vmatpush1.msra.mxu0 0.0
    %1313 = vmatprep.subr.mxu0 0.0
    %1314 = vmatpush1.msra.mxu0 0.0
    %1315 = vmatprep.subr.mxu0 0.0
    %1316 = vmatpush1.msra.mxu0 0.0
    %1317 = vmatprep.subr.mxu0 0.0
    %1318 = vmatpush1.msra.mxu0 0.0
    %1319 = vmatprep.subr.mxu0 0.0
    %1320 = vmatpush1.msra.mxu0 0.0
    %1321 = vmatprep.subr.mxu0 0.0
    %1322 = vmatpush1.msra.mxu0 0.0
    %1323 = vmatprep.subr.mxu0 0.0
    %1324 = vmatpush1.msra.mxu0 0.0
    %1325 = vmatprep.subr.mxu0 0.0
    %1326 = vmatpush1.msra.mxu0 0.0
    %1327 = vmatprep.subr.mxu0 0.0
    %1328 = vmatpush1.msra.mxu0 0.0
    %1329 = vmatprep.subr.mxu0 0.0
    %1330 = vmatpush1.msra.mxu0 0.0
    %1331 = vmatprep.mubr.f32.mxu0 0.0
    %1332 = vmatmul.mubr.f32.gmra.mrb[0].mxu0 %v1194
    %v1333 = vpop.f32.mrb[0].mxu0
    %v1334 = vadd.f32 %v106, %v1333
    %v1335 = vpop.f32.mrb[0].mxu0
    %1336 = vdwg.mxu0
    %v1337 = vrot.slane %v53, 3
    %v1338 = vrot.slane %v54, 2
    %v1339 = vsel %vm264, %v1338, %v1337
    %v1340 = vsel %vm266, %v1339, 0
    %1342 = vmatprep.subr.mxu0 %v256
    %1343 = vmatpush1.msra.mxu0 %v255
    %1344 = vmatprep.subr.mxu0 %v259
    %1345 = vmatpush1.msra.mxu0 %v258
    %1346 = vmatprep.subr.mxu0 0.0
    %1347 = vmatpush1.msra.mxu0 0.0
    %1348 = vmatprep.subr.mxu0 0.0
    %1349 = vmatpush1.msra.mxu0 0.0
    %1350 = vmatprep.subr.mxu0 0.0
    %1351 = vmatpush1.msra.mxu0 0.0
    %1352 = vmatprep.subr.mxu0 0.0
    %1353 = vmatpush1.msra.mxu0 0.0
    %1354 = vmatprep.subr.mxu0 0.0
    %1355 = vmatpush1.msra.mxu0 0.0
    %1356 = vmatprep.subr.mxu0 0.0
    %1357 = vmatpush1.msra.mxu0 0.0
    %1358 = vmatprep.subr.mxu0 0.0
    %1359 = vmatpush1.msra.mxu0 0.0
    %1360 = vmatprep.subr.mxu0 0.0
    %1361 = vmatpush1.msra.mxu0 0.0
    %1362 = vmatprep.subr.mxu0 0.0
    %1363 = vmatpush1.msra.mxu0 0.0
    %1364 = vmatprep.subr.mxu0 0.0
    %1365 = vmatpush1.msra.mxu0 0.0
    %1366 = vmatprep.subr.mxu0 0.0
    %1367 = vmatpush1.msra.mxu0 0.0
    %1368 = vmatprep.subr.mxu0 0.0
    %1369 = vmatpush1.msra.mxu0 0.0
    %1370 = vmatprep.subr.mxu0 0.0
    %1371 = vmatpush1.msra.mxu0 0.0
    %1372 = vmatprep.subr.mxu0 0.0
    %1373 = vmatpush1.msra.mxu0 0.0
    %1374 = vmatprep.subr.mxu0 0.0
    %1375 = vmatpush1.msra.mxu0 0.0
    %1376 = vmatprep.subr.mxu0 0.0
    %1377 = vmatpush1.msra.mxu0 0.0
    %1378 = vmatprep.subr.mxu0 0.0
    %1379 = vmatpush1.msra.mxu0 0.0
    %1380 = vmatprep.subr.mxu0 0.0
    %1381 = vmatpush1.msra.mxu0 0.0
    %1382 = vmatprep.subr.mxu0 0.0
    %1383 = vmatpush1.msra.mxu0 0.0
    %1384 = vmatprep.subr.mxu0 0.0
    %1385 = vmatpush1.msra.mxu0 0.0
    %1386 = vmatprep.subr.mxu0 0.0
    %1387 = vmatpush1.msra.mxu0 0.0
    %1388 = vmatprep.subr.mxu0 0.0
    %1389 = vmatpush1.msra.mxu0 0.0
    %1390 = vmatprep.subr.mxu0 0.0
    %1391 = vmatpush1.msra.mxu0 0.0
    %1392 = vmatprep.subr.mxu0 0.0
    %1393 = vmatpush1.msra.mxu0 0.0
    %1394 = vmatprep.subr.mxu0 0.0
    %1395 = vmatpush1.msra.mxu0 0.0
    %1396 = vmatprep.subr.mxu0 0.0
    %1397 = vmatpush1.msra.mxu0 0.0
    %1398 = vmatprep.subr.mxu0 0.0
    %1399 = vmatpush1.msra.mxu0 0.0
    %1400 = vmatprep.subr.mxu0 0.0
    %1401 = vmatpush1.msra.mxu0 0.0
    %1402 = vmatprep.subr.mxu0 0.0
    %1403 = vmatpush1.msra.mxu0 0.0
    %1404 = vmatprep.subr.mxu0 0.0
    %1405 = vmatpush1.msra.mxu0 0.0
    %1406 = vmatprep.mubr.f32.mxu0 0.0
    %1407 = vmatmul.mubr.f32.gmra.mrb[0].mxu0 %v1340
    %v1408 = vpop.f32.mrb[0].mxu0
    %v1409 = vadd.f32 0.0, %v1408
    %v1410 = vpop.f32.mrb[0].mxu0
    %v1411 = vadd.f32 0.0, %v1410
    %1412 = vdwg.mxu0
    %1413 = vmatprep.subr.mxu0 0.0
    %1414 = vmatpush1.msra.mxu0 %v257
    %1415 = vmatprep.subr.mxu0 0.0
    %1416 = vmatpush1.msra.mxu0 %v260
    %1417 = vmatprep.subr.mxu0 0.0
    %1418 = vmatpush1.msra.mxu0 0.0
    %1419 = vmatprep.subr.mxu0 0.0
    %1420 = vmatpush1.msra.mxu0 0.0
    %1421 = vmatprep.subr.mxu0 0.0
    %1422 = vmatpush1.msra.mxu0 0.0
    %1423 = vmatprep.subr.mxu0 0.0
    %1424 = vmatpush1.msra.mxu0 0.0
    %1425 = vmatprep.subr.mxu0 0.0
    %1426 = vmatpush1.msra.mxu0 0.0
    %1427 = vmatprep.subr.mxu0 0.0
    %1428 = vmatpush1.msra.mxu0 0.0
    %1429 = vmatprep.subr.mxu0 0.0
    %1430 = vmatpush1.msra.mxu0 0.0
    %1431 = vmatprep.subr.mxu0 0.0
    %1432 = vmatpush1.msra.mxu0 0.0
    %1433 = vmatprep.subr.mxu0 0.0
    %1434 = vmatpush1.msra.mxu0 0.0
    %1435 = vmatprep.subr.mxu0 0.0
    %1436 = vmatpush1.msra.mxu0 0.0
    %1437 = vmatprep.subr.mxu0 0.0
    %1438 = vmatpush1.msra.mxu0 0.0
    %1439 = vmatprep.subr.mxu0 0.0
    %1440 = vmatpush1.msra.mxu0 0.0
    %1441 = vmatprep.subr.mxu0 0.0
    %1442 = vmatpush1.msra.mxu0 0.0
    %1443 = vmatprep.subr.mxu0 0.0
    %1444 = vmatpush1.msra.mxu0 0.0
    %1445 = vmatprep.subr.mxu0 0.0
    %1446 = vmatpush1.msra.mxu0 0.0
    %1447 = vmatprep.subr.mxu0 0.0
    %1448 = vmatpush1.msra.mxu0 0.0
    %1449 = vmatprep.subr.mxu0 0.0
    %1450 = vmatpush1.msra.mxu0 0.0
    %1451 = vmatprep.subr.mxu0 0.0
    %1452 = vmatpush1.msra.mxu0 0.0
    %1453 = vmatprep.subr.mxu0 0.0
    %1454 = vmatpush1.msra.mxu0 0.0
    %1455 = vmatprep.subr.mxu0 0.0
    %1456 = vmatpush1.msra.mxu0 0.0
    %1457 = vmatprep.subr.mxu0 0.0
    %1458 = vmatpush1.msra.mxu0 0.0
    %1459 = vmatprep.subr.mxu0 0.0
    %1460 = vmatpush1.msra.mxu0 0.0
    %1461 = vmatprep.subr.mxu0 0.0
    %1462 = vmatpush1.msra.mxu0 0.0
    %1463 = vmatprep.subr.mxu0 0.0
    %1464 = vmatpush1.msra.mxu0 0.0
    %1465 = vmatprep.subr.mxu0 0.0
    %1466 = vmatpush1.msra.mxu0 0.0
    %1467 = vmatprep.subr.mxu0 0.0
    %1468 = vmatpush1.msra.mxu0 0.0
    %1469 = vmatprep.subr.mxu0 0.0
    %1470 = vmatpush1.msra.mxu0 0.0
    %1471 = vmatprep.subr.mxu0 0.0
    %1472 = vmatpush1.msra.mxu0 0.0
    %1473 = vmatprep.subr.mxu0 0.0
    %1474 = vmatpush1.msra.mxu0 0.0
    %1475 = vmatprep.subr.mxu0 0.0
    %1476 = vmatpush1.msra.mxu0 0.0
    %1477 = vmatprep.mubr.f32.mxu0 0.0
    %1478 = vmatmul.mubr.f32.gmra.mrb[0].mxu0 %v1340
    %v1479 = vpop.f32.mrb[0].mxu0
    %v1480 = vadd.f32 0.0, %v1479
    %v1481 = vpop.f32.mrb[0].mxu0
    %1482 = vdwg.mxu0
    %v1483 = vadd.f32 %v1263, %v1409
    %v1484 = vadd.f32 %v1265, %v1411
    %v1485 = vadd.f32 %v1334, %v1480
    %v1486 = vxor.u32 %v1483, 2147483648
    %v1487 = vxor.u32 %v1484, 2147483648
    %v1488 = vxor.u32 %v1485, 2147483648
    %v1489 = vmul.f32 %v1486, 1.442695
    %v1490 = vpow.pop %v1489
    %v1491 = vmul.f32 %v1487, 1.442695
    %v1492 = vpow.pop %v1491
    %v1493 = vmul.f32 %v1488, 1.442695
    %v1494 = vpow.pop %v1493
    %v1495 = vadd.f32 %v1490, 1.0
    %v1496 = vadd.f32 %v1492, 1.0
    %v1497 = vadd.f32 %v1494, 1.0
    %v1498 = vrcp.pop %v1495
    %v1499 = vmul.f32 1.0, %v1498
    %v1500 = vrcp.pop %v1496
    %v1501 = vmul.f32 1.0, %v1500
    %v1502 = vrcp.pop %v1497
    %v1503 = vmul.f32 1.0, %v1502
    %v1504 = vmul.f32 %v1501, 2.0
    %v1505 = vmul.f32 %v1503, 2.0
    %v1506 = vsub.f32 %v1504, 1.0
    %v1507 = vsub.f32 %v1505, 1.0
    %v1508 = vmul.f32 %v1499, %v1178
    %v1509 = vmul.f32 %v1501, %v1179
    %1512 = vrot.lane.b32.xlu0 %v1506, 64
    %v1513 = vpop.permute.xlu0 %1512
    %1514 = vrot.lane.b32.xlu0 %v1507, 64
    %v1515 = vpop.permute.xlu0 %1514
    %v1516 = vsel %vm443, %v1513, %v1515
    %v1518 = vmul.f32 %v1499, %v1516
    %1520 = vrot.lane.b32.xlu0 %v1518, 96
    %v1521 = vpop.permute.xlu0 %1520
    %v1523 = vadd.f32 %v1508, %v1521
    %v1524 = vadd.f32 %v1509, %v1521
    %v1525 = vtanh.pop %v1523
    %v1526 = vtanh.pop %v1524
    %1529 = vrot.lane.b32.xlu0 %v1525, 64
    %v1530 = vpop.permute.xlu0 %1529
    %1531 = vrot.lane.b32.xlu0 %v1526, 64
    %v1532 = vpop.permute.xlu0 %1531
    %v1533 = vsel %vm443, %v1530, %v1532
    %v1535 = vmul.f32 %v1503, %v1533
    %1537 = vrot.lane.b32.xlu0 %v1535, 96
    %v1538 = vpop.permute.xlu0 %1537
    %v1539 = vsel %vm110, %v1538, 0
    %1541 = vmatprep.subr.mxu0 %v58
    %1542 = vmatpush1.msra.mxu0 %v57
    %1543 = vmatprep.subr.mxu0 %v61
    %1544 = vmatpush1.msra.mxu0 %v60
    %1545 = vmatprep.subr.mxu0 %v64
    %1546 = vmatpush1.msra.mxu0 %v63
    %1547 = vmatprep.subr.mxu0 %v67
    %1548 = vmatpush1.msra.mxu0 %v66
    %1549 = vmatprep.subr.mxu0 %v70
    %1550 = vmatpush1.msra.mxu0 %v69
    %1551 = vmatprep.subr.mxu0 %v73
    %1552 = vmatpush1.msra.mxu0 %v72
    %1553 = vmatprep.subr.mxu0 %v76
    %1554 = vmatpush1.msra.mxu0 %v75
    %1555 = vmatprep.subr.mxu0 %v79
    %1556 = vmatpush1.msra.mxu0 %v78
    %1557 = vmatprep.subr.mxu0 %v82
    %1558 = vmatpush1.msra.mxu0 %v81
    %1559 = vmatprep.subr.mxu0 %v85
    %1560 = vmatpush1.msra.mxu0 %v84
    %1561 = vmatprep.subr.mxu0 %v88
    %1562 = vmatpush1.msra.mxu0 %v87
    %1563 = vmatprep.subr.mxu0 %v91
    %1564 = vmatpush1.msra.mxu0 %v90
    %1565 = vmatprep.subr.mxu0 0.0
    %1566 = vmatpush1.msra.mxu0 0.0
    %1567 = vmatprep.subr.mxu0 0.0
    %1568 = vmatpush1.msra.mxu0 0.0
    %1569 = vmatprep.subr.mxu0 0.0
    %1570 = vmatpush1.msra.mxu0 0.0
    %1571 = vmatprep.subr.mxu0 0.0
    %1572 = vmatpush1.msra.mxu0 0.0
    %1573 = vmatprep.subr.mxu0 0.0
    %1574 = vmatpush1.msra.mxu0 0.0
    %1575 = vmatprep.subr.mxu0 0.0
    %1576 = vmatpush1.msra.mxu0 0.0
    %1577 = vmatprep.subr.mxu0 0.0
    %1578 = vmatpush1.msra.mxu0 0.0
    %1579 = vmatprep.subr.mxu0 0.0
    %1580 = vmatpush1.msra.mxu0 0.0
    %1581 = vmatprep.subr.mxu0 0.0
    %1582 = vmatpush1.msra.mxu0 0.0
    %1583 = vmatprep.subr.mxu0 0.0
    %1584 = vmatpush1.msra.mxu0 0.0
    %1585 = vmatprep.subr.mxu0 0.0
    %1586 = vmatpush1.msra.mxu0 0.0
    %1587 = vmatprep.subr.mxu0 0.0
    %1588 = vmatpush1.msra.mxu0 0.0
    %1589 = vmatprep.subr.mxu0 0.0
    %1590 = vmatpush1.msra.mxu0 0.0
    %1591 = vmatprep.subr.mxu0 0.0
    %1592 = vmatpush1.msra.mxu0 0.0
    %1593 = vmatprep.subr.mxu0 0.0
    %1594 = vmatpush1.msra.mxu0 0.0
    %1595 = vmatprep.subr.mxu0 0.0
    %1596 = vmatpush1.msra.mxu0 0.0
    %1597 = vmatprep.subr.mxu0 0.0
    %1598 = vmatpush1.msra.mxu0 0.0
    %1599 = vmatprep.subr.mxu0 0.0
    %1600 = vmatpush1.msra.mxu0 0.0
    %1601 = vmatprep.subr.mxu0 0.0
    %1602 = vmatpush1.msra.mxu0 0.0
    %1603 = vmatprep.subr.mxu0 0.0
    %1604 = vmatpush1.msra.mxu0 0.0
    %1605 = vmatprep.mubr.f32.mxu0 0.0
    %1606 = vmatmul.mubr.f32.gmra.mrb[0].mxu0 %v1539
    %v1607 = vpop.f32.mrb[0].mxu0
    %v1608 = vadd.f32 %v98, %v1607
    %v1609 = vpop.f32.mrb[0].mxu0
    %v1610 = vadd.f32 %v102, %v1609
    %1611 = vdwg.mxu0
    %1612 = vmatprep.subr.mxu0 0.0
    %1613 = vmatpush1.msra.mxu0 %v59
    %1614 = vmatprep.subr.mxu0 0.0
    %1615 = vmatpush1.msra.mxu0 %v62
    %1616 = vmatprep.subr.mxu0 0.0
    %1617 = vmatpush1.msra.mxu0 %v65
    %1618 = vmatprep.subr.mxu0 0.0
    %1619 = vmatpush1.msra.mxu0 %v68
    %1620 = vmatprep.subr.mxu0 0.0
    %1621 = vmatpush1.msra.mxu0 %v71
    %1622 = vmatprep.subr.mxu0 0.0
    %1623 = vmatpush1.msra.mxu0 %v74
    %1624 = vmatprep.subr.mxu0 0.0
    %1625 = vmatpush1.msra.mxu0 %v77
    %1626 = vmatprep.subr.mxu0 0.0
    %1627 = vmatpush1.msra.mxu0 %v80
    %1628 = vmatprep.subr.mxu0 0.0
    %1629 = vmatpush1.msra.mxu0 %v83
    %1630 = vmatprep.subr.mxu0 0.0
    %1631 = vmatpush1.msra.mxu0 %v86
    %1632 = vmatprep.subr.mxu0 0.0
    %1633 = vmatpush1.msra.mxu0 %v89
    %1634 = vmatprep.subr.mxu0 0.0
    %1635 = vmatpush1.msra.mxu0 %v92
    %1636 = vmatprep.subr.mxu0 0.0
    %1637 = vmatpush1.msra.mxu0 0.0
    %1638 = vmatprep.subr.mxu0 0.0
    %1639 = vmatpush1.msra.mxu0 0.0
    %1640 = vmatprep.subr.mxu0 0.0
    %1641 = vmatpush1.msra.mxu0 0.0
    %1642 = vmatprep.subr.mxu0 0.0
    %1643 = vmatpush1.msra.mxu0 0.0
    %1644 = vmatprep.subr.mxu0 0.0
    %1645 = vmatpush1.msra.mxu0 0.0
    %1646 = vmatprep.subr.mxu0 0.0
    %1647 = vmatpush1.msra.mxu0 0.0
    %1648 = vmatprep.subr.mxu0 0.0
    %1649 = vmatpush1.msra.mxu0 0.0
    %1650 = vmatprep.subr.mxu0 0.0
    %1651 = vmatpush1.msra.mxu0 0.0
    %1652 = vmatprep.subr.mxu0 0.0
    %1653 = vmatpush1.msra.mxu0 0.0
    %1654 = vmatprep.subr.mxu0 0.0
    %1655 = vmatpush1.msra.mxu0 0.0
    %1656 = vmatprep.subr.mxu0 0.0
    %1657 = vmatpush1.msra.mxu0 0.0
    %1658 = vmatprep.subr.mxu0 0.0
    %1659 = vmatpush1.msra.mxu0 0.0
    %1660 = vmatprep.subr.mxu0 0.0
    %1661 = vmatpush1.msra.mxu0 0.0
    %1662 = vmatprep.subr.mxu0 0.0
    %1663 = vmatpush1.msra.mxu0 0.0
    %1664 = vmatprep.subr.mxu0 0.0
    %1665 = vmatpush1.msra.mxu0 0.0
    %1666 = vmatprep.subr.mxu0 0.0
    %1667 = vmatpush1.msra.mxu0 0.0
    %1668 = vmatprep.subr.mxu0 0.0
    %1669 = vmatpush1.msra.mxu0 0.0
    %1670 = vmatprep.subr.mxu0 0.0
    %1671 = vmatpush1.msra.mxu0 0.0
    %1672 = vmatprep.subr.mxu0 0.0
    %1673 = vmatpush1.msra.mxu0 0.0
    %1674 = vmatprep.subr.mxu0 0.0
    %1675 = vmatpush1.msra.mxu0 0.0
    %1676 = vmatprep.mubr.f32.mxu0 0.0
    %1677 = vmatmul.mubr.f32.gmra.mrb[0].mxu0 %v1539
    %v1678 = vpop.f32.mrb[0].mxu0
    %v1679 = vadd.f32 %v106, %v1678
    %v1680 = vpop.f32.mrb[0].mxu0
    %1681 = vdwg.mxu0
    %v1682 = vrot.slane %v53, 4
    %v1683 = vrot.slane %v54, 3
    %v1684 = vsel %vm264, %v1683, %v1682
    %v1685 = vsel %vm266, %v1684, 0
    %1687 = vmatprep.subr.mxu0 %v256
    %1688 = vmatpush1.msra.mxu0 %v255
    %1689 = vmatprep.subr.mxu0 %v259
    %1690 = vmatpush1.msra.mxu0 %v258
    %1691 = vmatprep.subr.mxu0 0.0
    %1692 = vmatpush1.msra.mxu0 0.0
    %1693 = vmatprep.subr.mxu0 0.0
    %1694 = vmatpush1.msra.mxu0 0.0
    %1695 = vmatprep.subr.mxu0 0.0
    %1696 = vmatpush1.msra.mxu0 0.0
    %1697 = vmatprep.subr.mxu0 0.0
    %1698 = vmatpush1.msra.mxu0 0.0
    %1699 = vmatprep.subr.mxu0 0.0
    %1700 = vmatpush1.msra.mxu0 0.0
    %1701 = vmatprep.subr.mxu0 0.0
    %1702 = vmatpush1.msra.mxu0 0.0
    %1703 = vmatprep.subr.mxu0 0.0
    %1704 = vmatpush1.msra.mxu0 0.0
    %1705 = vmatprep.subr.mxu0 0.0
    %1706 = vmatpush1.msra.mxu0 0.0
    %1707 = vmatprep.subr.mxu0 0.0
    %1708 = vmatpush1.msra.mxu0 0.0
    %1709 = vmatprep.subr.mxu0 0.0
    %1710 = vmatpush1.msra.mxu0 0.0
    %1711 = vmatprep.subr.mxu0 0.0
    %1712 = vmatpush1.msra.mxu0 0.0
    %1713 = vmatprep.subr.mxu0 0.0
    %1714 = vmatpush1.msra.mxu0 0.0
    %1715 = vmatprep.subr.mxu0 0.0
    %1716 = vmatpush1.msra.mxu0 0.0
    %1717 = vmatprep.subr.mxu0 0.0
    %1718 = vmatpush1.msra.mxu0 0.0
    %1719 = vmatprep.subr.mxu0 0.0
    %1720 = vmatpush1.msra.mxu0 0.0
    %1721 = vmatprep.subr.mxu0 0.0
    %1722 = vmatpush1.msra.mxu0 0.0
    %1723 = vmatprep.subr.mxu0 0.0
    %1724 = vmatpush1.msra.mxu0 0.0
    %1725 = vmatprep.subr.mxu0 0.0
    %1726 = vmatpush1.msra.mxu0 0.0
    %1727 = vmatprep.subr.mxu0 0.0
    %1728 = vmatpush1.msra.mxu0 0.0
    %1729 = vmatprep.subr.mxu0 0.0
    %1730 = vmatpush1.msra.mxu0 0.0
    %1731 = vmatprep.subr.mxu0 0.0
    %1732 = vmatpush1.msra.mxu0 0.0
    %1733 = vmatprep.subr.mxu0 0.0
    %1734 = vmatpush1.msra.mxu0 0.0
    %1735 = vmatprep.subr.mxu0 0.0
    %1736 = vmatpush1.msra.mxu0 0.0
    %1737 = vmatprep.subr.mxu0 0.0
    %1738 = vmatpush1.msra.mxu0 0.0
    %1739 = vmatprep.subr.mxu0 0.0
    %1740 = vmatpush1.msra.mxu0 0.0
    %1741 = vmatprep.subr.mxu0 0.0
    %1742 = vmatpush1.msra.mxu0 0.0
    %1743 = vmatprep.subr.mxu0 0.0
    %1744 = vmatpush1.msra.mxu0 0.0
    %1745 = vmatprep.subr.mxu0 0.0
    %1746 = vmatpush1.msra.mxu0 0.0
    %1747 = vmatprep.subr.mxu0 0.0
    %1748 = vmatpush1.msra.mxu0 0.0
    %1749 = vmatprep.subr.mxu0 0.0
    %1750 = vmatpush1.msra.mxu0 0.0
    %1751 = vmatprep.mubr.f32.mxu0 0.0
    %1752 = vmatmul.mubr.f32.gmra.mrb[0].mxu0 %v1685
    %v1753 = vpop.f32.mrb[0].mxu0
    %v1754 = vadd.f32 0.0, %v1753
    %v1755 = vpop.f32.mrb[0].mxu0
    %v1756 = vadd.f32 0.0, %v1755
    %1757 = vdwg.mxu0
    %1758 = vmatprep.subr.mxu0 0.0
    %1759 = vmatpush1.msra.mxu0 %v257
    %1760 = vmatprep.subr.mxu0 0.0
    %1761 = vmatpush1.msra.mxu0 %v260
    %1762 = vmatprep.subr.mxu0 0.0
    %1763 = vmatpush1.msra.mxu0 0.0
    %1764 = vmatprep.subr.mxu0 0.0
    %1765 = vmatpush1.msra.mxu0 0.0
    %1766 = vmatprep.subr.mxu0 0.0
    %1767 = vmatpush1.msra.mxu0 0.0
    %1768 = vmatprep.subr.mxu0 0.0
    %1769 = vmatpush1.msra.mxu0 0.0
    %1770 = vmatprep.subr.mxu0 0.0
    %1771 = vmatpush1.msra.mxu0 0.0
    %1772 = vmatprep.subr.mxu0 0.0
    %1773 = vmatpush1.msra.mxu0 0.0
    %1774 = vmatprep.subr.mxu0 0.0
    %1775 = vmatpush1.msra.mxu0 0.0
    %1776 = vmatprep.subr.mxu0 0.0
    %1777 = vmatpush1.msra.mxu0 0.0
    %1778 = vmatprep.subr.mxu0 0.0
    %1779 = vmatpush1.msra.mxu0 0.0
    %1780 = vmatprep.subr.mxu0 0.0
    %1781 = vmatpush1.msra.mxu0 0.0
    %1782 = vmatprep.subr.mxu0 0.0
    %1783 = vmatpush1.msra.mxu0 0.0
    %1784 = vmatprep.subr.mxu0 0.0
    %1785 = vmatpush1.msra.mxu0 0.0
    %1786 = vmatprep.subr.mxu0 0.0
    %1787 = vmatpush1.msra.mxu0 0.0
    %1788 = vmatprep.subr.mxu0 0.0
    %1789 = vmatpush1.msra.mxu0 0.0
    %1790 = vmatprep.subr.mxu0 0.0
    %1791 = vmatpush1.msra.mxu0 0.0
    %1792 = vmatprep.subr.mxu0 0.0
    %1793 = vmatpush1.msra.mxu0 0.0
    %1794 = vmatprep.subr.mxu0 0.0
    %1795 = vmatpush1.msra.mxu0 0.0
    %1796 = vmatprep.subr.mxu0 0.0
    %1797 = vmatpush1.msra.mxu0 0.0
    %1798 = vmatprep.subr.mxu0 0.0
    %1799 = vmatpush1.msra.mxu0 0.0
    %1800 = vmatprep.subr.mxu0 0.0
    %1801 = vmatpush1.msra.mxu0 0.0
    %1802 = vmatprep.subr.mxu0 0.0
    %1803 = vmatpush1.msra.mxu0 0.0
    %1804 = vmatprep.subr.mxu0 0.0
    %1805 = vmatpush1.msra.mxu0 0.0
    %1806 = vmatprep.subr.mxu0 0.0
    %1807 = vmatpush1.msra.mxu0 0.0
    %1808 = vmatprep.subr.mxu0 0.0
    %1809 = vmatpush1.msra.mxu0 0.0
    %1810 = vmatprep.subr.mxu0 0.0
    %1811 = vmatpush1.msra.mxu0 0.0
    %1812 = vmatprep.subr.mxu0 0.0
    %1813 = vmatpush1.msra.mxu0 0.0
    %1814 = vmatprep.subr.mxu0 0.0
    %1815 = vmatpush1.msra.mxu0 0.0
    %1816 = vmatprep.subr.mxu0 0.0
    %1817 = vmatpush1.msra.mxu0 0.0
    %1818 = vmatprep.subr.mxu0 0.0
    %1819 = vmatpush1.msra.mxu0 0.0
    %1820 = vmatprep.subr.mxu0 0.0
    %1821 = vmatpush1.msra.mxu0 0.0
    %1822 = vmatprep.mubr.f32.mxu0 0.0
    %1823 = vmatmul.mubr.f32.gmra.mrb[0].mxu0 %v1685
    %v1824 = vpop.f32.mrb[0].mxu0
    %v1825 = vadd.f32 0.0, %v1824
    %v1826 = vpop.f32.mrb[0].mxu0
    %1827 = vdwg.mxu0
    %v1828 = vadd.f32 %v1608, %v1754
    %v1829 = vadd.f32 %v1610, %v1756
    %v1830 = vadd.f32 %v1679, %v1825
    %v1831 = vxor.u32 %v1828, 2147483648
    %v1832 = vxor.u32 %v1829, 2147483648
    %v1833 = vxor.u32 %v1830, 2147483648
    %v1834 = vmul.f32 %v1831, 1.442695
    %v1835 = vpow.pop %v1834
    %v1836 = vmul.f32 %v1832, 1.442695
    %v1837 = vpow.pop %v1836
    %v1838 = vmul.f32 %v1833, 1.442695
    %v1839 = vpow.pop %v1838
    %v1840 = vadd.f32 %v1835, 1.0
    %v1841 = vadd.f32 %v1837, 1.0
    %v1842 = vadd.f32 %v1839, 1.0
    %v1843 = vrcp.pop %v1840
    %v1844 = vmul.f32 1.0, %v1843
    %v1845 = vrcp.pop %v1841
    %v1846 = vmul.f32 1.0, %v1845
    %v1847 = vrcp.pop %v1842
    %v1848 = vmul.f32 1.0, %v1847
    %v1849 = vmul.f32 %v1846, 2.0
    %v1850 = vmul.f32 %v1848, 2.0
    %v1851 = vsub.f32 %v1849, 1.0
    %v1852 = vsub.f32 %v1850, 1.0
    %v1853 = vmul.f32 %v1844, %v1523
    %v1854 = vmul.f32 %v1846, %v1524
    %1857 = vrot.lane.b32.xlu0 %v1851, 64
    %v1858 = vpop.permute.xlu0 %1857
    %1859 = vrot.lane.b32.xlu0 %v1852, 64
    %v1860 = vpop.permute.xlu0 %1859
    %v1861 = vsel %vm443, %v1858, %v1860
    %v1863 = vmul.f32 %v1844, %v1861
    %1865 = vrot.lane.b32.xlu0 %v1863, 96
    %v1866 = vpop.permute.xlu0 %1865
    %v1868 = vadd.f32 %v1853, %v1866
    %v1869 = vadd.f32 %v1854, %v1866
    %v1870 = vtanh.pop %v1868
    %v1871 = vtanh.pop %v1869
    %1874 = vrot.lane.b32.xlu0 %v1870, 64
    %v1875 = vpop.permute.xlu0 %1874
    %1876 = vrot.lane.b32.xlu0 %v1871, 64
    %v1877 = vpop.permute.xlu0 %1876
    %v1878 = vsel %vm443, %v1875, %v1877
    %v1880 = vmul.f32 %v1848, %v1878
    %1882 = vrot.lane.b32.xlu0 %v1880, 96
    %v1883 = vpop.permute.xlu0 %1882
    %v1884 = vsel %vm110, %v1883, 0
    %1886 = vmatprep.subr.mxu0 %v58
    %1887 = vmatpush1.msra.mxu0 %v57
    %1888 = vmatprep.subr.mxu0 %v61
    %1889 = vmatpush1.msra.mxu0 %v60
    %1890 = vmatprep.subr.mxu0 %v64
    %1891 = vmatpush1.msra.mxu0 %v63
    %1892 = vmatprep.subr.mxu0 %v67
    %1893 = vmatpush1.msra.mxu0 %v66
    %1894 = vmatprep.subr.mxu0 %v70
    %1895 = vmatpush1.msra.mxu0 %v69
    %1896 = vmatprep.subr.mxu0 %v73
    %1897 = vmatpush1.msra.mxu0 %v72
    %1898 = vmatprep.subr.mxu0 %v76
    %1899 = vmatpush1.msra.mxu0 %v75
    %1900 = vmatprep.subr.mxu0 %v79
    %1901 = vmatpush1.msra.mxu0 %v78
    %1902 = vmatprep.subr.mxu0 %v82
    %1903 = vmatpush1.msra.mxu0 %v81
    %1904 = vmatprep.subr.mxu0 %v85
    %1905 = vmatpush1.msra.mxu0 %v84
    %1906 = vmatprep.subr.mxu0 %v88
    %1907 = vmatpush1.msra.mxu0 %v87
    %1908 = vmatprep.subr.mxu0 %v91
    %1909 = vmatpush1.msra.mxu0 %v90
    %1910 = vmatprep.subr.mxu0 0.0
    %1911 = vmatpush1.msra.mxu0 0.0
    %1912 = vmatprep.subr.mxu0 0.0
    %1913 = vmatpush1.msra.mxu0 0.0
    %1914 = vmatprep.subr.mxu0 0.0
    %1915 = vmatpush1.msra.mxu0 0.0
    %1916 = vmatprep.subr.mxu0 0.0
    %1917 = vmatpush1.msra.mxu0 0.0
    %1918 = vmatprep.subr.mxu0 0.0
    %1919 = vmatpush1.msra.mxu0 0.0
    %1920 = vmatprep.subr.mxu0 0.0
    %1921 = vmatpush1.msra.mxu0 0.0
    %1922 = vmatprep.subr.mxu0 0.0
    %1923 = vmatpush1.msra.mxu0 0.0
    %1924 = vmatprep.subr.mxu0 0.0
    %1925 = vmatpush1.msra.mxu0 0.0
    %1926 = vmatprep.subr.mxu0 0.0
    %1927 = vmatpush1.msra.mxu0 0.0
    %1928 = vmatprep.subr.mxu0 0.0
    %1929 = vmatpush1.msra.mxu0 0.0
    %1930 = vmatprep.subr.mxu0 0.0
    %1931 = vmatpush1.msra.mxu0 0.0
    %1932 = vmatprep.subr.mxu0 0.0
    %1933 = vmatpush1.msra.mxu0 0.0
    %1934 = vmatprep.subr.mxu0 0.0
    %1935 = vmatpush1.msra.mxu0 0.0
    %1936 = vmatprep.subr.mxu0 0.0
    %1937 = vmatpush1.msra.mxu0 0.0
    %1938 = vmatprep.subr.mxu0 0.0
    %1939 = vmatpush1.msra.mxu0 0.0
    %1940 = vmatprep.subr.mxu0 0.0
    %1941 = vmatpush1.msra.mxu0 0.0
    %1942 = vmatprep.subr.mxu0 0.0
    %1943 = vmatpush1.msra.mxu0 0.0
    %1944 = vmatprep.subr.mxu0 0.0
    %1945 = vmatpush1.msra.mxu0 0.0
    %1946 = vmatprep.subr.mxu0 0.0
    %1947 = vmatpush1.msra.mxu0 0.0
    %1948 = vmatprep.subr.mxu0 0.0
    %1949 = vmatpush1.msra.mxu0 0.0
    %1950 = vmatprep.mubr.f32.mxu0 0.0
    %1951 = vmatmul.mubr.f32.gmra.mrb[0].mxu0 %v1884
    %v1952 = vpop.f32.mrb[0].mxu0
    %v1953 = vadd.f32 %v98, %v1952
    %v1954 = vpop.f32.mrb[0].mxu0
    %v1955 = vadd.f32 %v102, %v1954
    %1956 = vdwg.mxu0
    %1957 = vmatprep.subr.mxu0 0.0
    %1958 = vmatpush1.msra.mxu0 %v59
    %1959 = vmatprep.subr.mxu0 0.0
    %1960 = vmatpush1.msra.mxu0 %v62
    %1961 = vmatprep.subr.mxu0 0.0
    %1962 = vmatpush1.msra.mxu0 %v65
    %1963 = vmatprep.subr.mxu0 0.0
    %1964 = vmatpush1.msra.mxu0 %v68
    %1965 = vmatprep.subr.mxu0 0.0
    %1966 = vmatpush1.msra.mxu0 %v71
    %1967 = vmatprep.subr.mxu0 0.0
    %1968 = vmatpush1.msra.mxu0 %v74
    %1969 = vmatprep.subr.mxu0 0.0
    %1970 = vmatpush1.msra.mxu0 %v77
    %1971 = vmatprep.subr.mxu0 0.0
    %1972 = vmatpush1.msra.mxu0 %v80
    %1973 = vmatprep.subr.mxu0 0.0
    %1974 = vmatpush1.msra.mxu0 %v83
    %1975 = vmatprep.subr.mxu0 0.0
    %1976 = vmatpush1.msra.mxu0 %v86
    %1977 = vmatprep.subr.mxu0 0.0
    %1978 = vmatpush1.msra.mxu0 %v89
    %1979 = vmatprep.subr.mxu0 0.0
    %1980 = vmatpush1.msra.mxu0 %v92
    %1981 = vmatprep.subr.mxu0 0.0
    %1982 = vmatpush1.msra.mxu0 0.0
    %1983 = vmatprep.subr.mxu0 0.0
    %1984 = vmatpush1.msra.mxu0 0.0
    %1985 = vmatprep.subr.mxu0 0.0
    %1986 = vmatpush1.msra.mxu0 0.0
    %1987 = vmatprep.subr.mxu0 0.0
    %1988 = vmatpush1.msra.mxu0 0.0
    %1989 = vmatprep.subr.mxu0 0.0
    %1990 = vmatpush1.msra.mxu0 0.0
    %1991 = vmatprep.subr.mxu0 0.0
    %1992 = vmatpush1.msra.mxu0 0.0
    %1993 = vmatprep.subr.mxu0 0.0
    %1994 = vmatpush1.msra.mxu0 0.0
    %1995 = vmatprep.subr.mxu0 0.0
    %1996 = vmatpush1.msra.mxu0 0.0
    %1997 = vmatprep.subr.mxu0 0.0
    %1998 = vmatpush1.msra.mxu0 0.0
    %1999 = vmatprep.subr.mxu0 0.0
    %2000 = vmatpush1.msra.mxu0 0.0
    %2001 = vmatprep.subr.mxu0 0.0
    %2002 = vmatpush1.msra.mxu0 0.0
    %2003 = vmatprep.subr.mxu0 0.0
    %2004 = vmatpush1.msra.mxu0 0.0
    %2005 = vmatprep.subr.mxu0 0.0
    %2006 = vmatpush1.msra.mxu0 0.0
    %2007 = vmatprep.subr.mxu0 0.0
    %2008 = vmatpush1.msra.mxu0 0.0
    %2009 = vmatprep.subr.mxu0 0.0
    %2010 = vmatpush1.msra.mxu0 0.0
    %2011 = vmatprep.subr.mxu0 0.0
    %2012 = vmatpush1.msra.mxu0 0.0
    %2013 = vmatprep.subr.mxu0 0.0
    %2014 = vmatpush1.msra.mxu0 0.0
    %2015 = vmatprep.subr.mxu0 0.0
    %2016 = vmatpush1.msra.mxu0 0.0
    %2017 = vmatprep.subr.mxu0 0.0
    %2018 = vmatpush1.msra.mxu0 0.0
    %2019 = vmatprep.subr.mxu0 0.0
    %2020 = vmatpush1.msra.mxu0 0.0
    %2021 = vmatprep.mubr.f32.mxu0 0.0
    %2022 = vmatmul.mubr.f32.gmra.mrb[0].mxu0 %v1884
    %v2023 = vpop.f32.mrb[0].mxu0
    %v2024 = vadd.f32 %v106, %v2023
    %v2025 = vpop.f32.mrb[0].mxu0
    %2026 = vdwg.mxu0
    %v2027 = vrot.slane %v53, 5
    %v2028 = vrot.slane %v54, 4
    %v2029 = vsel %vm264, %v2028, %v2027
    %v2030 = vsel %vm266, %v2029, 0
    %2032 = vmatprep.subr.mxu0 %v256
    %2033 = vmatpush1.msra.mxu0 %v255
    %2034 = vmatprep.subr.mxu0 %v259
    %2035 = vmatpush1.msra.mxu0 %v258
    %2036 = vmatprep.subr.mxu0 0.0
    %2037 = vmatpush1.msra.mxu0 0.0
    %2038 = vmatprep.subr.mxu0 0.0
    %2039 = vmatpush1.msra.mxu0 0.0
    %2040 = vmatprep.subr.mxu0 0.0
    %2041 = vmatpush1.msra.mxu0 0.0
    %2042 = vmatprep.subr.mxu0 0.0
    %2043 = vmatpush1.msra.mxu0 0.0
    %2044 = vmatprep.subr.mxu0 0.0
    %2045 = vmatpush1.msra.mxu0 0.0
    %2046 = vmatprep.subr.mxu0 0.0
    %2047 = vmatpush1.msra.mxu0 0.0
    %2048 = vmatprep.subr.mxu0 0.0
    %2049 = vmatpush1.msra.mxu0 0.0
    %2050 = vmatprep.subr.mxu0 0.0
    %2051 = vmatpush1.msra.mxu0 0.0
    %2052 = vmatprep.subr.mxu0 0.0
    %2053 = vmatpush1.msra.mxu0 0.0
    %2054 = vmatprep.subr.mxu0 0.0
    %2055 = vmatpush1.msra.mxu0 0.0
    %2056 = vmatprep.subr.mxu0 0.0
    %2057 = vmatpush1.msra.mxu0 0.0
    %2058 = vmatprep.subr.mxu0 0.0
    %2059 = vmatpush1.msra.mxu0 0.0
    %2060 = vmatprep.subr.mxu0 0.0
    %2061 = vmatpush1.msra.mxu0 0.0
    %2062 = vmatprep.subr.mxu0 0.0
    %2063 = vmatpush1.msra.mxu0 0.0
    %2064 = vmatprep.subr.mxu0 0.0
    %2065 = vmatpush1.msra.mxu0 0.0
    %2066 = vmatprep.subr.mxu0 0.0
    %2067 = vmatpush1.msra.mxu0 0.0
    %2068 = vmatprep.subr.mxu0 0.0
    %2069 = vmatpush1.msra.mxu0 0.0
    %2070 = vmatprep.subr.mxu0 0.0
    %2071 = vmatpush1.msra.mxu0 0.0
    %2072 = vmatprep.subr.mxu0 0.0
    %2073 = vmatpush1.msra.mxu0 0.0
    %2074 = vmatprep.subr.mxu0 0.0
    %2075 = vmatpush1.msra.mxu0 0.0
    %2076 = vmatprep.subr.mxu0 0.0
    %2077 = vmatpush1.msra.mxu0 0.0
    %2078 = vmatprep.subr.mxu0 0.0
    %2079 = vmatpush1.msra.mxu0 0.0
    %2080 = vmatprep.subr.mxu0 0.0
    %2081 = vmatpush1.msra.mxu0 0.0
    %2082 = vmatprep.subr.mxu0 0.0
    %2083 = vmatpush1.msra.mxu0 0.0
    %2084 = vmatprep.subr.mxu0 0.0
    %2085 = vmatpush1.msra.mxu0 0.0
    %2086 = vmatprep.subr.mxu0 0.0
    %2087 = vmatpush1.msra.mxu0 0.0
    %2088 = vmatprep.subr.mxu0 0.0
    %2089 = vmatpush1.msra.mxu0 0.0
    %2090 = vmatprep.subr.mxu0 0.0
    %2091 = vmatpush1.msra.mxu0 0.0
    %2092 = vmatprep.subr.mxu0 0.0
    %2093 = vmatpush1.msra.mxu0 0.0
    %2094 = vmatprep.subr.mxu0 0.0
    %2095 = vmatpush1.msra.mxu0 0.0
    %2096 = vmatprep.mubr.f32.mxu0 0.0
    %2097 = vmatmul.mubr.f32.gmra.mrb[0].mxu0 %v2030
    %v2098 = vpop.f32.mrb[0].mxu0
    %v2099 = vadd.f32 0.0, %v2098
    %v2100 = vpop.f32.mrb[0].mxu0
    %v2101 = vadd.f32 0.0, %v2100
    %2102 = vdwg.mxu0
    %2103 = vmatprep.subr.mxu0 0.0
    %2104 = vmatpush1.msra.mxu0 %v257
    %2105 = vmatprep.subr.mxu0 0.0
    %2106 = vmatpush1.msra.mxu0 %v260
    %2107 = vmatprep.subr.mxu0 0.0
    %2108 = vmatpush1.msra.mxu0 0.0
    %2109 = vmatprep.subr.mxu0 0.0
    %2110 = vmatpush1.msra.mxu0 0.0
    %2111 = vmatprep.subr.mxu0 0.0
    %2112 = vmatpush1.msra.mxu0 0.0
    %2113 = vmatprep.subr.mxu0 0.0
    %2114 = vmatpush1.msra.mxu0 0.0
    %2115 = vmatprep.subr.mxu0 0.0
    %2116 = vmatpush1.msra.mxu0 0.0
    %2117 = vmatprep.subr.mxu0 0.0
    %2118 = vmatpush1.msra.mxu0 0.0
    %2119 = vmatprep.subr.mxu0 0.0
    %2120 = vmatpush1.msra.mxu0 0.0
    %2121 = vmatprep.subr.mxu0 0.0
    %2122 = vmatpush1.msra.mxu0 0.0
    %2123 = vmatprep.subr.mxu0 0.0
    %2124 = vmatpush1.msra.mxu0 0.0
    %2125 = vmatprep.subr.mxu0 0.0
    %2126 = vmatpush1.msra.mxu0 0.0
    %2127 = vmatprep.subr.mxu0 0.0
    %2128 = vmatpush1.msra.mxu0 0.0
    %2129 = vmatprep.subr.mxu0 0.0
    %2130 = vmatpush1.msra.mxu0 0.0
    %2131 = vmatprep.subr.mxu0 0.0
    %2132 = vmatpush1.msra.mxu0 0.0
    %2133 = vmatprep.subr.mxu0 0.0
    %2134 = vmatpush1.msra.mxu0 0.0
    %2135 = vmatprep.subr.mxu0 0.0
    %2136 = vmatpush1.msra.mxu0 0.0
    %2137 = vmatprep.subr.mxu0 0.0
    %2138 = vmatpush1.msra.mxu0 0.0
    %2139 = vmatprep.subr.mxu0 0.0
    %2140 = vmatpush1.msra.mxu0 0.0
    %2141 = vmatprep.subr.mxu0 0.0
    %2142 = vmatpush1.msra.mxu0 0.0
    %2143 = vmatprep.subr.mxu0 0.0
    %2144 = vmatpush1.msra.mxu0 0.0
    %2145 = vmatprep.subr.mxu0 0.0
    %2146 = vmatpush1.msra.mxu0 0.0
    %2147 = vmatprep.subr.mxu0 0.0
    %2148 = vmatpush1.msra.mxu0 0.0
    %2149 = vmatprep.subr.mxu0 0.0
    %2150 = vmatpush1.msra.mxu0 0.0
    %2151 = vmatprep.subr.mxu0 0.0
    %2152 = vmatpush1.msra.mxu0 0.0
    %2153 = vmatprep.subr.mxu0 0.0
    %2154 = vmatpush1.msra.mxu0 0.0
    %2155 = vmatprep.subr.mxu0 0.0
    %2156 = vmatpush1.msra.mxu0 0.0
    %2157 = vmatprep.subr.mxu0 0.0
    %2158 = vmatpush1.msra.mxu0 0.0
    %2159 = vmatprep.subr.mxu0 0.0
    %2160 = vmatpush1.msra.mxu0 0.0
    %2161 = vmatprep.subr.mxu0 0.0
    %2162 = vmatpush1.msra.mxu0 0.0
    %2163 = vmatprep.subr.mxu0 0.0
    %2164 = vmatpush1.msra.mxu0 0.0
    %2165 = vmatprep.subr.mxu0 0.0
    %2166 = vmatpush1.msra.mxu0 0.0
    %2167 = vmatprep.mubr.f32.mxu0 0.0
    %2168 = vmatmul.mubr.f32.gmra.mrb[0].mxu0 %v2030
    %v2169 = vpop.f32.mrb[0].mxu0
    %v2170 = vadd.f32 0.0, %v2169
    %v2171 = vpop.f32.mrb[0].mxu0
    %2172 = vdwg.mxu0
    %v2173 = vadd.f32 %v1953, %v2099
    %v2174 = vadd.f32 %v1955, %v2101
    %v2175 = vadd.f32 %v2024, %v2170
    %v2176 = vxor.u32 %v2173, 2147483648
    %v2177 = vxor.u32 %v2174, 2147483648
    %v2178 = vxor.u32 %v2175, 2147483648
    %v2179 = vmul.f32 %v2176, 1.442695
    %v2180 = vpow.pop %v2179
    %v2181 = vmul.f32 %v2177, 1.442695
    %v2182 = vpow.pop %v2181
    %v2183 = vmul.f32 %v2178, 1.442695
    %v2184 = vpow.pop %v2183
    %v2185 = vadd.f32 %v2180, 1.0
    %v2186 = vadd.f32 %v2182, 1.0
    %v2187 = vadd.f32 %v2184, 1.0
    %v2188 = vrcp.pop %v2185
    %v2189 = vmul.f32 1.0, %v2188
    %v2190 = vrcp.pop %v2186
    %v2191 = vmul.f32 1.0, %v2190
    %v2192 = vrcp.pop %v2187
    %v2193 = vmul.f32 1.0, %v2192
    %v2194 = vmul.f32 %v2191, 2.0
    %v2195 = vmul.f32 %v2193, 2.0
    %v2196 = vsub.f32 %v2194, 1.0
    %v2197 = vsub.f32 %v2195, 1.0
    %v2198 = vmul.f32 %v2189, %v1868
    %v2199 = vmul.f32 %v2191, %v1869
    %2202 = vrot.lane.b32.xlu0 %v2196, 64
    %v2203 = vpop.permute.xlu0 %2202
    %2204 = vrot.lane.b32.xlu0 %v2197, 64
    %v2205 = vpop.permute.xlu0 %2204
    %v2206 = vsel %vm443, %v2203, %v2205
    %v2208 = vmul.f32 %v2189, %v2206
    %2210 = vrot.lane.b32.xlu0 %v2208, 96
    %v2211 = vpop.permute.xlu0 %2210
    %v2213 = vadd.f32 %v2198, %v2211
    %v2214 = vadd.f32 %v2199, %v2211
    %v2215 = vtanh.pop %v2213
    %v2216 = vtanh.pop %v2214
    %2219 = vrot.lane.b32.xlu0 %v2215, 64
    %v2220 = vpop.permute.xlu0 %2219
    %2221 = vrot.lane.b32.xlu0 %v2216, 64
    %v2222 = vpop.permute.xlu0 %2221
    %v2223 = vsel %vm443, %v2220, %v2222
    %v2225 = vmul.f32 %v2193, %v2223
    %2227 = vrot.lane.b32.xlu0 %v2225, 96
    %v2228 = vpop.permute.xlu0 %2227
    %v2229 = vsel %vm110, %v2228, 0
    %2231 = vmatprep.subr.mxu0 %v58
    %2232 = vmatpush1.msra.mxu0 %v57
    %2233 = vmatprep.subr.mxu0 %v61
    %2234 = vmatpush1.msra.mxu0 %v60
    %2235 = vmatprep.subr.mxu0 %v64
    %2236 = vmatpush1.msra.mxu0 %v63
    %2237 = vmatprep.subr.mxu0 %v67
    %2238 = vmatpush1.msra.mxu0 %v66
    %2239 = vmatprep.subr.mxu0 %v70
    %2240 = vmatpush1.msra.mxu0 %v69
    %2241 = vmatprep.subr.mxu0 %v73
    %2242 = vmatpush1.msra.mxu0 %v72
    %2243 = vmatprep.subr.mxu0 %v76
    %2244 = vmatpush1.msra.mxu0 %v75
    %2245 = vmatprep.subr.mxu0 %v79
    %2246 = vmatpush1.msra.mxu0 %v78
    %2247 = vmatprep.subr.mxu0 %v82
    %2248 = vmatpush1.msra.mxu0 %v81
    %2249 = vmatprep.subr.mxu0 %v85
    %2250 = vmatpush1.msra.mxu0 %v84
    %2251 = vmatprep.subr.mxu0 %v88
    %2252 = vmatpush1.msra.mxu0 %v87
    %2253 = vmatprep.subr.mxu0 %v91
    %2254 = vmatpush1.msra.mxu0 %v90
    %2255 = vmatprep.subr.mxu0 0.0
    %2256 = vmatpush1.msra.mxu0 0.0
    %2257 = vmatprep.subr.mxu0 0.0
    %2258 = vmatpush1.msra.mxu0 0.0
    %2259 = vmatprep.subr.mxu0 0.0
    %2260 = vmatpush1.msra.mxu0 0.0
    %2261 = vmatprep.subr.mxu0 0.0
    %2262 = vmatpush1.msra.mxu0 0.0
    %2263 = vmatprep.subr.mxu0 0.0
    %2264 = vmatpush1.msra.mxu0 0.0
    %2265 = vmatprep.subr.mxu0 0.0
    %2266 = vmatpush1.msra.mxu0 0.0
    %2267 = vmatprep.subr.mxu0 0.0
    %2268 = vmatpush1.msra.mxu0 0.0
    %2269 = vmatprep.subr.mxu0 0.0
    %2270 = vmatpush1.msra.mxu0 0.0
    %2271 = vmatprep.subr.mxu0 0.0
    %2272 = vmatpush1.msra.mxu0 0.0
    %2273 = vmatprep.subr.mxu0 0.0
    %2274 = vmatpush1.msra.mxu0 0.0
    %2275 = vmatprep.subr.mxu0 0.0
    %2276 = vmatpush1.msra.mxu0 0.0
    %2277 = vmatprep.subr.mxu0 0.0
    %2278 = vmatpush1.msra.mxu0 0.0
    %2279 = vmatprep.subr.mxu0 0.0
    %2280 = vmatpush1.msra.mxu0 0.0
    %2281 = vmatprep.subr.mxu0 0.0
    %2282 = vmatpush1.msra.mxu0 0.0
    %2283 = vmatprep.subr.mxu0 0.0
    %2284 = vmatpush1.msra.mxu0 0.0
    %2285 = vmatprep.subr.mxu0 0.0
    %2286 = vmatpush1.msra.mxu0 0.0
    %2287 = vmatprep.subr.mxu0 0.0
    %2288 = vmatpush1.msra.mxu0 0.0
    %2289 = vmatprep.subr.mxu0 0.0
    %2290 = vmatpush1.msra.mxu0 0.0
    %2291 = vmatprep.subr.mxu0 0.0
    %2292 = vmatpush1.msra.mxu0 0.0
    %2293 = vmatprep.subr.mxu0 0.0
    %2294 = vmatpush1.msra.mxu0 0.0
    %2295 = vmatprep.mubr.f32.mxu0 0.0
    %2296 = vmatmul.mubr.f32.gmra.mrb[0].mxu0 %v2229
    %v2297 = vpop.f32.mrb[0].mxu0
    %v2298 = vadd.f32 %v98, %v2297
    %v2299 = vpop.f32.mrb[0].mxu0
    %v2300 = vadd.f32 %v102, %v2299
    %2301 = vdwg.mxu0
    %2302 = vmatprep.subr.mxu0 0.0
    %2303 = vmatpush1.msra.mxu0 %v59
    %2304 = vmatprep.subr.mxu0 0.0
    %2305 = vmatpush1.msra.mxu0 %v62
    %2306 = vmatprep.subr.mxu0 0.0
    %2307 = vmatpush1.msra.mxu0 %v65
    %2308 = vmatprep.subr.mxu0 0.0
    %2309 = vmatpush1.msra.mxu0 %v68
    %2310 = vmatprep.subr.mxu0 0.0
    %2311 = vmatpush1.msra.mxu0 %v71
    %2312 = vmatprep.subr.mxu0 0.0
    %2313 = vmatpush1.msra.mxu0 %v74
    %2314 = vmatprep.subr.mxu0 0.0
    %2315 = vmatpush1.msra.mxu0 %v77
    %2316 = vmatprep.subr.mxu0 0.0
    %2317 = vmatpush1.msra.mxu0 %v80
    %2318 = vmatprep.subr.mxu0 0.0
    %2319 = vmatpush1.msra.mxu0 %v83
    %2320 = vmatprep.subr.mxu0 0.0
    %2321 = vmatpush1.msra.mxu0 %v86
    %2322 = vmatprep.subr.mxu0 0.0
    %2323 = vmatpush1.msra.mxu0 %v89
    %2324 = vmatprep.subr.mxu0 0.0
    %2325 = vmatpush1.msra.mxu0 %v92
    %2326 = vmatprep.subr.mxu0 0.0
    %2327 = vmatpush1.msra.mxu0 0.0
    %2328 = vmatprep.subr.mxu0 0.0
    %2329 = vmatpush1.msra.mxu0 0.0
    %2330 = vmatprep.subr.mxu0 0.0
    %2331 = vmatpush1.msra.mxu0 0.0
    %2332 = vmatprep.subr.mxu0 0.0
    %2333 = vmatpush1.msra.mxu0 0.0
    %2334 = vmatprep.subr.mxu0 0.0
    %2335 = vmatpush1.msra.mxu0 0.0
    %2336 = vmatprep.subr.mxu0 0.0
    %2337 = vmatpush1.msra.mxu0 0.0
    %2338 = vmatprep.subr.mxu0 0.0
    %2339 = vmatpush1.msra.mxu0 0.0
    %2340 = vmatprep.subr.mxu0 0.0
    %2341 = vmatpush1.msra.mxu0 0.0
    %2342 = vmatprep.subr.mxu0 0.0
    %2343 = vmatpush1.msra.mxu0 0.0
    %2344 = vmatprep.subr.mxu0 0.0
    %2345 = vmatpush1.msra.mxu0 0.0
    %2346 = vmatprep.subr.mxu0 0.0
    %2347 = vmatpush1.msra.mxu0 0.0
    %2348 = vmatprep.subr.mxu0 0.0
    %2349 = vmatpush1.msra.mxu0 0.0
    %2350 = vmatprep.subr.mxu0 0.0
    %2351 = vmatpush1.msra.mxu0 0.0
    %2352 = vmatprep.subr.mxu0 0.0
    %2353 = vmatpush1.msra.mxu0 0.0
    %2354 = vmatprep.subr.mxu0 0.0
    %2355 = vmatpush1.msra.mxu0 0.0
    %2356 = vmatprep.subr.mxu0 0.0
    %2357 = vmatpush1.msra.mxu0 0.0
    %2358 = vmatprep.subr.mxu0 0.0
    %2359 = vmatpush1.msra.mxu0 0.0
    %2360 = vmatprep.subr.mxu0 0.0
    %2361 = vmatpush1.msra.mxu0 0.0
    %2362 = vmatprep.subr.mxu0 0.0
    %2363 = vmatpush1.msra.mxu0 0.0
    %2364 = vmatprep.subr.mxu0 0.0
    %2365 = vmatpush1.msra.mxu0 0.0
    %2366 = vmatprep.mubr.f32.mxu0 0.0
    %2367 = vmatmul.mubr.f32.gmra.mrb[0].mxu0 %v2229
    %v2368 = vpop.f32.mrb[0].mxu0
    %v2369 = vadd.f32 %v106, %v2368
    %v2370 = vpop.f32.mrb[0].mxu0
    %2371 = vdwg.mxu0
    %v2372 = vrot.slane %v53, 6
    %v2373 = vrot.slane %v54, 5
    %v2374 = vsel %vm264, %v2373, %v2372
    %v2375 = vsel %vm266, %v2374, 0
    %2377 = vmatprep.subr.mxu0 %v256
    %2378 = vmatpush1.msra.mxu0 %v255
    %2379 = vmatprep.subr.mxu0 %v259
    %2380 = vmatpush1.msra.mxu0 %v258
    %2381 = vmatprep.subr.mxu0 0.0
    %2382 = vmatpush1.msra.mxu0 0.0
    %2383 = vmatprep.subr.mxu0 0.0
    %2384 = vmatpush1.msra.mxu0 0.0
    %2385 = vmatprep.subr.mxu0 0.0
    %2386 = vmatpush1.msra.mxu0 0.0
    %2387 = vmatprep.subr.mxu0 0.0
    %2388 = vmatpush1.msra.mxu0 0.0
    %2389 = vmatprep.subr.mxu0 0.0
    %2390 = vmatpush1.msra.mxu0 0.0
    %2391 = vmatprep.subr.mxu0 0.0
    %2392 = vmatpush1.msra.mxu0 0.0
    %2393 = vmatprep.subr.mxu0 0.0
    %2394 = vmatpush1.msra.mxu0 0.0
    %2395 = vmatprep.subr.mxu0 0.0
    %2396 = vmatpush1.msra.mxu0 0.0
    %2397 = vmatprep.subr.mxu0 0.0
    %2398 = vmatpush1.msra.mxu0 0.0
    %2399 = vmatprep.subr.mxu0 0.0
    %2400 = vmatpush1.msra.mxu0 0.0
    %2401 = vmatprep.subr.mxu0 0.0
    %2402 = vmatpush1.msra.mxu0 0.0
    %2403 = vmatprep.subr.mxu0 0.0
    %2404 = vmatpush1.msra.mxu0 0.0
    %2405 = vmatprep.subr.mxu0 0.0
    %2406 = vmatpush1.msra.mxu0 0.0
    %2407 = vmatprep.subr.mxu0 0.0
    %2408 = vmatpush1.msra.mxu0 0.0
    %2409 = vmatprep.subr.mxu0 0.0
    %2410 = vmatpush1.msra.mxu0 0.0
    %2411 = vmatprep.subr.mxu0 0.0
    %2412 = vmatpush1.msra.mxu0 0.0
    %2413 = vmatprep.subr.mxu0 0.0
    %2414 = vmatpush1.msra.mxu0 0.0
    %2415 = vmatprep.subr.mxu0 0.0
    %2416 = vmatpush1.msra.mxu0 0.0
    %2417 = vmatprep.subr.mxu0 0.0
    %2418 = vmatpush1.msra.mxu0 0.0
    %2419 = vmatprep.subr.mxu0 0.0
    %2420 = vmatpush1.msra.mxu0 0.0
    %2421 = vmatprep.subr.mxu0 0.0
    %2422 = vmatpush1.msra.mxu0 0.0
    %2423 = vmatprep.subr.mxu0 0.0
    %2424 = vmatpush1.msra.mxu0 0.0
    %2425 = vmatprep.subr.mxu0 0.0
    %2426 = vmatpush1.msra.mxu0 0.0
    %2427 = vmatprep.subr.mxu0 0.0
    %2428 = vmatpush1.msra.mxu0 0.0
    %2429 = vmatprep.subr.mxu0 0.0
    %2430 = vmatpush1.msra.mxu0 0.0
    %2431 = vmatprep.subr.mxu0 0.0
    %2432 = vmatpush1.msra.mxu0 0.0
    %2433 = vmatprep.subr.mxu0 0.0
    %2434 = vmatpush1.msra.mxu0 0.0
    %2435 = vmatprep.subr.mxu0 0.0
    %2436 = vmatpush1.msra.mxu0 0.0
    %2437 = vmatprep.subr.mxu0 0.0
    %2438 = vmatpush1.msra.mxu0 0.0
    %2439 = vmatprep.subr.mxu0 0.0
    %2440 = vmatpush1.msra.mxu0 0.0
    %2441 = vmatprep.mubr.f32.mxu0 0.0
    %2442 = vmatmul.mubr.f32.gmra.mrb[0].mxu0 %v2375
    %v2443 = vpop.f32.mrb[0].mxu0
    %v2444 = vadd.f32 0.0, %v2443
    %v2445 = vpop.f32.mrb[0].mxu0
    %v2446 = vadd.f32 0.0, %v2445
    %2447 = vdwg.mxu0
    %2448 = vmatprep.subr.mxu0 0.0
    %2449 = vmatpush1.msra.mxu0 %v257
    %2450 = vmatprep.subr.mxu0 0.0
    %2451 = vmatpush1.msra.mxu0 %v260
    %2452 = vmatprep.subr.mxu0 0.0
    %2453 = vmatpush1.msra.mxu0 0.0
    %2454 = vmatprep.subr.mxu0 0.0
    %2455 = vmatpush1.msra.mxu0 0.0
    %2456 = vmatprep.subr.mxu0 0.0
    %2457 = vmatpush1.msra.mxu0 0.0
    %2458 = vmatprep.subr.mxu0 0.0
    %2459 = vmatpush1.msra.mxu0 0.0
    %2460 = vmatprep.subr.mxu0 0.0
    %2461 = vmatpush1.msra.mxu0 0.0
    %2462 = vmatprep.subr.mxu0 0.0
    %2463 = vmatpush1.msra.mxu0 0.0
    %2464 = vmatprep.subr.mxu0 0.0
    %2465 = vmatpush1.msra.mxu0 0.0
    %2466 = vmatprep.subr.mxu0 0.0
    %2467 = vmatpush1.msra.mxu0 0.0
    %2468 = vmatprep.subr.mxu0 0.0
    %2469 = vmatpush1.msra.mxu0 0.0
    %2470 = vmatprep.subr.mxu0 0.0
    %2471 = vmatpush1.msra.mxu0 0.0
    %2472 = vmatprep.subr.mxu0 0.0
    %2473 = vmatpush1.msra.mxu0 0.0
    %2474 = vmatprep.subr.mxu0 0.0
    %2475 = vmatpush1.msra.mxu0 0.0
    %2476 = vmatprep.subr.mxu0 0.0
    %2477 = vmatpush1.msra.mxu0 0.0
    %2478 = vmatprep.subr.mxu0 0.0
    %2479 = vmatpush1.msra.mxu0 0.0
    %2480 = vmatprep.subr.mxu0 0.0
    %2481 = vmatpush1.msra.mxu0 0.0
    %2482 = vmatprep.subr.mxu0 0.0
    %2483 = vmatpush1.msra.mxu0 0.0
    %2484 = vmatprep.subr.mxu0 0.0
    %2485 = vmatpush1.msra.mxu0 0.0
    %2486 = vmatprep.subr.mxu0 0.0
    %2487 = vmatpush1.msra.mxu0 0.0
    %2488 = vmatprep.subr.mxu0 0.0
    %2489 = vmatpush1.msra.mxu0 0.0
    %2490 = vmatprep.subr.mxu0 0.0
    %2491 = vmatpush1.msra.mxu0 0.0
    %2492 = vmatprep.subr.mxu0 0.0
    %2493 = vmatpush1.msra.mxu0 0.0
    %2494 = vmatprep.subr.mxu0 0.0
    %2495 = vmatpush1.msra.mxu0 0.0
    %2496 = vmatprep.subr.mxu0 0.0
    %2497 = vmatpush1.msra.mxu0 0.0
    %2498 = vmatprep.subr.mxu0 0.0
    %2499 = vmatpush1.msra.mxu0 0.0
    %2500 = vmatprep.subr.mxu0 0.0
    %2501 = vmatpush1.msra.mxu0 0.0
    %2502 = vmatprep.subr.mxu0 0.0
    %2503 = vmatpush1.msra.mxu0 0.0
    %2504 = vmatprep.subr.mxu0 0.0
    %2505 = vmatpush1.msra.mxu0 0.0
    %2506 = vmatprep.subr.mxu0 0.0
    %2507 = vmatpush1.msra.mxu0 0.0
    %2508 = vmatprep.subr.mxu0 0.0
    %2509 = vmatpush1.msra.mxu0 0.0
    %2510 = vmatprep.subr.mxu0 0.0
    %2511 = vmatpush1.msra.mxu0 0.0
    %2512 = vmatprep.mubr.f32.mxu0 0.0
    %2513 = vmatmul.mubr.f32.gmra.mrb[0].mxu0 %v2375
    %v2514 = vpop.f32.mrb[0].mxu0
    %v2515 = vadd.f32 0.0, %v2514
    %v2516 = vpop.f32.mrb[0].mxu0
    %2517 = vdwg.mxu0
    %v2518 = vadd.f32 %v2298, %v2444
    %v2519 = vadd.f32 %v2300, %v2446
    %v2520 = vadd.f32 %v2369, %v2515
    %v2521 = vxor.u32 %v2518, 2147483648
    %v2522 = vxor.u32 %v2519, 2147483648
    %v2523 = vxor.u32 %v2520, 2147483648
    %v2524 = vmul.f32 %v2521, 1.442695
    %v2525 = vpow.pop %v2524
    %v2526 = vmul.f32 %v2522, 1.442695
    %v2527 = vpow.pop %v2526
    %v2528 = vmul.f32 %v2523, 1.442695
    %v2529 = vpow.pop %v2528
    %v2530 = vadd.f32 %v2525, 1.0
    %v2531 = vadd.f32 %v2527, 1.0
    %v2532 = vadd.f32 %v2529, 1.0
    %v2533 = vrcp.pop %v2530
    %v2534 = vmul.f32 1.0, %v2533
    %v2535 = vrcp.pop %v2531
    %v2536 = vmul.f32 1.0, %v2535
    %v2537 = vrcp.pop %v2532
    %v2538 = vmul.f32 1.0, %v2537
    %v2539 = vmul.f32 %v2536, 2.0
    %v2540 = vmul.f32 %v2538, 2.0
    %v2541 = vsub.f32 %v2539, 1.0
    %v2542 = vsub.f32 %v2540, 1.0
    %v2543 = vmul.f32 %v2534, %v2213
    %v2544 = vmul.f32 %v2536, %v2214
    %2547 = vrot.lane.b32.xlu0 %v2541, 64
    %v2548 = vpop.permute.xlu0 %2547
    %2549 = vrot.lane.b32.xlu0 %v2542, 64
    %v2550 = vpop.permute.xlu0 %2549
    %v2551 = vsel %vm443, %v2548, %v2550
    %v2553 = vmul.f32 %v2534, %v2551
    %2555 = vrot.lane.b32.xlu0 %v2553, 96
    %v2556 = vpop.permute.xlu0 %2555
    %v2558 = vadd.f32 %v2543, %v2556
    %v2559 = vadd.f32 %v2544, %v2556
    %v2560 = vtanh.pop %v2558
    %v2561 = vtanh.pop %v2559
    %2564 = vrot.lane.b32.xlu0 %v2560, 64
    %v2565 = vpop.permute.xlu0 %2564
    %2566 = vrot.lane.b32.xlu0 %v2561, 64
    %v2567 = vpop.permute.xlu0 %2566
    %v2568 = vsel %vm443, %v2565, %v2567
    %v2570 = vmul.f32 %v2538, %v2568
    %2572 = vrot.lane.b32.xlu0 %v2570, 96
    %v2573 = vpop.permute.xlu0 %2572
    %v2574 = vsel %vm110, %v2573, 0
    %2576 = vmatprep.subr.mxu0 %v58
    %2577 = vmatpush1.msra.mxu0 %v57
    %2578 = vmatprep.subr.mxu0 %v61
    %2579 = vmatpush1.msra.mxu0 %v60
    %2580 = vmatprep.subr.mxu0 %v64
    %2581 = vmatpush1.msra.mxu0 %v63
    %2582 = vmatprep.subr.mxu0 %v67
    %2583 = vmatpush1.msra.mxu0 %v66
    %2584 = vmatprep.subr.mxu0 %v70
    %2585 = vmatpush1.msra.mxu0 %v69
    %2586 = vmatprep.subr.mxu0 %v73
    %2587 = vmatpush1.msra.mxu0 %v72
    %2588 = vmatprep.subr.mxu0 %v76
    %2589 = vmatpush1.msra.mxu0 %v75
    %2590 = vmatprep.subr.mxu0 %v79
    %2591 = vmatpush1.msra.mxu0 %v78
    %2592 = vmatprep.subr.mxu0 %v82
    %2593 = vmatpush1.msra.mxu0 %v81
    %2594 = vmatprep.subr.mxu0 %v85
    %2595 = vmatpush1.msra.mxu0 %v84
    %2596 = vmatprep.subr.mxu0 %v88
    %2597 = vmatpush1.msra.mxu0 %v87
    %2598 = vmatprep.subr.mxu0 %v91
    %2599 = vmatpush1.msra.mxu0 %v90
    %2600 = vmatprep.subr.mxu0 0.0
    %2601 = vmatpush1.msra.mxu0 0.0
    %2602 = vmatprep.subr.mxu0 0.0
    %2603 = vmatpush1.msra.mxu0 0.0
    %2604 = vmatprep.subr.mxu0 0.0
    %2605 = vmatpush1.msra.mxu0 0.0
    %2606 = vmatprep.subr.mxu0 0.0
    %2607 = vmatpush1.msra.mxu0 0.0
    %2608 = vmatprep.subr.mxu0 0.0
    %2609 = vmatpush1.msra.mxu0 0.0
    %2610 = vmatprep.subr.mxu0 0.0
    %2611 = vmatpush1.msra.mxu0 0.0
    %2612 = vmatprep.subr.mxu0 0.0
    %2613 = vmatpush1.msra.mxu0 0.0
    %2614 = vmatprep.subr.mxu0 0.0
    %2615 = vmatpush1.msra.mxu0 0.0
    %2616 = vmatprep.subr.mxu0 0.0
    %2617 = vmatpush1.msra.mxu0 0.0
    %2618 = vmatprep.subr.mxu0 0.0
    %2619 = vmatpush1.msra.mxu0 0.0
    %2620 = vmatprep.subr.mxu0 0.0
    %2621 = vmatpush1.msra.mxu0 0.0
    %2622 = vmatprep.subr.mxu0 0.0
    %2623 = vmatpush1.msra.mxu0 0.0
    %2624 = vmatprep.subr.mxu0 0.0
    %2625 = vmatpush1.msra.mxu0 0.0
    %2626 = vmatprep.subr.mxu0 0.0
    %2627 = vmatpush1.msra.mxu0 0.0
    %2628 = vmatprep.subr.mxu0 0.0
    %2629 = vmatpush1.msra.mxu0 0.0
    %2630 = vmatprep.subr.mxu0 0.0
    %2631 = vmatpush1.msra.mxu0 0.0
    %2632 = vmatprep.subr.mxu0 0.0
    %2633 = vmatpush1.msra.mxu0 0.0
    %2634 = vmatprep.subr.mxu0 0.0
    %2635 = vmatpush1.msra.mxu0 0.0
    %2636 = vmatprep.subr.mxu0 0.0
    %2637 = vmatpush1.msra.mxu0 0.0
    %2638 = vmatprep.subr.mxu0 0.0
    %2639 = vmatpush1.msra.mxu0 0.0
    %2640 = vmatprep.mubr.f32.mxu0 0.0
    %2641 = vmatmul.mubr.f32.gmra.mrb[0].mxu0 %v2574
    %v2642 = vpop.f32.mrb[0].mxu0
    %v2643 = vadd.f32 %v98, %v2642
    %v2644 = vpop.f32.mrb[0].mxu0
    %v2645 = vadd.f32 %v102, %v2644
    %2646 = vdwg.mxu0
    %2647 = vmatprep.subr.mxu0 0.0
    %2648 = vmatpush1.msra.mxu0 %v59
    %2649 = vmatprep.subr.mxu0 0.0
    %2650 = vmatpush1.msra.mxu0 %v62
    %2651 = vmatprep.subr.mxu0 0.0
    %2652 = vmatpush1.msra.mxu0 %v65
    %2653 = vmatprep.subr.mxu0 0.0
    %2654 = vmatpush1.msra.mxu0 %v68
    %2655 = vmatprep.subr.mxu0 0.0
    %2656 = vmatpush1.msra.mxu0 %v71
    %2657 = vmatprep.subr.mxu0 0.0
    %2658 = vmatpush1.msra.mxu0 %v74
    %2659 = vmatprep.subr.mxu0 0.0
    %2660 = vmatpush1.msra.mxu0 %v77
    %2661 = vmatprep.subr.mxu0 0.0
    %2662 = vmatpush1.msra.mxu0 %v80
    %2663 = vmatprep.subr.mxu0 0.0
    %2664 = vmatpush1.msra.mxu0 %v83
    %2665 = vmatprep.subr.mxu0 0.0
    %2666 = vmatpush1.msra.mxu0 %v86
    %2667 = vmatprep.subr.mxu0 0.0
    %2668 = vmatpush1.msra.mxu0 %v89
    %2669 = vmatprep.subr.mxu0 0.0
    %2670 = vmatpush1.msra.mxu0 %v92
    %2671 = vmatprep.subr.mxu0 0.0
    %2672 = vmatpush1.msra.mxu0 0.0
    %2673 = vmatprep.subr.mxu0 0.0
    %2674 = vmatpush1.msra.mxu0 0.0
    %2675 = vmatprep.subr.mxu0 0.0
    %2676 = vmatpush1.msra.mxu0 0.0
    %2677 = vmatprep.subr.mxu0 0.0
    %2678 = vmatpush1.msra.mxu0 0.0
    %2679 = vmatprep.subr.mxu0 0.0
    %2680 = vmatpush1.msra.mxu0 0.0
    %2681 = vmatprep.subr.mxu0 0.0
    %2682 = vmatpush1.msra.mxu0 0.0
    %2683 = vmatprep.subr.mxu0 0.0
    %2684 = vmatpush1.msra.mxu0 0.0
    %2685 = vmatprep.subr.mxu0 0.0
    %2686 = vmatpush1.msra.mxu0 0.0
    %2687 = vmatprep.subr.mxu0 0.0
    %2688 = vmatpush1.msra.mxu0 0.0
    %2689 = vmatprep.subr.mxu0 0.0
    %2690 = vmatpush1.msra.mxu0 0.0
    %2691 = vmatprep.subr.mxu0 0.0
    %2692 = vmatpush1.msra.mxu0 0.0
    %2693 = vmatprep.subr.mxu0 0.0
    %2694 = vmatpush1.msra.mxu0 0.0
    %2695 = vmatprep.subr.mxu0 0.0
    %2696 = vmatpush1.msra.mxu0 0.0
    %2697 = vmatprep.subr.mxu0 0.0
    %2698 = vmatpush1.msra.mxu0 0.0
    %2699 = vmatprep.subr.mxu0 0.0
    %2700 = vmatpush1.msra.mxu0 0.0
    %2701 = vmatprep.subr.mxu0 0.0
    %2702 = vmatpush1.msra.mxu0 0.0
    %2703 = vmatprep.subr.mxu0 0.0
    %2704 = vmatpush1.msra.mxu0 0.0
    %2705 = vmatprep.subr.mxu0 0.0
    %2706 = vmatpush1.msra.mxu0 0.0
    %2707 = vmatprep.subr.mxu0 0.0
    %2708 = vmatpush1.msra.mxu0 0.0
    %2709 = vmatprep.subr.mxu0 0.0
    %2710 = vmatpush1.msra.mxu0 0.0
    %2711 = vmatprep.mubr.f32.mxu0 0.0
    %2712 = vmatmul.mubr.f32.gmra.mrb[0].mxu0 %v2574
    %v2713 = vpop.f32.mrb[0].mxu0
    %v2714 = vadd.f32 %v106, %v2713
    %v2715 = vpop.f32.mrb[0].mxu0
    %2716 = vdwg.mxu0
    %v2717 = vrot.slane %v53, 7
    %v2718 = vrot.slane %v54, 6
    %v2719 = vsel %vm264, %v2718, %v2717
    %v2720 = vsel %vm266, %v2719, 0
    %2722 = vmatprep.subr.mxu0 %v256
    %2723 = vmatpush1.msra.mxu0 %v255
    %2724 = vmatprep.subr.mxu0 %v259
    %2725 = vmatpush1.msra.mxu0 %v258
    %2726 = vmatprep.subr.mxu0 0.0
    %2727 = vmatpush1.msra.mxu0 0.0
    %2728 = vmatprep.subr.mxu0 0.0
    %2729 = vmatpush1.msra.mxu0 0.0
    %2730 = vmatprep.subr.mxu0 0.0
    %2731 = vmatpush1.msra.mxu0 0.0
    %2732 = vmatprep.subr.mxu0 0.0
    %2733 = vmatpush1.msra.mxu0 0.0
    %2734 = vmatprep.subr.mxu0 0.0
    %2735 = vmatpush1.msra.mxu0 0.0
    %2736 = vmatprep.subr.mxu0 0.0
    %2737 = vmatpush1.msra.mxu0 0.0
    %2738 = vmatprep.subr.mxu0 0.0
    %2739 = vmatpush1.msra.mxu0 0.0
    %2740 = vmatprep.subr.mxu0 0.0
    %2741 = vmatpush1.msra.mxu0 0.0
    %2742 = vmatprep.subr.mxu0 0.0
    %2743 = vmatpush1.msra.mxu0 0.0
    %2744 = vmatprep.subr.mxu0 0.0
    %2745 = vmatpush1.msra.mxu0 0.0
    %2746 = vmatprep.subr.mxu0 0.0
    %2747 = vmatpush1.msra.mxu0 0.0
    %2748 = vmatprep.subr.mxu0 0.0
    %2749 = vmatpush1.msra.mxu0 0.0
    %2750 = vmatprep.subr.mxu0 0.0
    %2751 = vmatpush1.msra.mxu0 0.0
    %2752 = vmatprep.subr.mxu0 0.0
    %2753 = vmatpush1.msra.mxu0 0.0
    %2754 = vmatprep.subr.mxu0 0.0
    %2755 = vmatpush1.msra.mxu0 0.0
    %2756 = vmatprep.subr.mxu0 0.0
    %2757 = vmatpush1.msra.mxu0 0.0
    %2758 = vmatprep.subr.mxu0 0.0
    %2759 = vmatpush1.msra.mxu0 0.0
    %2760 = vmatprep.subr.mxu0 0.0
    %2761 = vmatpush1.msra.mxu0 0.0
    %2762 = vmatprep.subr.mxu0 0.0
    %2763 = vmatpush1.msra.mxu0 0.0
    %2764 = vmatprep.subr.mxu0 0.0
    %2765 = vmatpush1.msra.mxu0 0.0
    %2766 = vmatprep.subr.mxu0 0.0
    %2767 = vmatpush1.msra.mxu0 0.0
    %2768 = vmatprep.subr.mxu0 0.0
    %2769 = vmatpush1.msra.mxu0 0.0
    %2770 = vmatprep.subr.mxu0 0.0
    %2771 = vmatpush1.msra.mxu0 0.0
    %2772 = vmatprep.subr.mxu0 0.0
    %2773 = vmatpush1.msra.mxu0 0.0
    %2774 = vmatprep.subr.mxu0 0.0
    %2775 = vmatpush1.msra.mxu0 0.0
    %2776 = vmatprep.subr.mxu0 0.0
    %2777 = vmatpush1.msra.mxu0 0.0
    %2778 = vmatprep.subr.mxu0 0.0
    %2779 = vmatpush1.msra.mxu0 0.0
    %2780 = vmatprep.subr.mxu0 0.0
    %2781 = vmatpush1.msra.mxu0 0.0
    %2782 = vmatprep.subr.mxu0 0.0
    %2783 = vmatpush1.msra.mxu0 0.0
    %2784 = vmatprep.subr.mxu0 0.0
    %2785 = vmatpush1.msra.mxu0 0.0
    %2786 = vmatprep.mubr.f32.mxu0 0.0
    %2787 = vmatmul.mubr.f32.gmra.mrb[0].mxu0 %v2720
    %v2788 = vpop.f32.mrb[0].mxu0
    %v2789 = vadd.f32 0.0, %v2788
    %v2790 = vpop.f32.mrb[0].mxu0
    %v2791 = vadd.f32 0.0, %v2790
    %2792 = vdwg.mxu0
    %2793 = vmatprep.subr.mxu0 0.0
    %2794 = vmatpush1.msra.mxu0 %v257
    %2795 = vmatprep.subr.mxu0 0.0
    %2796 = vmatpush1.msra.mxu0 %v260
    %2797 = vmatprep.subr.mxu0 0.0
    %2798 = vmatpush1.msra.mxu0 0.0
    %2799 = vmatprep.subr.mxu0 0.0
    %2800 = vmatpush1.msra.mxu0 0.0
    %2801 = vmatprep.subr.mxu0 0.0
    %2802 = vmatpush1.msra.mxu0 0.0
    %2803 = vmatprep.subr.mxu0 0.0
    %2804 = vmatpush1.msra.mxu0 0.0
    %2805 = vmatprep.subr.mxu0 0.0
    %2806 = vmatpush1.msra.mxu0 0.0
    %2807 = vmatprep.subr.mxu0 0.0
    %2808 = vmatpush1.msra.mxu0 0.0
    %2809 = vmatprep.subr.mxu0 0.0
    %2810 = vmatpush1.msra.mxu0 0.0
    %2811 = vmatprep.subr.mxu0 0.0
    %2812 = vmatpush1.msra.mxu0 0.0
    %2813 = vmatprep.subr.mxu0 0.0
    %2814 = vmatpush1.msra.mxu0 0.0
    %2815 = vmatprep.subr.mxu0 0.0
    %2816 = vmatpush1.msra.mxu0 0.0
    %2817 = vmatprep.subr.mxu0 0.0
    %2818 = vmatpush1.msra.mxu0 0.0
    %2819 = vmatprep.subr.mxu0 0.0
    %2820 = vmatpush1.msra.mxu0 0.0
    %2821 = vmatprep.subr.mxu0 0.0
    %2822 = vmatpush1.msra.mxu0 0.0
    %2823 = vmatprep.subr.mxu0 0.0
    %2824 = vmatpush1.msra.mxu0 0.0
    %2825 = vmatprep.subr.mxu0 0.0
    %2826 = vmatpush1.msra.mxu0 0.0
    %2827 = vmatprep.subr.mxu0 0.0
    %2828 = vmatpush1.msra.mxu0 0.0
    %2829 = vmatprep.subr.mxu0 0.0
    %2830 = vmatpush1.msra.mxu0 0.0
    %2831 = vmatprep.subr.mxu0 0.0
    %2832 = vmatpush1.msra.mxu0 0.0
    %2833 = vmatprep.subr.mxu0 0.0
    %2834 = vmatpush1.msra.mxu0 0.0
    %2835 = vmatprep.subr.mxu0 0.0
    %2836 = vmatpush1.msra.mxu0 0.0
    %2837 = vmatprep.subr.mxu0 0.0
    %2838 = vmatpush1.msra.mxu0 0.0
    %2839 = vmatprep.subr.mxu0 0.0
    %2840 = vmatpush1.msra.mxu0 0.0
    %2841 = vmatprep.subr.mxu0 0.0
    %2842 = vmatpush1.msra.mxu0 0.0
    %2843 = vmatprep.subr.mxu0 0.0
    %2844 = vmatpush1.msra.mxu0 0.0
    %2845 = vmatprep.subr.mxu0 0.0
    %2846 = vmatpush1.msra.mxu0 0.0
    %2847 = vmatprep.subr.mxu0 0.0
    %2848 = vmatpush1.msra.mxu0 0.0
    %2849 = vmatprep.subr.mxu0 0.0
    %2850 = vmatpush1.msra.mxu0 0.0
    %2851 = vmatprep.subr.mxu0 0.0
    %2852 = vmatpush1.msra.mxu0 0.0
    %2853 = vmatprep.subr.mxu0 0.0
    %2854 = vmatpush1.msra.mxu0 0.0
    %2855 = vmatprep.subr.mxu0 0.0
    %2856 = vmatpush1.msra.mxu0 0.0
    %2857 = vmatprep.mubr.f32.mxu0 0.0
    %2858 = vmatmul.mubr.f32.gmra.mrb[0].mxu0 %v2720
    %v2859 = vpop.f32.mrb[0].mxu0
    %v2860 = vadd.f32 0.0, %v2859
    %v2861 = vpop.f32.mrb[0].mxu0
    %2862 = vdwg.mxu0
    %v2863 = vadd.f32 %v2643, %v2789
    %v2864 = vadd.f32 %v2645, %v2791
    %v2865 = vadd.f32 %v2714, %v2860
    %v2866 = vxor.u32 %v2863, 2147483648
    %v2867 = vxor.u32 %v2864, 2147483648
    %v2868 = vxor.u32 %v2865, 2147483648
    %v2869 = vmul.f32 %v2866, 1.442695
    %v2870 = vpow.pop %v2869
    %v2871 = vmul.f32 %v2867, 1.442695
    %v2872 = vpow.pop %v2871
    %v2873 = vmul.f32 %v2868, 1.442695
    %v2874 = vpow.pop %v2873
    %v2875 = vadd.f32 %v2870, 1.0
    %v2876 = vadd.f32 %v2872, 1.0
    %v2877 = vadd.f32 %v2874, 1.0
    %v2878 = vrcp.pop %v2875
    %v2879 = vmul.f32 1.0, %v2878
    %v2880 = vrcp.pop %v2876
    %v2881 = vmul.f32 1.0, %v2880
    %v2882 = vrcp.pop %v2877
    %v2883 = vmul.f32 1.0, %v2882
    %v2884 = vmul.f32 %v2881, 2.0
    %v2885 = vmul.f32 %v2883, 2.0
    %v2886 = vsub.f32 %v2884, 1.0
    %v2887 = vsub.f32 %v2885, 1.0
    %v2888 = vmul.f32 %v2879, %v2558
    %v2889 = vmul.f32 %v2881, %v2559
    %2892 = vrot.lane.b32.xlu0 %v2886, 64
    %v2893 = vpop.permute.xlu0 %2892
    %2894 = vrot.lane.b32.xlu0 %v2887, 64
    %v2895 = vpop.permute.xlu0 %2894
    %v2896 = vsel %vm443, %v2893, %v2895
    %v2898 = vmul.f32 %v2879, %v2896
    %2900 = vrot.lane.b32.xlu0 %v2898, 96
    %v2901 = vpop.permute.xlu0 %2900
    %v2903 = vadd.f32 %v2888, %v2901
    %v2904 = vadd.f32 %v2889, %v2901
    %v2905 = vtanh.pop %v2903
    %v2906 = vtanh.pop %v2904
    %2909 = vrot.lane.b32.xlu0 %v2905, 64
    %v2910 = vpop.permute.xlu0 %2909
    %2911 = vrot.lane.b32.xlu0 %v2906, 64
    %v2912 = vpop.permute.xlu0 %2911
    %v2913 = vsel %vm443, %v2910, %v2912
    %v2915 = vmul.f32 %v2883, %v2913
    %2917 = vrot.lane.b32.xlu0 %v2915, 96
    %v2918 = vpop.permute.xlu0 %2917
    %v2919 = vsel %vm110, %v2918, 0
    %2921 = vmatprep.subr.mxu0 %v58
    %2922 = vmatpush1.msra.mxu0 %v57
    %2923 = vmatprep.subr.mxu0 %v61
    %2924 = vmatpush1.msra.mxu0 %v60
    %2925 = vmatprep.subr.mxu0 %v64
    %2926 = vmatpush1.msra.mxu0 %v63
    %2927 = vmatprep.subr.mxu0 %v67
    %2928 = vmatpush1.msra.mxu0 %v66
    %2929 = vmatprep.subr.mxu0 %v70
    %2930 = vmatpush1.msra.mxu0 %v69
    %2931 = vmatprep.subr.mxu0 %v73
    %2932 = vmatpush1.msra.mxu0 %v72
    %2933 = vmatprep.subr.mxu0 %v76
    %2934 = vmatpush1.msra.mxu0 %v75
    %2935 = vmatprep.subr.mxu0 %v79
    %2936 = vmatpush1.msra.mxu0 %v78
    %2937 = vmatprep.subr.mxu0 %v82
    %2938 = vmatpush1.msra.mxu0 %v81
    %2939 = vmatprep.subr.mxu0 %v85
    %2940 = vmatpush1.msra.mxu0 %v84
    %2941 = vmatprep.subr.mxu0 %v88
    %2942 = vmatpush1.msra.mxu0 %v87
    %2943 = vmatprep.subr.mxu0 %v91
    %2944 = vmatpush1.msra.mxu0 %v90
    %2945 = vmatprep.subr.mxu0 0.0
    %2946 = vmatpush1.msra.mxu0 0.0
    %2947 = vmatprep.subr.mxu0 0.0
    %2948 = vmatpush1.msra.mxu0 0.0
    %2949 = vmatprep.subr.mxu0 0.0
    %2950 = vmatpush1.msra.mxu0 0.0
    %2951 = vmatprep.subr.mxu0 0.0
    %2952 = vmatpush1.msra.mxu0 0.0
    %2953 = vmatprep.subr.mxu0 0.0
    %2954 = vmatpush1.msra.mxu0 0.0
    %2955 = vmatprep.subr.mxu0 0.0
    %2956 = vmatpush1.msra.mxu0 0.0
    %2957 = vmatprep.subr.mxu0 0.0
    %2958 = vmatpush1.msra.mxu0 0.0
    %2959 = vmatprep.subr.mxu0 0.0
    %2960 = vmatpush1.msra.mxu0 0.0
    %2961 = vmatprep.subr.mxu0 0.0
    %2962 = vmatpush1.msra.mxu0 0.0
    %2963 = vmatprep.subr.mxu0 0.0
    %2964 = vmatpush1.msra.mxu0 0.0
    %2965 = vmatprep.subr.mxu0 0.0
    %2966 = vmatpush1.msra.mxu0 0.0
    %2967 = vmatprep.subr.mxu0 0.0
    %2968 = vmatpush1.msra.mxu0 0.0
    %2969 = vmatprep.subr.mxu0 0.0
    %2970 = vmatpush1.msra.mxu0 0.0
    %2971 = vmatprep.subr.mxu0 0.0
    %2972 = vmatpush1.msra.mxu0 0.0
    %2973 = vmatprep.subr.mxu0 0.0
    %2974 = vmatpush1.msra.mxu0 0.0
    %2975 = vmatprep.subr.mxu0 0.0
    %2976 = vmatpush1.msra.mxu0 0.0
    %2977 = vmatprep.subr.mxu0 0.0
    %2978 = vmatpush1.msra.mxu0 0.0
    %2979 = vmatprep.subr.mxu0 0.0
    %2980 = vmatpush1.msra.mxu0 0.0
    %2981 = vmatprep.subr.mxu0 0.0
    %2982 = vmatpush1.msra.mxu0 0.0
    %2983 = vmatprep.subr.mxu0 0.0
    %2984 = vmatpush1.msra.mxu0 0.0
    %2985 = vmatprep.mubr.f32.mxu0 0.0
    %2986 = vmatmul.mubr.f32.gmra.mrb[0].mxu0 %v2919
    %v2987 = vpop.f32.mrb[0].mxu0
    %v2988 = vadd.f32 %v98, %v2987
    %v2989 = vpop.f32.mrb[0].mxu0
    %v2990 = vadd.f32 %v102, %v2989
    %2991 = vdwg.mxu0
    %2992 = vmatprep.subr.mxu0 0.0
    %2993 = vmatpush1.msra.mxu0 %v59
    %2994 = vmatprep.subr.mxu0 0.0
    %2995 = vmatpush1.msra.mxu0 %v62
    %2996 = vmatprep.subr.mxu0 0.0
    %2997 = vmatpush1.msra.mxu0 %v65
    %2998 = vmatprep.subr.mxu0 0.0
    %2999 = vmatpush1.msra.mxu0 %v68
    %3000 = vmatprep.subr.mxu0 0.0
    %3001 = vmatpush1.msra.mxu0 %v71
    %3002 = vmatprep.subr.mxu0 0.0
    %3003 = vmatpush1.msra.mxu0 %v74
    %3004 = vmatprep.subr.mxu0 0.0
    %3005 = vmatpush1.msra.mxu0 %v77
    %3006 = vmatprep.subr.mxu0 0.0
    %3007 = vmatpush1.msra.mxu0 %v80
    %3008 = vmatprep.subr.mxu0 0.0
    %3009 = vmatpush1.msra.mxu0 %v83
    %3010 = vmatprep.subr.mxu0 0.0
    %3011 = vmatpush1.msra.mxu0 %v86
    %3012 = vmatprep.subr.mxu0 0.0
    %3013 = vmatpush1.msra.mxu0 %v89
    %3014 = vmatprep.subr.mxu0 0.0
    %3015 = vmatpush1.msra.mxu0 %v92
    %3016 = vmatprep.subr.mxu0 0.0
    %3017 = vmatpush1.msra.mxu0 0.0
    %3018 = vmatprep.subr.mxu0 0.0
    %3019 = vmatpush1.msra.mxu0 0.0
    %3020 = vmatprep.subr.mxu0 0.0
    %3021 = vmatpush1.msra.mxu0 0.0
    %3022 = vmatprep.subr.mxu0 0.0
    %3023 = vmatpush1.msra.mxu0 0.0
    %3024 = vmatprep.subr.mxu0 0.0
    %3025 = vmatpush1.msra.mxu0 0.0
    %3026 = vmatprep.subr.mxu0 0.0
    %3027 = vmatpush1.msra.mxu0 0.0
    %3028 = vmatprep.subr.mxu0 0.0
    %3029 = vmatpush1.msra.mxu0 0.0
    %3030 = vmatprep.subr.mxu0 0.0
    %3031 = vmatpush1.msra.mxu0 0.0
    %3032 = vmatprep.subr.mxu0 0.0
    %3033 = vmatpush1.msra.mxu0 0.0
    %3034 = vmatprep.subr.mxu0 0.0
    %3035 = vmatpush1.msra.mxu0 0.0
    %3036 = vmatprep.subr.mxu0 0.0
    %3037 = vmatpush1.msra.mxu0 0.0
    %3038 = vmatprep.subr.mxu0 0.0
    %3039 = vmatpush1.msra.mxu0 0.0
    %3040 = vmatprep.subr.mxu0 0.0
    %3041 = vmatpush1.msra.mxu0 0.0
    %3042 = vmatprep.subr.mxu0 0.0
    %3043 = vmatpush1.msra.mxu0 0.0
    %3044 = vmatprep.subr.mxu0 0.0
    %3045 = vmatpush1.msra.mxu0 0.0
    %3046 = vmatprep.subr.mxu0 0.0
    %3047 = vmatpush1.msra.mxu0 0.0
    %3048 = vmatprep.subr.mxu0 0.0
    %3049 = vmatpush1.msra.mxu0 0.0
    %3050 = vmatprep.subr.mxu0 0.0
    %3051 = vmatpush1.msra.mxu0 0.0
    %3052 = vmatprep.subr.mxu0 0.0
    %3053 = vmatpush1.msra.mxu0 0.0
    %3054 = vmatprep.subr.mxu0 0.0
    %3055 = vmatpush1.msra.mxu0 0.0
    %3056 = vmatprep.mubr.f32.mxu0 0.0
    %3057 = vmatmul.mubr.f32.gmra.mrb[0].mxu0 %v2919
    %v3058 = vpop.f32.mrb[0].mxu0
    %v3059 = vadd.f32 %v106, %v3058
    %v3060 = vpop.f32.mrb[0].mxu0
    %3061 = vdwg.mxu0
    %v3062 = vxor.u32 %v2988, 2147483648
    %v3063 = vxor.u32 %v2990, 2147483648
    %v3064 = vxor.u32 %v3059, 2147483648
    %v3065 = vmul.f32 %v3062, 1.442695
    %v3066 = vpow.pop %v3065
    %v3067 = vmul.f32 %v3063, 1.442695
    %v3068 = vpow.pop %v3067
    %v3069 = vmul.f32 %v3064, 1.442695
    %v3070 = vpow.pop %v3069
    %v3071 = vadd.f32 %v3066, 1.0
    %v3072 = vadd.f32 %v3068, 1.0
    %v3073 = vadd.f32 %v3070, 1.0
    %v3074 = vrcp.pop %v3071
    %v3075 = vmul.f32 1.0, %v3074
    %v3076 = vrcp.pop %v3072
    %v3077 = vmul.f32 1.0, %v3076
    %v3078 = vrcp.pop %v3073
    %v3079 = vmul.f32 1.0, %v3078
    %v3080 = vmul.f32 %v3077, 2.0
    %v3081 = vmul.f32 %v3079, 2.0
    %v3082 = vsub.f32 %v3080, 1.0
    %v3083 = vsub.f32 %v3081, 1.0
    %v3084 = vmul.f32 %v3075, %v2903
    %v3085 = vmul.f32 %v3077, %v2904
    %3088 = vrot.lane.b32.xlu0 %v3082, 64
    %v3089 = vpop.permute.xlu0 %3088
    %3090 = vrot.lane.b32.xlu0 %v3083, 64
    %v3091 = vpop.permute.xlu0 %3090
    %v3092 = vsel %vm443, %v3089, %v3091
    %v3094 = vmul.f32 %v3075, %v3092
    %3096 = vrot.lane.b32.xlu0 %v3094, 96
    %v3097 = vpop.permute.xlu0 %3096
    %v3099 = vadd.f32 %v3084, %v3097
    %v3100 = vadd.f32 %v3085, %v3097
    %v3101 = vtanh.pop %v3099
    %v3102 = vtanh.pop %v3100
    %3105 = vrot.lane.b32.xlu0 %v3101, 64
    %v3106 = vpop.permute.xlu0 %3105
    %3107 = vrot.lane.b32.xlu0 %v3102, 64
    %v3108 = vpop.permute.xlu0 %3107
    %v3109 = vsel %vm443, %v3106, %v3108
    %v3111 = vmul.f32 %v3079, %v3109
    %vm3112 = vcmp.ge.s32.totalorder %v56, 32
    %vm3113 = vcmp.lt.s32.totalorder %v56, 96
    %vm3114 = vmand %vm3112, %vm3113
    %3117 = vrot.lane.b32.xlu0 %v3099, 32
    %v3118 = vpop.permute.xlu0 %3117
    %3119 = vrot.lane.b32.xlu0 %v3100, 32
    %v3120 = vpop.permute.xlu0 %3119
    %v3121 = vsel %vm473, %v3118, %v3120
    %3125 = vrot.lane.b32.xlu0 %v2903, 32
    %v3126 = vpop.permute.xlu0 %3125
    %3127 = vrot.lane.b32.xlu0 %v2904, 32
    %v3128 = vpop.permute.xlu0 %3127
    %v3129 = vsel %vm473, %v3126, %v3128
    %v3131 = vsel %vm3114, %v3121, %v3129
    %3133 = vrot.lane.b32.xlu0 %v3111, 96
    %v3134 = vpop.permute.xlu0 %3133
    %v3137 = vsel %vm3114, %v3134, %v2918
    %v3139 = vsel %vm110, %v3137, 0
    %3141 = vmatprep.subr.mxu0 %v58
    %3142 = vmatpush1.msra.mxu0 %v57
    %3143 = vmatprep.subr.mxu0 %v61
    %3144 = vmatpush1.msra.mxu0 %v60
    %3145 = vmatprep.subr.mxu0 %v64
    %3146 = vmatpush1.msra.mxu0 %v63
    %3147 = vmatprep.subr.mxu0 %v67
    %3148 = vmatpush1.msra.mxu0 %v66
    %3149 = vmatprep.subr.mxu0 %v70
    %3150 = vmatpush1.msra.mxu0 %v69
    %3151 = vmatprep.subr.mxu0 %v73
    %3152 = vmatpush1.msra.mxu0 %v72
    %3153 = vmatprep.subr.mxu0 %v76
    %3154 = vmatpush1.msra.mxu0 %v75
    %3155 = vmatprep.subr.mxu0 %v79
    %3156 = vmatpush1.msra.mxu0 %v78
    %3157 = vmatprep.subr.mxu0 %v82
    %3158 = vmatpush1.msra.mxu0 %v81
    %3159 = vmatprep.subr.mxu0 %v85
    %3160 = vmatpush1.msra.mxu0 %v84
    %3161 = vmatprep.subr.mxu0 %v88
    %3162 = vmatpush1.msra.mxu0 %v87
    %3163 = vmatprep.subr.mxu0 %v91
    %3164 = vmatpush1.msra.mxu0 %v90
    %3165 = vmatprep.subr.mxu0 0.0
    %3166 = vmatpush1.msra.mxu0 0.0
    %3167 = vmatprep.subr.mxu0 0.0
    %3168 = vmatpush1.msra.mxu0 0.0
    %3169 = vmatprep.subr.mxu0 0.0
    %3170 = vmatpush1.msra.mxu0 0.0
    %3171 = vmatprep.subr.mxu0 0.0
    %3172 = vmatpush1.msra.mxu0 0.0
    %3173 = vmatprep.subr.mxu0 0.0
    %3174 = vmatpush1.msra.mxu0 0.0
    %3175 = vmatprep.subr.mxu0 0.0
    %3176 = vmatpush1.msra.mxu0 0.0
    %3177 = vmatprep.subr.mxu0 0.0
    %3178 = vmatpush1.msra.mxu0 0.0
    %3179 = vmatprep.subr.mxu0 0.0
    %3180 = vmatpush1.msra.mxu0 0.0
    %3181 = vmatprep.subr.mxu0 0.0
    %3182 = vmatpush1.msra.mxu0 0.0
    %3183 = vmatprep.subr.mxu0 0.0
    %3184 = vmatpush1.msra.mxu0 0.0
    %3185 = vmatprep.subr.mxu0 0.0
    %3186 = vmatpush1.msra.mxu0 0.0
    %3187 = vmatprep.subr.mxu0 0.0
    %3188 = vmatpush1.msra.mxu0 0.0
    %3189 = vmatprep.subr.mxu0 0.0
    %3190 = vmatpush1.msra.mxu0 0.0
    %3191 = vmatprep.subr.mxu0 0.0
    %3192 = vmatpush1.msra.mxu0 0.0
    %3193 = vmatprep.subr.mxu0 0.0
    %3194 = vmatpush1.msra.mxu0 0.0
    %3195 = vmatprep.subr.mxu0 0.0
    %3196 = vmatpush1.msra.mxu0 0.0
    %3197 = vmatprep.subr.mxu0 0.0
    %3198 = vmatpush1.msra.mxu0 0.0
    %3199 = vmatprep.subr.mxu0 0.0
    %3200 = vmatpush1.msra.mxu0 0.0
    %3201 = vmatprep.subr.mxu0 0.0
    %3202 = vmatpush1.msra.mxu0 0.0
    %3203 = vmatprep.subr.mxu0 0.0
    %3204 = vmatpush1.msra.mxu0 0.0
    %3205 = vmatprep.mubr.f32.mxu0 0.0
    %3206 = vmatmul.mubr.f32.gmra.mrb[0].mxu0 %v3139
    %v3207 = vpop.f32.mrb[0].mxu0
    %v3208 = vadd.f32 %v98, %v3207
    %v3209 = vpop.f32.mrb[0].mxu0
    %v3210 = vadd.f32 %v102, %v3209
    %3211 = vdwg.mxu0
    %3212 = vmatprep.subr.mxu0 0.0
    %3213 = vmatpush1.msra.mxu0 %v59
    %3214 = vmatprep.subr.mxu0 0.0
    %3215 = vmatpush1.msra.mxu0 %v62
    %3216 = vmatprep.subr.mxu0 0.0
    %3217 = vmatpush1.msra.mxu0 %v65
    %3218 = vmatprep.subr.mxu0 0.0
    %3219 = vmatpush1.msra.mxu0 %v68
    %3220 = vmatprep.subr.mxu0 0.0
    %3221 = vmatpush1.msra.mxu0 %v71
    %3222 = vmatprep.subr.mxu0 0.0
    %3223 = vmatpush1.msra.mxu0 %v74
    %3224 = vmatprep.subr.mxu0 0.0
    %3225 = vmatpush1.msra.mxu0 %v77
    %3226 = vmatprep.subr.mxu0 0.0
    %3227 = vmatpush1.msra.mxu0 %v80
    %3228 = vmatprep.subr.mxu0 0.0
    %3229 = vmatpush1.msra.mxu0 %v83
    %3230 = vmatprep.subr.mxu0 0.0
    %3231 = vmatpush1.msra.mxu0 %v86
    %3232 = vmatprep.subr.mxu0 0.0
    %3233 = vmatpush1.msra.mxu0 %v89
    %3234 = vmatprep.subr.mxu0 0.0
    %3235 = vmatpush1.msra.mxu0 %v92
    %3236 = vmatprep.subr.mxu0 0.0
    %3237 = vmatpush1.msra.mxu0 0.0
    %3238 = vmatprep.subr.mxu0 0.0
    %3239 = vmatpush1.msra.mxu0 0.0
    %3240 = vmatprep.subr.mxu0 0.0
    %3241 = vmatpush1.msra.mxu0 0.0
    %3242 = vmatprep.subr.mxu0 0.0
    %3243 = vmatpush1.msra.mxu0 0.0
    %3244 = vmatprep.subr.mxu0 0.0
    %3245 = vmatpush1.msra.mxu0 0.0
    %3246 = vmatprep.subr.mxu0 0.0
    %3247 = vmatpush1.msra.mxu0 0.0
    %3248 = vmatprep.subr.mxu0 0.0
    %3249 = vmatpush1.msra.mxu0 0.0
    %3250 = vmatprep.subr.mxu0 0.0
    %3251 = vmatpush1.msra.mxu0 0.0
    %3252 = vmatprep.subr.mxu0 0.0
    %3253 = vmatpush1.msra.mxu0 0.0
    %3254 = vmatprep.subr.mxu0 0.0
    %3255 = vmatpush1.msra.mxu0 0.0
    %3256 = vmatprep.subr.mxu0 0.0
    %3257 = vmatpush1.msra.mxu0 0.0
    %3258 = vmatprep.subr.mxu0 0.0
    %3259 = vmatpush1.msra.mxu0 0.0
    %3260 = vmatprep.subr.mxu0 0.0
    %3261 = vmatpush1.msra.mxu0 0.0
    %3262 = vmatprep.subr.mxu0 0.0
    %3263 = vmatpush1.msra.mxu0 0.0
    %3264 = vmatprep.subr.mxu0 0.0
    %3265 = vmatpush1.msra.mxu0 0.0
    %3266 = vmatprep.subr.mxu0 0.0
    %3267 = vmatpush1.msra.mxu0 0.0
    %3268 = vmatprep.subr.mxu0 0.0
    %3269 = vmatpush1.msra.mxu0 0.0
    %3270 = vmatprep.subr.mxu0 0.0
    %3271 = vmatpush1.msra.mxu0 0.0
    %3272 = vmatprep.subr.mxu0 0.0
    %3273 = vmatpush1.msra.mxu0 0.0
    %3274 = vmatprep.subr.mxu0 0.0
    %3275 = vmatpush1.msra.mxu0 0.0
    %3276 = vmatprep.mubr.f32.mxu0 0.0
    %3277 = vmatmul.mubr.f32.gmra.mrb[0].mxu0 %v3139
    %v3278 = vpop.f32.mrb[0].mxu0
    %v3279 = vadd.f32 %v106, %v3278
    %v3280 = vpop.f32.mrb[0].mxu0
    %3281 = vdwg.mxu0
    %v3282 = vxor.u32 %v3208, 2147483648
    %v3283 = vxor.u32 %v3210, 2147483648
    %v3284 = vxor.u32 %v3279, 2147483648
    %v3285 = vmul.f32 %v3282, 1.442695
    %v3286 = vpow.pop %v3285
    %v3287 = vmul.f32 %v3283, 1.442695
    %v3288 = vpow.pop %v3287
    %v3289 = vmul.f32 %v3284, 1.442695
    %v3290 = vpow.pop %v3289
    %v3291 = vadd.f32 %v3286, 1.0
    %v3292 = vadd.f32 %v3288, 1.0
    %v3293 = vadd.f32 %v3290, 1.0
    %v3294 = vrcp.pop %v3291
    %v3295 = vmul.f32 1.0, %v3294
    %v3296 = vrcp.pop %v3292
    %v3297 = vmul.f32 1.0, %v3296
    %v3298 = vrcp.pop %v3293
    %v3299 = vmul.f32 1.0, %v3298
    %v3300 = vmul.f32 %v3297, 2.0
    %v3301 = vmul.f32 %v3299, 2.0
    %v3302 = vsub.f32 %v3300, 1.0
    %v3303 = vsub.f32 %v3301, 1.0
    %3305 = vrot.lane.b32.xlu0 %v3131, 96
    %v3306 = vpop.permute.xlu0 %3305
    %v3308 = vmul.f32 %v3295, %v3306
    %v3309 = vmul.f32 %v3297, %v3306
    %3312 = vrot.lane.b32.xlu0 %v3302, 64
    %v3313 = vpop.permute.xlu0 %3312
    %3314 = vrot.lane.b32.xlu0 %v3303, 64
    %v3315 = vpop.permute.xlu0 %3314
    %v3316 = vsel %vm443, %v3313, %v3315
    %v3318 = vmul.f32 %v3295, %v3316
    %3320 = vrot.lane.b32.xlu0 %v3318, 96
    %v3321 = vpop.permute.xlu0 %3320
    %v3323 = vadd.f32 %v3308, %v3321
    %v3324 = vadd.f32 %v3309, %v3321
    %v3325 = vtanh.pop %v3323
    %v3326 = vtanh.pop %v3324
    %3329 = vrot.lane.b32.xlu0 %v3325, 64
    %v3330 = vpop.permute.xlu0 %3329
    %3331 = vrot.lane.b32.xlu0 %v3326, 64
    %v3332 = vpop.permute.xlu0 %3331
    %v3333 = vsel %vm443, %v3330, %v3332
    %v3335 = vmul.f32 %v3299, %v3333
    %vm3336 = vcmp.ge.s32.totalorder %v56, 64
    %vm3337 = vmand %vm3336, %vm3113
    %3339 = vrot.lane.b32.xlu0 %v3335, 96
    %v3340 = vpop.permute.xlu0 %3339
    %v3342 = vsel %vm3337, %v3340, %v3137
    %v3343 = vld [vmem:[#allocation6 + $0x1] sm:$0x1]
    %v3344 = vld [vmem:[#allocation6 + $0x2] sm:$0x1]
    %v3345 = vlaneseq
    %v3346 = vshrl.u32 %v3345, 7
    %v3347 = vsub.s32 0, %v3346
    %v3348 = vrot.slane %v3343, %v3347
    %3350 = vrot.lane.b32.xlu0 %v3348, 64
    %v3351 = vpop.permute.xlu0 %3350
    %v3353 = vmul.f32 %v3342, %v3351
    %3355 = vrot.lane.b32.xlu0 %v3353, 64
    %v3356 = vpop.permute.xlu0 %3355
    %vm3358 = vcmask 254976
    %v3359 = vsel %vm3358, %v3356, 0.0
    %3360 = vadd.xlane.f32.xlu0 %v3359
    %v3361 = vpop.xlane.xlu0 %3360
    %v3362 = vlaneseq
    %v3363 = vshrl.u32 %v3362, 7
    %v3364 = vsub.s32 0, %v3363
    %v3365 = vrot.slane %v3344, %v3364
    %v3366 = vadd.f32 %v3361, %v3365
    %vm3367 = vcmask 1024
    %3368 = vst.msk [vmem:[%s3] sm:$0x3] %vm3367, %v3366
    // Predicated region
    $region26: #{tpu_custom_call.1} parent=1 // pred_check
      _
    $region27: #{tpu_custom_call.1} parent=1 // pred_check_branch
      %3370 = sbr.rel (0) target = $region29
    $region28: #{tpu_custom_call.1} parent=1 // pred_region
      _
    $region29: #{tpu_custom_call.1} parent=1 // pred_fallthru
      _
    // Predicated region
    $region30: #{tpu_custom_call.1} parent=1 // pred_check
      _
    $region31: #{tpu_custom_call.1} parent=1 // pred_check_branch
      %3372 = sbr.rel (0) target = $region33
    $region32: #{tpu_custom_call.1} parent=1 // pred_region
      _
    $region33: #{tpu_custom_call.1} parent=1 // pred_fallthru
      _
    %3373 = vsyncpa [#allocation3], 1
    %3374 = vsyncpa [#allocation5], 1

</llo_original>
